<compile_context>
chip_gen: v6e
topology: v6e:2x2x1
jax: 0.10.0
libtpu: 0.0.40
codegen_flags: <defaults>
</compile_context>

<pallas_src>
import functools

import jax
import jax.numpy as jnp
from jax.experimental import pallas as pl
from jax.experimental.pallas import tpu as pltpu


# ---------------------------------------------------------------------------
# helpers
# ---------------------------------------------------------------------------

def _row_tile(M, bytes_per_row, target_bytes=8 * 1024 * 1024):
    """Largest row tile (multiple of 8) that keeps ~target_bytes in VMEM."""
    t = max(8, min(M, (target_bytes // max(bytes_per_row, 1)) // 8 * 8))
    return M if t >= M else t


def _pick_q_tile(N, C, H, nw, budget_bytes=32 * 1024 * 1024):
    """Largest power-of-two query tile that divides N and fits the budget."""
    fixed = 2 * 2 * N * nw * 4                       # double-buffered K and V
    per_row = 4 * (4 * N * C + 4 * N * H + 8 * N + 8 * nw)
    cap = max(8, (budget_bytes - fixed) // max(per_row, 1))
    for t in (512, 256, 128, 64, 32, 16, 8):
        if t <= cap and N % t == 0:
            return t
    return N                                         # small / odd N fallback


# ---------------------------------------------------------------------------
# fused LayerNorm + Linear  (node path: mha_ln_h + lin_QKV), row-tiled
# ---------------------------------------------------------------------------

def _ln_linear_kernel(x_ref, g_ref, b_ref, w_ref, wb_ref, o_ref, *, eps):
    x = x_ref[...].astype(jnp.float32)
    mu = jnp.mean(x, axis=-1, keepdims=True)
    xc = x - mu
    var = jnp.mean(xc * xc, axis=-1, keepdims=True)
    xln = xc * jax.lax.rsqrt(var + eps) * g_ref[...] + b_ref[...]
    y = jnp.dot(xln, w_ref[...], preferred_element_type=jnp.float32)
    o_ref[...] = (y + wb_ref[...]).astype(o_ref.dtype)


def ln_linear(x2d, g, b, w, wb, *, eps=1e-5):
    M, fin = x2d.shape
    fout = w.shape[1]
    tm = _row_tile(M, 8 * (fin + fout))
    return pl.pallas_call(
        functools.partial(_ln_linear_kernel, eps=eps),
        grid=(pl.cdiv(M, tm),),
        in_specs=[pl.BlockSpec((tm, fin), lambda i: (i, 0)),
                  pl.BlockSpec((1, fin), lambda i: (0, 0)),
                  pl.BlockSpec((1, fin), lambda i: (0, 0)),
                  pl.BlockSpec((fin, fout), lambda i: (0, 0)),
                  pl.BlockSpec((1, fout), lambda i: (0, 0))],
        out_specs=pl.BlockSpec((tm, fout), lambda i: (i, 0)),
        out_shape=jax.ShapeDtypeStruct((M, fout), jnp.float32),
        compiler_params=pltpu.CompilerParams(
            dimension_semantics=("parallel",)),
    )(x2d, g.reshape(1, fin), b.reshape(1, fin), w, wb.reshape(1, fout))


# ---------------------------------------------------------------------------
# fused FFN block: LayerNorm -> W1 -> ELU -> W2 -> + residual(x), row-tiled
# ---------------------------------------------------------------------------

def _ffn_kernel(x_ref, g_ref, b_ref, w1_ref, b1_ref, w2_ref, b2_ref, o_ref,
                *, eps):
    x = x_ref[...].astype(jnp.float32)
    mu = jnp.mean(x, axis=-1, keepdims=True)
    xc = x - mu
    var = jnp.mean(xc * xc, axis=-1, keepdims=True)
    xln = xc * jax.lax.rsqrt(var + eps) * g_ref[...] + b_ref[...]
    t = jnp.dot(xln, w1_ref[...], preferred_element_type=jnp.float32)
    t = t + b1_ref[...]
    t = jnp.where(t > 0, t, jnp.exp(jnp.minimum(t, 0.0)) - 1.0)      # ELU
    y = jnp.dot(t, w2_ref[...], preferred_element_type=jnp.float32)
    o_ref[...] = (y + b2_ref[...] + x).astype(o_ref.dtype)


def ffn_block(x2d, g, b, w1, b1, w2, b2, *, eps=1e-5):
    M, f = x2d.shape
    fi = w1.shape[1]
    tm = _row_tile(M, 4 * (4 * f + fi))
    return pl.pallas_call(
        functools.partial(_ffn_kernel, eps=eps),
        grid=(pl.cdiv(M, tm),),
        in_specs=[pl.BlockSpec((tm, f), lambda i: (i, 0)),
                  pl.BlockSpec((1, f), lambda i: (0, 0)),
                  pl.BlockSpec((1, f), lambda i: (0, 0)),
                  pl.BlockSpec((f, fi), lambda i: (0, 0)),
                  pl.BlockSpec((1, fi), lambda i: (0, 0)),
                  pl.BlockSpec((fi, f), lambda i: (0, 0)),
                  pl.BlockSpec((1, f), lambda i: (0, 0))],
        out_specs=pl.BlockSpec((tm, f), lambda i: (i, 0)),
        out_shape=jax.ShapeDtypeStruct((M, f), jnp.float32),
        compiler_params=pltpu.CompilerParams(
            dimension_semantics=("parallel",)),
    )(x2d, g.reshape(1, f), b.reshape(1, f), w1, b1.reshape(1, fi),
      w2, b2.reshape(1, f))


# ---------------------------------------------------------------------------
# fused EGT multi-head attention kernel
#   edge LN + E/G projection + gates + attention + lin_O_h/lin_O_e + residuals
# ---------------------------------------------------------------------------

def _egt_mha_kernel(q_ref, k_ref, v_ref, hres_ref, e_ref,
                    lng_ref, lnb_ref, weg_ref, beg_ref,
                    woh_ref, boh_ref, woe_ref, boe_ref,
                    hh_ref, ee_ref, *,
                    num_heads, dot_dim, eps, clip_min, clip_max, scale_degree):
    H, D = num_heads, dot_dim
    tq = q_ref.shape[1]
    N = k_ref.shape[1]
    C = e_ref.shape[3]

    # ---- edge LayerNorm + fused E/G projection (concatenated weight) ------
    e_raw = e_ref[0].astype(jnp.float32)               # [tq, N, C] (residual)
    e2 = e_raw.reshape(tq * N, C)
    mu = jnp.mean(e2, axis=-1, keepdims=True)
    ec = e2 - mu
    var = jnp.mean(ec * ec, axis=-1, keepdims=True)
    e_ln = ec * jax.lax.rsqrt(var + eps) * lng_ref[...] + lnb_ref[...]
    eg = jnp.dot(e_ln, weg_ref[...], preferred_element_type=jnp.float32)
    eg3 = (eg + beg_ref[...]).reshape(tq, N, 2 * H)    # [tq, N, 2H]  (E | G)

    # head-major Q/K/V (1/sqrt(D) already folded into the Q weights).
    q = q_ref[0].astype(jnp.bfloat16)                  # [tq, H*D]
    k = k_ref[0].astype(jnp.bfloat16)                  # [N,  H*D]
    v = v_ref[0].astype(jnp.bfloat16)                  # [N,  H*D]

    dn = (((1,), (1,)), ((), ()))                      # contract the D axis
    v_att_parts = []
    h_hat_parts = []
    for h in range(H):
        qh = q[:, h * D:(h + 1) * D]                   # [tq, D]
        kh = k[:, h * D:(h + 1) * D]                   # [N,  D]
        vh = v[:, h * D:(h + 1) * D]                   # [N,  D]
        s = jax.lax.dot_general(qh, kh, dn,
                                preferred_element_type=jnp.float32)  # [tq, N]
        h_hat = jnp.clip(s, clip_min, clip_max) + eg3[:, :, h]
        gate = pl.reciprocal(1.0 + jnp.exp(-eg3[:, :, H + h]), approx=True)
        m = jnp.max(h_hat, axis=-1, keepdims=True)
        p = jnp.exp(h_hat - m)
        denom = jnp.sum(p, axis=-1, keepdims=True)
        a = p * pl.reciprocal(denom, approx=True) * gate
        # TODO(synk): attn_maskout / attn_dropout (training-time random masks)
        # not implemented; forward uses the eval-mode defaults (0, 0).
        va = jnp.dot(a.astype(jnp.bfloat16), vh,
                     preferred_element_type=jnp.float32)             # [tq, D]
        if scale_degree:
            # TODO(synk): num_vns > 0 override (degree_scalers[:, :num_vns]=1)
            # not handled; module default is num_vns = 0.
            deg = jnp.sum(gate, axis=-1, keepdims=True)
            va = va * jnp.log(1.0 + deg)
        v_att_parts.append(va)
        h_hat_parts.append(h_hat)

    # node output: lin_O_h(V_att) + residual  (W_oh rows pre-permuted to the
    # head-major V_att layout used here)
    v_att = jnp.concatenate(v_att_parts, axis=-1)      # [tq, H*D]
    hh = jnp.dot(v_att, woh_ref[...], preferred_element_type=jnp.float32)
    hh = hh + boh_ref[...] + hres_ref[0].astype(jnp.float32)
    hh_ref[0] = hh.astype(hh_ref.dtype)

    # edge output: lin_O_e(H_hat) + residual, emitted channels-last
    h_hat3 = jnp.stack(h_hat_parts, axis=-1)           # [tq, N, H]
    ee = jnp.dot(h_hat3.reshape(tq * N, H), woe_ref[...],
                 preferred_element_type=jnp.float32)
    ee = ee + boe_ref[...] + e2
    ee_ref[0] = ee.reshape(tq, N, C).astype(ee_ref.dtype)


def egt_mha(Q, K, V, h_res, e, ln_g, ln_b, w_eg, b_eg, w_oh, b_oh, w_oe, b_oe,
            *, num_heads, dot_dim, eps, clip_min, clip_max, scale_degree):
    B, N, nw = Q.shape
    C = e.shape[-1]
    H = num_heads
    # TODO(synk): for very large N the full-row K/V residency would need an
    # online-softmax key-tile loop; fine for moderate graph sizes.
    tq = _pick_q_tile(N, C, H, nw)
    nq = pl.cdiv(N, tq)

    node_q = pl.BlockSpec((1, tq, nw), lambda b, i: (b, i, 0))
    node_all = pl.BlockSpec((1, N, nw), lambda b, i: (b, 0, 0))
    edge_q = pl.BlockSpec((1, tq, N, C), lambda b, i: (b, i, 0, 0))

    def full2d(shape):
        return pl.BlockSpec(shape, lambda b, i: (0, 0))

    kernel = functools.partial(
        _egt_mha_kernel, num_heads=H, dot_dim=dot_dim, eps=eps,
        clip_min=clip_min, clip_max=clip_max, scale_degree=scale_degree)

    return pl.pallas_call(
        kernel,
        grid=(B, nq),
        in_specs=[node_q, node_all, node_all, node_q, edge_q,
                  full2d((1, C)), full2d((1, C)),
                  full2d((C, 2 * H)), full2d((1, 2 * H)),
                  full2d((nw, nw)), full2d((1, nw)),
                  full2d((H, C)), full2d((1, C))],
        out_specs=(node_q, edge_q),
        out_shape=(jax.ShapeDtypeStruct((B, N, nw), jnp.float32),
                   jax.ShapeDtypeStruct((B, N, N, C), jnp.float32)),
        compiler_params=pltpu.CompilerParams(
            dimension_semantics=("parallel", "parallel"),
            vmem_limit_bytes=64 * 1024 * 1024),
    )(Q, K, V, h_res, e,
      ln_g.reshape(1, C), ln_b.reshape(1, C),
      w_eg, b_eg.reshape(1, 2 * H),
      w_oh, b_oh.reshape(1, nw),
      w_oe, b_oe.reshape(1, C))


# ---------------------------------------------------------------------------
# EGT forward
# ---------------------------------------------------------------------------

def egt_forward(h, e, p, *, num_heads, dot_dim, clip_min=-5.0, clip_max=5.0,
                scale_dot=True, scale_degree=False, ln_eps=1e-5):
    B, N, nw = h.shape
    C = e.shape[-1]
    H, D = num_heads, dot_dim
    assert nw == H * D

    # ---- tiny parameter prep, folded into the kernels' weight layout ------
    # torch splits QKV.view(B, N, 3*D, H): channel c = d*H + h.  The kernels
    # use head-major channels (c' = h*D + d), so permute the projection
    # columns (and the lin_O_h rows) once, and fold 1/sqrt(D) into Q.
    idx = jnp.arange(nw)
    src = (idx % D) * H + (idx // D)
    w_qkv, b_qkv = p['lin_QKV_w'], p['lin_QKV_b']
    wq, bq = w_qkv[:, 0 * nw:1 * nw][:, src], b_qkv[0 * nw:1 * nw][src]
    wk, bk = w_qkv[:, 1 * nw:2 * nw][:, src], b_qkv[1 * nw:2 * nw][src]
    wv, bv = w_qkv[:, 2 * nw:3 * nw][:, src], b_qkv[2 * nw:3 * nw][src]
    if scale_dot:
        scale = D ** -0.5
        wq, bq = wq * scale, bq * scale
    w_qkv_hm = jnp.concatenate([wq, wk, wv], axis=1)
    b_qkv_hm = jnp.concatenate([bq, bk, bv], axis=0)
    w_oh_hm = p['lin_O_h_w'][src, :]
    w_eg = jnp.concatenate([p['lin_E_w'], p['lin_G_w']], axis=1)      # [C, 2H]
    b_eg = jnp.concatenate([p['lin_E_b'], p['lin_G_b']], axis=0)      # [2H]

    # ---- node LayerNorm + QKV projection (fused, row-tiled) ----------------
    qkv = ln_linear(h.reshape(B * N, nw), p['mha_ln_h_g'], p['mha_ln_h_b'],
                    w_qkv_hm, b_qkv_hm, eps=ln_eps)
    qkv = qkv.reshape(B, N, 3 * nw)
    Q, K, V = qkv[..., :nw], qkv[..., nw:2 * nw], qkv[..., 2 * nw:]

    # ---- fused attention + output projections + residuals ------------------
    hh_mha, ee_mha = egt_mha(
        Q, K, V, h, e, p['mha_ln_e_g'], p['mha_ln_e_b'], w_eg, b_eg,
        w_oh_hm, p['lin_O_h_b'], p['lin_O_e_w'], p['lin_O_e_b'],
        num_heads=H, dot_dim=D, eps=ln_eps, clip_min=clip_min,
        clip_max=clip_max, scale_degree=scale_degree)

    # ---- FFN blocks (LN -> W1 -> ELU -> W2 -> +residual), fused ------------
    hh = ffn_block(hh_mha.reshape(B * N, nw), p['ffn_ln_h_g'], p['ffn_ln_h_b'],
                   p['lin_W_h_1_w'], p['lin_W_h_1_b'],
                   p['lin_W_h_2_w'], p['lin_W_h_2_b'], eps=ln_eps)
    ee = ffn_block(ee_mha.reshape(B * N * N, C),
                   p['ffn_ln_e_g'], p['ffn_ln_e_b'],
                   p['lin_W_e_1_w'], p['lin_W_e_1_b'],
                   p['lin_W_e_2_w'], p['lin_W_e_2_b'], eps=ln_eps)
    return hh.reshape(B, N, nw), ee.reshape(B, N, N, C)


# ---------------------------------------------------------------------------
# pure-JAX reference of the torch forward (for the correctness check)
# ---------------------------------------------------------------------------

def _ln_ref(x, g, b, eps=1e-5):
    mu = jnp.mean(x, -1, keepdims=True)
    var = jnp.mean((x - mu) ** 2, -1, keepdims=True)
    return (x - mu) * jax.lax.rsqrt(var + eps) * g + b


def _elu_ref(x):
    return jnp.where(x > 0, x, jnp.exp(jnp.minimum(x, 0.0)) - 1.0)


def egt_forward_ref(h, e, p, *, num_heads, dot_dim, clip_min=-5.0,
                    clip_max=5.0, scale_dot=True):
    B, N, nw = h.shape
    h_r1, e_r1 = h, e
    h_ln = _ln_ref(h, p['mha_ln_h_g'], p['mha_ln_h_b'])
    e_ln = _ln_ref(e, p['mha_ln_e_g'], p['mha_ln_e_b'])
    QKV = h_ln @ p['lin_QKV_w'] + p['lin_QKV_b']
    E = e_ln @ p['lin_E_w'] + p['lin_E_b']
    G = e_ln @ p['lin_G_w'] + p['lin_G_b']
    QKVr = QKV.reshape(B, N, 3 * dot_dim, num_heads)
    Q, K, V = (QKVr[:, :, :dot_dim], QKVr[:, :, dot_dim:2 * dot_dim],
               QKVr[:, :, 2 * dot_dim:])
    A_hat = jnp.einsum('bldh,bmdh->blmh', Q, K)
    if scale_dot:
        A_hat = A_hat * dot_dim ** -0.5
    H_hat = jnp.clip(A_hat, clip_min, clip_max) + E
    gates = jax.nn.sigmoid(G)
    A_tild = jax.nn.softmax(H_hat, axis=2) * gates
    V_att = jnp.einsum('blmh,bmkh->blkh', A_tild, V).reshape(
        B, N, num_heads * dot_dim)
    hh = V_att @ p['lin_O_h_w'] + p['lin_O_h_b'] + h_r1
    h_r2 = hh
    hl = _ln_ref(hh, p['ffn_ln_h_g'], p['ffn_ln_h_b'])
    hh = (_elu_ref(hl @ p['lin_W_h_1_w'] + p['lin_W_h_1_b'])
          @ p['lin_W_h_2_w'] + p['lin_W_h_2_b'] + h_r2)
    ee = H_hat @ p['lin_O_e_w'] + p['lin_O_e_b'] + e_r1
    e_r2 = ee
    el = _ln_ref(ee, p['ffn_ln_e_g'], p['ffn_ln_e_b'])
    ee = (_elu_ref(el @ p['lin_W_e_1_w'] + p['lin_W_e_1_b'])
          @ p['lin_W_e_2_w'] + p['lin_W_e_2_b'] + e_r2)
    return hh, ee


# ---------------------------------------------------------------------------
# parameters
# ---------------------------------------------------------------------------

def init_params(key, node_width, edge_width, num_heads,
                node_ffn_multiplier=2.0, edge_ffn_multiplier=2.0):
    node_inner = int(round(node_width * node_ffn_multiplier))
    edge_inner = int(round(edge_width * edge_ffn_multiplier))

    def lin(k, fin, fout):
        kw, kb = jax.random.split(k)
        return (0.1 * jax.random.normal(kw, (fin, fout), jnp.float32),
                0.1 * jax.random.normal(kb, (fout,), jnp.float32))

    def ln(k, f):
        kg, kb = jax.random.split(k)
        return (1.0 + 0.1 * jax.random.normal(kg, (f,), jnp.float32),
                0.1 * jax.random.normal(kb, (f,), jnp.float32))

    ks = jax.random.split(key, 13)
    p = {}
    p['mha_ln_h_g'], p['mha_ln_h_b'] = ln(ks[0], node_width)
    p['mha_ln_e_g'], p['mha_ln_e_b'] = ln(ks[1], edge_width)
    p['lin_E_w'], p['lin_E_b'] = lin(ks[2], edge_width, num_heads)
    p['lin_QKV_w'], p['lin_QKV_b'] = lin(ks[3], node_width, node_width * 3)
    p['lin_G_w'], p['lin_G_b'] = lin(ks[4], edge_width, num_heads)
    p['lin_O_h_w'], p['lin_O_h_b'] = lin(ks[5], node_width, node_width)
    p['ffn_ln_h_g'], p['ffn_ln_h_b'] = ln(ks[6], node_width)
    p['lin_W_h_1_w'], p['lin_W_h_1_b'] = lin(ks[7], node_width, node_inner)
    p['lin_W_h_2_w'], p['lin_W_h_2_b'] = lin(ks[8], node_inner, node_width)
    p['lin_O_e_w'], p['lin_O_e_b'] = lin(ks[9], num_heads, edge_width)
    p['ffn_ln_e_g'], p['ffn_ln_e_b'] = ln(ks[10], edge_width)
    p['lin_W_e_1_w'], p['lin_W_e_1_b'] = lin(ks[11], edge_width, edge_inner)
    p['lin_W_e_2_w'], p['lin_W_e_2_b'] = lin(ks[12], edge_inner, edge_width)
    return p


# ---------------------------------------------------------------------------
# main
# ---------------------------------------------------------------------------

if __name__ == "__main__":
    B, N = 2, 8
    node_width, edge_width, num_heads = 32, 16, 4
    dot_dim = node_width // num_heads

    key = jax.random.PRNGKey(0)
    k_p, k_h, k_e = jax.random.split(key, 3)
    params = init_params(k_p, node_width, edge_width, num_heads)
    h = jax.random.normal(k_h, (B, N, node_width), jnp.float32)
    e = jax.random.normal(k_e, (B, N, N, edge_width), jnp.float32)

    fwd = jax.jit(functools.partial(egt_forward, num_heads=num_heads,
                                    dot_dim=dot_dim))
    h_out, e_out = fwd(h, e, params)
    jax.block_until_ready((h_out, e_out))

    assert h_out.shape == (B, N, node_width)
    assert e_out.shape == (B, N, N, edge_width)

    # numerical check against a pure-JAX reference of the torch forward
    # (bf16 MXU inputs in the attention matmuls -> slightly relaxed tolerance)
    with jax.default_matmul_precision("highest"):
        h_ref, e_ref = egt_forward_ref(h, e, params, num_heads=num_heads,
                                       dot_dim=dot_dim)
    assert jnp.allclose(h_out, h_ref, rtol=2e-2, atol=2e-2)
    assert jnp.allclose(e_out, e_ref, rtol=2e-2, atol=2e-2)

    print("KERNEL_OK")
</pallas_src>

<mosaic_0001>
module attributes {stable_mosaic.version = 11 : i64} {
  func.func @_ln_linear_kernel(%arg0: i32, %arg1: memref<16x32xf32, #tpu.memory_space<vmem>>, %arg2: memref<1x32xf32, #tpu.memory_space<vmem>>, %arg3: memref<1x32xf32, #tpu.memory_space<vmem>>, %arg4: memref<32x96xf32, #tpu.memory_space<vmem>>, %arg5: memref<1x96xf32, #tpu.memory_space<vmem>>, %arg6: memref<16x96xf32, #tpu.memory_space<vmem>>) attributes {dimension_semantics = [#tpu.dimension_semantics<parallel>], iteration_bounds = array<i64: 1>, scalar_prefetch = 0 : i64, scratch_operands = 0 : i64, tpu.core_type = #tpu.core_type<tc>, window_params = [{transform_indices = @transform_0, window_bounds = array<i64: 16, 32>}, {pipeline_mode = #tpu.pipeline_mode<synchronous>, transform_indices = @transform_1, window_bounds = array<i64: 1, 32>}, {pipeline_mode = #tpu.pipeline_mode<synchronous>, transform_indices = @transform_2, window_bounds = array<i64: 1, 32>}, {pipeline_mode = #tpu.pipeline_mode<synchronous>, transform_indices = @transform_3, window_bounds = array<i64: 32, 96>}, {pipeline_mode = #tpu.pipeline_mode<synchronous>, transform_indices = @transform_4, window_bounds = array<i64: 1, 96>}, {transform_indices = @transform_5, window_bounds = array<i64: 16, 96>}]} {
    %c0 = arith.constant 0 : index
    %c0_0 = arith.constant 0 : index
    %0 = vector.load %arg1[%c0, %c0_0] : memref<16x32xf32, #tpu.memory_space<vmem>>, vector<16x32xf32>
    %cst = arith.constant dense<0.000000e+00> : vector<16xf32>
    %1 = vector.multi_reduction <add>, %0, %cst [1] : vector<16x32xf32> to vector<16xf32>
    %2 = vector.shape_cast %1 : vector<16xf32> to vector<16x1xf32>
    %cst_1 = arith.constant 3.200000e+01 : f32
    %3 = vector.broadcast %cst_1 : f32 to vector<16x1xf32>
    %4 = arith.divf %2, %3 : vector<16x1xf32>
    %5 = vector.broadcast %4 : vector<16x1xf32> to vector<16x32xf32>
    %6 = arith.subf %0, %5 : vector<16x32xf32>
    %7 = arith.mulf %6, %6 : vector<16x32xf32>
    %cst_2 = arith.constant dense<0.000000e+00> : vector<16xf32>
    %8 = vector.multi_reduction <add>, %7, %cst_2 [1] : vector<16x32xf32> to vector<16xf32>
    %9 = vector.shape_cast %8 : vector<16xf32> to vector<16x1xf32>
    %cst_3 = arith.constant 3.200000e+01 : f32
    %10 = vector.broadcast %cst_3 : f32 to vector<16x1xf32>
    %11 = arith.divf %9, %10 : vector<16x1xf32>
    %cst_4 = arith.constant 9.99999974E-6 : f32
    %12 = vector.broadcast %cst_4 : f32 to vector<16x1xf32>
    %13 = arith.addf %11, %12 : vector<16x1xf32>
    %14 = math.rsqrt %13 : vector<16x1xf32>
    %15 = vector.broadcast %14 : vector<16x1xf32> to vector<16x32xf32>
    %16 = arith.mulf %6, %15 : vector<16x32xf32>
    %c0_5 = arith.constant 0 : index
    %c0_6 = arith.constant 0 : index
    %17 = vector.load %arg2[%c0_5, %c0_6] : memref<1x32xf32, #tpu.memory_space<vmem>>, vector<1x32xf32>
    %18 = vector.broadcast %17 : vector<1x32xf32> to vector<16x32xf32>
    %19 = arith.mulf %16, %18 : vector<16x32xf32>
    %c0_7 = arith.constant 0 : index
    %c0_8 = arith.constant 0 : index
    %20 = vector.load %arg3[%c0_7, %c0_8] : memref<1x32xf32, #tpu.memory_space<vmem>>, vector<1x32xf32>
    %21 = vector.broadcast %20 : vector<1x32xf32> to vector<16x32xf32>
    %22 = arith.addf %19, %21 : vector<16x32xf32>
    %c0_9 = arith.constant 0 : index
    %c0_10 = arith.constant 0 : index
    %23 = vector.load %arg4[%c0_9, %c0_10] : memref<32x96xf32, #tpu.memory_space<vmem>>, vector<32x96xf32>
    %cst_11 = arith.constant dense<0.000000e+00> : vector<16x96xf32>
    %24 = tpu.matmul %22, %23, %cst_11 {dimension_numbers = #tpu.dot_dimension_numbers<[1], [0], [0], [1], [0, 0, 1, 1], [], []>} : vector<16x32xf32>, vector<32x96xf32>, vector<16x96xf32> -> vector<16x96xf32>
    %c0_12 = arith.constant 0 : index
    %c0_13 = arith.constant 0 : index
    %25 = vector.load %arg5[%c0_12, %c0_13] : memref<1x96xf32, #tpu.memory_space<vmem>>, vector<1x96xf32>
    %26 = vector.broadcast %25 : vector<1x96xf32> to vector<16x96xf32>
    %27 = arith.addf %24, %26 : vector<16x96xf32>
    %c0_14 = arith.constant 0 : index
    %c0_15 = arith.constant 0 : index
    %28 = vector.load %arg6[%c0_14, %c0_15] : memref<16x96xf32, #tpu.memory_space<vmem>>, vector<16x96xf32>
    tpu.vector_store %arg6[%c0_14, %c0_15], %27 {strides = array<i32>} : memref<16x96xf32, #tpu.memory_space<vmem>>, vector<16x96xf32>,
    return
  }
  func.func @transform_0(%arg0: i32) -> (i32, i32) {
    %c0_i32 = arith.constant 0 : i32
    %c0_i32_0 = arith.constant 0 : i32
    return %arg0, %c0_i32 : i32, i32
  }
  func.func @transform_1(%arg0: i32) -> (i32, i32) {
    %c0_i32 = arith.constant 0 : i32
    %c0_i32_0 = arith.constant 0 : i32
    %c0_i32_1 = arith.constant 0 : i32
    return %c0_i32, %c0_i32_0 : i32, i32
  }
  func.func @transform_2(%arg0: i32) -> (i32, i32) {
    %c0_i32 = arith.constant 0 : i32
    %c0_i32_0 = arith.constant 0 : i32
    %c0_i32_1 = arith.constant 0 : i32
    return %c0_i32, %c0_i32_0 : i32, i32
  }
  func.func @transform_3(%arg0: i32) -> (i32, i32) {
    %c0_i32 = arith.constant 0 : i32
    %c0_i32_0 = arith.constant 0 : i32
    %c0_i32_1 = arith.constant 0 : i32
    return %c0_i32, %c0_i32_0 : i32, i32
  }
  func.func @transform_4(%arg0: i32) -> (i32, i32) {
    %c0_i32 = arith.constant 0 : i32
    %c0_i32_0 = arith.constant 0 : i32
    %c0_i32_1 = arith.constant 0 : i32
    return %c0_i32, %c0_i32_0 : i32, i32
  }
  func.func @transform_5(%arg0: i32) -> (i32, i32) {
    %c0_i32 = arith.constant 0 : i32
    %c0_i32_0 = arith.constant 0 : i32
    return %arg0, %c0_i32 : i32, i32
  }
}

module attributes {stable_mosaic.version = 11 : i64} {
  func.func @_ffn_kernel(%arg0: i32, %arg1: memref<16x32xf32, #tpu.memory_space<vmem>>, %arg2: memref<1x32xf32, #tpu.memory_space<vmem>>, %arg3: memref<1x32xf32, #tpu.memory_space<vmem>>, %arg4: memref<32x64xf32, #tpu.memory_space<vmem>>, %arg5: memref<1x64xf32, #tpu.memory_space<vmem>>, %arg6: memref<64x32xf32, #tpu.memory_space<vmem>>, %arg7: memref<1x32xf32, #tpu.memory_space<vmem>>, %arg8: memref<16x32xf32, #tpu.memory_space<vmem>>) attributes {dimension_semantics = [#tpu.dimension_semantics<parallel>], iteration_bounds = array<i64: 1>, scalar_prefetch = 0 : i64, scratch_operands = 0 : i64, tpu.core_type = #tpu.core_type<tc>, window_params = [{transform_indices = @transform_0, window_bounds = array<i64: 16, 32>}, {pipeline_mode = #tpu.pipeline_mode<synchronous>, transform_indices = @transform_1, window_bounds = array<i64: 1, 32>}, {pipeline_mode = #tpu.pipeline_mode<synchronous>, transform_indices = @transform_2, window_bounds = array<i64: 1, 32>}, {pipeline_mode = #tpu.pipeline_mode<synchronous>, transform_indices = @transform_3, window_bounds = array<i64: 32, 64>}, {pipeline_mode = #tpu.pipeline_mode<synchronous>, transform_indices = @transform_4, window_bounds = array<i64: 1, 64>}, {pipeline_mode = #tpu.pipeline_mode<synchronous>, transform_indices = @transform_5, window_bounds = array<i64: 64, 32>}, {pipeline_mode = #tpu.pipeline_mode<synchronous>, transform_indices = @transform_6, window_bounds = array<i64: 1, 32>}, {transform_indices = @transform_7, window_bounds = array<i64: 16, 32>}]} {
    %c0 = arith.constant 0 : index
    %c0_0 = arith.constant 0 : index
    %0 = vector.load %arg1[%c0, %c0_0] : memref<16x32xf32, #tpu.memory_space<vmem>>, vector<16x32xf32>
    %cst = arith.constant dense<0.000000e+00> : vector<16xf32>
    %1 = vector.multi_reduction <add>, %0, %cst [1] : vector<16x32xf32> to vector<16xf32>
    %2 = vector.shape_cast %1 : vector<16xf32> to vector<16x1xf32>
    %cst_1 = arith.constant 3.200000e+01 : f32
    %3 = vector.broadcast %cst_1 : f32 to vector<16x1xf32>
    %4 = arith.divf %2, %3 : vector<16x1xf32>
    %5 = vector.broadcast %4 : vector<16x1xf32> to vector<16x32xf32>
    %6 = arith.subf %0, %5 : vector<16x32xf32>
    %7 = arith.mulf %6, %6 : vector<16x32xf32>
    %cst_2 = arith.constant dense<0.000000e+00> : vector<16xf32>
    %8 = vector.multi_reduction <add>, %7, %cst_2 [1] : vector<16x32xf32> to vector<16xf32>
    %9 = vector.shape_cast %8 : vector<16xf32> to vector<16x1xf32>
    %cst_3 = arith.constant 3.200000e+01 : f32
    %10 = vector.broadcast %cst_3 : f32 to vector<16x1xf32>
    %11 = arith.divf %9, %10 : vector<16x1xf32>
    %cst_4 = arith.constant 9.99999974E-6 : f32
    %12 = vector.broadcast %cst_4 : f32 to vector<16x1xf32>
    %13 = arith.addf %11, %12 : vector<16x1xf32>
    %14 = math.rsqrt %13 : vector<16x1xf32>
    %15 = vector.broadcast %14 : vector<16x1xf32> to vector<16x32xf32>
    %16 = arith.mulf %6, %15 : vector<16x32xf32>
    %c0_5 = arith.constant 0 : index
    %c0_6 = arith.constant 0 : index
    %17 = vector.load %arg2[%c0_5, %c0_6] : memref<1x32xf32, #tpu.memory_space<vmem>>, vector<1x32xf32>
    %18 = vector.broadcast %17 : vector<1x32xf32> to vector<16x32xf32>
    %19 = arith.mulf %16, %18 : vector<16x32xf32>
    %c0_7 = arith.constant 0 : index
    %c0_8 = arith.constant 0 : index
    %20 = vector.load %arg3[%c0_7, %c0_8] : memref<1x32xf32, #tpu.memory_space<vmem>>, vector<1x32xf32>
    %21 = vector.broadcast %20 : vector<1x32xf32> to vector<16x32xf32>
    %22 = arith.addf %19, %21 : vector<16x32xf32>
    %c0_9 = arith.constant 0 : index
    %c0_10 = arith.constant 0 : index
    %23 = vector.load %arg4[%c0_9, %c0_10] : memref<32x64xf32, #tpu.memory_space<vmem>>, vector<32x64xf32>
    %cst_11 = arith.constant dense<0.000000e+00> : vector<16x64xf32>
    %24 = tpu.matmul %22, %23, %cst_11 {dimension_numbers = #tpu.dot_dimension_numbers<[1], [0], [0], [1], [0, 0, 1, 1], [], []>} : vector<16x32xf32>, vector<32x64xf32>, vector<16x64xf32> -> vector<16x64xf32>
    %c0_12 = arith.constant 0 : index
    %c0_13 = arith.constant 0 : index
    %25 = vector.load %arg5[%c0_12, %c0_13] : memref<1x64xf32, #tpu.memory_space<vmem>>, vector<1x64xf32>
    %26 = vector.broadcast %25 : vector<1x64xf32> to vector<16x64xf32>
    %27 = arith.addf %24, %26 : vector<16x64xf32>
    %cst_14 = arith.constant 0.000000e+00 : f32
    %28 = vector.broadcast %cst_14 : f32 to vector<16x64xf32>
    %29 = arith.cmpf ogt, %27, %28 : vector<16x64xf32>
    %cst_15 = arith.constant 0.000000e+00 : f32
    %30 = vector.broadcast %cst_15 : f32 to vector<16x64xf32>
    %31 = arith.minimumf %27, %30 : vector<16x64xf32>
    %32 = math.exp %31 : vector<16x64xf32>
    %cst_16 = arith.constant 1.000000e+00 : f32
    %33 = vector.broadcast %cst_16 : f32 to vector<16x64xf32>
    %34 = arith.subf %32, %33 : vector<16x64xf32>
    %35 = arith.select %29, %27, %34 : vector<16x64xi1>, vector<16x64xf32>
    %c0_17 = arith.constant 0 : index
    %c0_18 = arith.constant 0 : index
    %36 = vector.load %arg6[%c0_17, %c0_18] : memref<64x32xf32, #tpu.memory_space<vmem>>, vector<64x32xf32>
    %cst_19 = arith.constant dense<0.000000e+00> : vector<16x32xf32>
    %37 = tpu.matmul %35, %36, %cst_19 {dimension_numbers = #tpu.dot_dimension_numbers<[1], [0], [0], [1], [0, 0, 1, 1], [], []>} : vector<16x64xf32>, vector<64x32xf32>, vector<16x32xf32> -> vector<16x32xf32>
    %c0_20 = arith.constant 0 : index
    %c0_21 = arith.constant 0 : index
    %38 = vector.load %arg7[%c0_20, %c0_21] : memref<1x32xf32, #tpu.memory_space<vmem>>, vector<1x32xf32>
    %39 = vector.broadcast %38 : vector<1x32xf32> to vector<16x32xf32>
    %40 = arith.addf %37, %39 : vector<16x32xf32>
    %41 = arith.addf %40, %0 : vector<16x32xf32>
    %c0_22 = arith.constant 0 : index
    %c0_23 = arith.constant 0 : index
    %42 = vector.load %arg8[%c0_22, %c0_23] : memref<16x32xf32, #tpu.memory_space<vmem>>, vector<16x32xf32>
    tpu.vector_store %arg8[%c0_22, %c0_23], %41 {strides = array<i32>} : memref<16x32xf32, #tpu.memory_space<vmem>>, vector<16x32xf32>,
    return
  }
  func.func @transform_0(%arg0: i32) -> (i32, i32) {
    %c0_i32 = arith.constant 0 : i32
    %c0_i32_0 = arith.constant 0 : i32
    return %arg0, %c0_i32 : i32, i32
  }
  func.func @transform_1(%arg0: i32) -> (i32, i32) {
    %c0_i32 = arith.constant 0 : i32
    %c0_i32_0 = arith.constant 0 : i32
    %c0_i32_1 = arith.constant 0 : i32
    return %c0_i32, %c0_i32_0 : i32, i32
  }
  func.func @transform_2(%arg0: i32) -> (i32, i32) {
    %c0_i32 = arith.constant 0 : i32
    %c0_i32_0 = arith.constant 0 : i32
    %c0_i32_1 = arith.constant 0 : i32
    return %c0_i32, %c0_i32_0 : i32, i32
  }
  func.func @transform_3(%arg0: i32) -> (i32, i32) {
    %c0_i32 = arith.constant 0 : i32
    %c0_i32_0 = arith.constant 0 : i32
    %c0_i32_1 = arith.constant 0 : i32
    return %c0_i32, %c0_i32_0 : i32, i32
  }
  func.func @transform_4(%arg0: i32) -> (i32, i32) {
    %c0_i32 = arith.constant 0 : i32
    %c0_i32_0 = arith.constant 0 : i32
    %c0_i32_1 = arith.constant 0 : i32
    return %c0_i32, %c0_i32_0 : i32, i32
  }
  func.func @transform_5(%arg0: i32) -> (i32, i32) {
    %c0_i32 = arith.constant 0 : i32
    %c0_i32_0 = arith.constant 0 : i32
    %c0_i32_1 = arith.constant 0 : i32
    return %c0_i32, %c0_i32_0 : i32, i32
  }
  func.func @transform_6(%arg0: i32) -> (i32, i32) {
    %c0_i32 = arith.constant 0 : i32
    %c0_i32_0 = arith.constant 0 : i32
    %c0_i32_1 = arith.constant 0 : i32
    return %c0_i32, %c0_i32_0 : i32, i32
  }
  func.func @transform_7(%arg0: i32) -> (i32, i32) {
    %c0_i32 = arith.constant 0 : i32
    %c0_i32_0 = arith.constant 0 : i32
    return %arg0, %c0_i32 : i32, i32
  }
}

module attributes {stable_mosaic.version = 11 : i64} {
  func.func @_egt_mha_kernel(%arg0: i32, %arg1: i32, %arg2: memref<1x8x32xf32, #tpu.memory_space<vmem>>, %arg3: memref<1x8x32xf32, #tpu.memory_space<vmem>>, %arg4: memref<1x8x32xf32, #tpu.memory_space<vmem>>, %arg5: memref<1x8x32xf32, #tpu.memory_space<vmem>>, %arg6: memref<1x8x8x16xf32, #tpu.memory_space<vmem>>, %arg7: memref<1x16xf32, #tpu.memory_space<vmem>>, %arg8: memref<1x16xf32, #tpu.memory_space<vmem>>, %arg9: memref<16x8xf32, #tpu.memory_space<vmem>>, %arg10: memref<1x8xf32, #tpu.memory_space<vmem>>, %arg11: memref<32x32xf32, #tpu.memory_space<vmem>>, %arg12: memref<1x32xf32, #tpu.memory_space<vmem>>, %arg13: memref<4x16xf32, #tpu.memory_space<vmem>>, %arg14: memref<1x16xf32, #tpu.memory_space<vmem>>, %arg15: memref<1x8x32xf32, #tpu.memory_space<vmem>>, %arg16: memref<1x8x8x16xf32, #tpu.memory_space<vmem>>) attributes {dimension_semantics = [#tpu.dimension_semantics<parallel>, #tpu.dimension_semantics<parallel>], iteration_bounds = array<i64: 2, 1>, scalar_prefetch = 0 : i64, scratch_operands = 0 : i64, tpu.core_type = #tpu.core_type<tc>, window_params = [{transform_indices = @transform_0, window_bounds = array<i64: 1, 8, 32>}, {transform_indices = @transform_1, window_bounds = array<i64: 1, 8, 32>}, {transform_indices = @transform_2, window_bounds = array<i64: 1, 8, 32>}, {transform_indices = @transform_3, window_bounds = array<i64: 1, 8, 32>}, {transform_indices = @transform_4, window_bounds = array<i64: 1, 8, 8, 16>}, {pipeline_mode = #tpu.pipeline_mode<synchronous>, transform_indices = @transform_5, window_bounds = array<i64: 1, 16>}, {pipeline_mode = #tpu.pipeline_mode<synchronous>, transform_indices = @transform_6, window_bounds = array<i64: 1, 16>}, {pipeline_mode = #tpu.pipeline_mode<synchronous>, transform_indices = @transform_7, window_bounds = array<i64: 16, 8>}, {pipeline_mode = #tpu.pipeline_mode<synchronous>, transform_indices = @transform_8, window_bounds = array<i64: 1, 8>}, {pipeline_mode = #tpu.pipeline_mode<synchronous>, transform_indices = @transform_9, window_bounds = array<i64: 32, 32>}, {pipeline_mode = #tpu.pipeline_mode<synchronous>, transform_indices = @transform_10, window_bounds = array<i64: 1, 32>}, {pipeline_mode = #tpu.pipeline_mode<synchronous>, transform_indices = @transform_11, window_bounds = array<i64: 4, 16>}, {pipeline_mode = #tpu.pipeline_mode<synchronous>, transform_indices = @transform_12, window_bounds = array<i64: 1, 16>}, {transform_indices = @transform_13, window_bounds = array<i64: 1, 8, 32>}, {transform_indices = @transform_14, window_bounds = array<i64: 1, 8, 8, 16>}]} {
    %c0 = arith.constant 0 : index
    %c0_0 = arith.constant 0 : index
    %c0_1 = arith.constant 0 : index
    %c0_2 = arith.constant 0 : index
    %0 = vector.load %arg6[%c0, %c0_0, %c0_1, %c0_2] : memref<1x8x8x16xf32, #tpu.memory_space<vmem>>, vector<1x8x8x16xf32>
    %1 = vector.shape_cast %0 : vector<1x8x8x16xf32> to vector<8x8x16xf32>
    %2 = vector.shape_cast %1 : vector<8x8x16xf32> to vector<64x16xf32>
    %cst = arith.constant dense<0.000000e+00> : vector<64xf32>
    %3 = vector.multi_reduction <add>, %2, %cst [1] : vector<64x16xf32> to vector<64xf32>
    %4 = vector.shape_cast %3 : vector<64xf32> to vector<64x1xf32>
    %cst_3 = arith.constant 1.600000e+01 : f32
    %5 = vector.broadcast %cst_3 : f32 to vector<64x1xf32>
    %6 = arith.divf %4, %5 : vector<64x1xf32>
    %7 = vector.broadcast %6 : vector<64x1xf32> to vector<64x16xf32>
    %8 = arith.subf %2, %7 : vector<64x16xf32>
    %9 = arith.mulf %8, %8 : vector<64x16xf32>
    %cst_4 = arith.constant dense<0.000000e+00> : vector<64xf32>
    %10 = vector.multi_reduction <add>, %9, %cst_4 [1] : vector<64x16xf32> to vector<64xf32>
    %11 = vector.shape_cast %10 : vector<64xf32> to vector<64x1xf32>
    %cst_5 = arith.constant 1.600000e+01 : f32
    %12 = vector.broadcast %cst_5 : f32 to vector<64x1xf32>
    %13 = arith.divf %11, %12 : vector<64x1xf32>
    %cst_6 = arith.constant 9.99999974E-6 : f32
    %14 = vector.broadcast %cst_6 : f32 to vector<64x1xf32>
    %15 = arith.addf %13, %14 : vector<64x1xf32>
    %16 = math.rsqrt %15 : vector<64x1xf32>
    %17 = vector.broadcast %16 : vector<64x1xf32> to vector<64x16xf32>
    %18 = arith.mulf %8, %17 : vector<64x16xf32>
    %c0_7 = arith.constant 0 : index
    %c0_8 = arith.constant 0 : index
    %19 = vector.load %arg7[%c0_7, %c0_8] : memref<1x16xf32, #tpu.memory_space<vmem>>, vector<1x16xf32>
    %20 = vector.broadcast %19 : vector<1x16xf32> to vector<64x16xf32>
    %21 = arith.mulf %18, %20 : vector<64x16xf32>
    %c0_9 = arith.constant 0 : index
    %c0_10 = arith.constant 0 : index
    %22 = vector.load %arg8[%c0_9, %c0_10] : memref<1x16xf32, #tpu.memory_space<vmem>>, vector<1x16xf32>
    %23 = vector.broadcast %22 : vector<1x16xf32> to vector<64x16xf32>
    %24 = arith.addf %21, %23 : vector<64x16xf32>
    %c0_11 = arith.constant 0 : index
    %c0_12 = arith.constant 0 : index
    %25 = vector.load %arg9[%c0_11, %c0_12] : memref<16x8xf32, #tpu.memory_space<vmem>>, vector<16x8xf32>
    %cst_13 = arith.constant dense<0.000000e+00> : vector<64x8xf32>
    %26 = tpu.matmul %24, %25, %cst_13 {dimension_numbers = #tpu.dot_dimension_numbers<[1], [0], [0], [1], [0, 0, 1, 1], [], []>} : vector<64x16xf32>, vector<16x8xf32>, vector<64x8xf32> -> vector<64x8xf32>
    %c0_14 = arith.constant 0 : index
    %c0_15 = arith.constant 0 : index
    %27 = vector.load %arg10[%c0_14, %c0_15] : memref<1x8xf32, #tpu.memory_space<vmem>>, vector<1x8xf32>
    %28 = vector.broadcast %27 : vector<1x8xf32> to vector<64x8xf32>
    %29 = arith.addf %26, %28 : vector<64x8xf32>
    %30 = vector.shape_cast %29 : vector<64x8xf32> to vector<8x8x8xf32>
    %c0_16 = arith.constant 0 : index
    %c0_17 = arith.constant 0 : index
    %c0_18 = arith.constant 0 : index
    %31 = vector.load %arg2[%c0_16, %c0_17, %c0_18] : memref<1x8x32xf32, #tpu.memory_space<vmem>>, vector<1x8x32xf32>
    %32 = vector.shape_cast %31 : vector<1x8x32xf32> to vector<8x32xf32>
    %33 = arith.truncf %32 : vector<8x32xf32> to vector<8x32xbf16>
    %c0_19 = arith.constant 0 : index
    %c0_20 = arith.constant 0 : index
    %c0_21 = arith.constant 0 : index
    %34 = vector.load %arg3[%c0_19, %c0_20, %c0_21] : memref<1x8x32xf32, #tpu.memory_space<vmem>>, vector<1x8x32xf32>
    %35 = vector.shape_cast %34 : vector<1x8x32xf32> to vector<8x32xf32>
    %36 = arith.truncf %35 : vector<8x32xf32> to vector<8x32xbf16>
    %c0_22 = arith.constant 0 : index
    %c0_23 = arith.constant 0 : index
    %c0_24 = arith.constant 0 : index
    %37 = vector.load %arg4[%c0_22, %c0_23, %c0_24] : memref<1x8x32xf32, #tpu.memory_space<vmem>>, vector<1x8x32xf32>
    %38 = vector.shape_cast %37 : vector<1x8x32xf32> to vector<8x32xf32>
    %39 = arith.truncf %38 : vector<8x32xf32> to vector<8x32xbf16>
    %40 = vector.extract_strided_slice %33 {offsets = [0, 0], sizes = [8, 8], strides = [1, 1]} : vector<8x32xbf16> to vector<8x8xbf16>
    %41 = vector.extract_strided_slice %36 {offsets = [0, 0], sizes = [8, 8], strides = [1, 1]} : vector<8x32xbf16> to vector<8x8xbf16>
    %42 = vector.extract_strided_slice %39 {offsets = [0, 0], sizes = [8, 8], strides = [1, 1]} : vector<8x32xbf16> to vector<8x8xbf16>
    %cst_25 = arith.constant dense<0.000000e+00> : vector<8x8xf32>
    %43 = tpu.matmul %40, %41, %cst_25 {dimension_numbers = #tpu.dot_dimension_numbers<[1], [1], [0], [0], [0, 0, 1, 0], [], []>} : vector<8x8xbf16>, vector<8x8xbf16>, vector<8x8xf32> -> vector<8x8xf32>
    %cst_26 = arith.constant -5.000000e+00 : f32
    %cst_27 = arith.constant 5.000000e+00 : f32
    %44 = vector.broadcast %cst_26 : f32 to vector<8x8xf32>
    %45 = arith.maximumf %44, %43 : vector<8x8xf32>
    %46 = vector.broadcast %cst_27 : f32 to vector<8x8xf32>
    %47 = arith.minimumf %46, %45 : vector<8x8xf32>
    %48 = vector.extract_strided_slice %30 {offsets = [0, 0, 0], sizes = [8, 8, 1], strides = [1, 1, 1]} : vector<8x8x8xf32> to vector<8x8x1xf32>
    %49 = vector.shape_cast %48 : vector<8x8x1xf32> to vector<8x8xf32>
    %50 = arith.addf %47, %49 : vector<8x8xf32>
    %51 = vector.extract_strided_slice %30 {offsets = [0, 0, 4], sizes = [8, 8, 1], strides = [1, 1, 1]} : vector<8x8x8xf32> to vector<8x8x1xf32>
    %52 = vector.shape_cast %51 : vector<8x8x1xf32> to vector<8x8xf32>
    %cst_28 = arith.constant 0.000000e+00 : f32
    %53 = vector.broadcast %cst_28 : f32 to vector<8x8xf32>
    %54 = arith.subf %53, %52 : vector<8x8xf32>
    %55 = math.exp %54 : vector<8x8xf32>
    %cst_29 = arith.constant 1.000000e+00 : f32
    %56 = vector.broadcast %cst_29 : f32 to vector<8x8xf32>
    %57 = arith.addf %56, %55 : vector<8x8xf32>
    %58 = tpu.reciprocal %57 {approx = true} : vector<8x8xf32> -> vector<8x8xf32>
    %cst_30 = arith.constant dense<0xFF800000> : vector<8xf32>
    %59 = vector.multi_reduction <maximumf>, %50, %cst_30 [1] : vector<8x8xf32> to vector<8xf32>
    %60 = vector.shape_cast %59 : vector<8xf32> to vector<8x1xf32>
    %61 = vector.broadcast %60 : vector<8x1xf32> to vector<8x8xf32>
    %62 = arith.subf %50, %61 : vector<8x8xf32>
    %63 = math.exp %62 : vector<8x8xf32>
    %cst_31 = arith.constant dense<0.000000e+00> : vector<8xf32>
    %64 = vector.multi_reduction <add>, %63, %cst_31 [1] : vector<8x8xf32> to vector<8xf32>
    %65 = vector.shape_cast %64 : vector<8xf32> to vector<8x1xf32>
    %66 = tpu.reciprocal %65 {approx = true} : vector<8x1xf32> -> vector<8x1xf32>
    %67 = vector.broadcast %66 : vector<8x1xf32> to vector<8x8xf32>
    %68 = arith.mulf %63, %67 : vector<8x8xf32>
    %69 = arith.mulf %68, %58 : vector<8x8xf32>
    %70 = arith.truncf %69 : vector<8x8xf32> to vector<8x8xbf16>
    %cst_32 = arith.constant dense<0.000000e+00> : vector<8x8xf32>
    %71 = tpu.matmul %70, %42, %cst_32 {dimension_numbers = #tpu.dot_dimension_numbers<[1], [0], [0], [1], [0, 0, 1, 1], [], []>} : vector<8x8xbf16>, vector<8x8xbf16>, vector<8x8xf32> -> vector<8x8xf32>
    %72 = vector.extract_strided_slice %33 {offsets = [0, 8], sizes = [8, 8], strides = [1, 1]} : vector<8x32xbf16> to vector<8x8xbf16>
    %73 = vector.extract_strided_slice %36 {offsets = [0, 8], sizes = [8, 8], strides = [1, 1]} : vector<8x32xbf16> to vector<8x8xbf16>
    %74 = vector.extract_strided_slice %39 {offsets = [0, 8], sizes = [8, 8], strides = [1, 1]} : vector<8x32xbf16> to vector<8x8xbf16>
    %cst_33 = arith.constant dense<0.000000e+00> : vector<8x8xf32>
    %75 = tpu.matmul %72, %73, %cst_33 {dimension_numbers = #tpu.dot_dimension_numbers<[1], [1], [0], [0], [0, 0, 1, 0], [], []>} : vector<8x8xbf16>, vector<8x8xbf16>, vector<8x8xf32> -> vector<8x8xf32>
    %cst_34 = arith.constant -5.000000e+00 : f32
    %cst_35 = arith.constant 5.000000e+00 : f32
    %76 = vector.broadcast %cst_34 : f32 to vector<8x8xf32>
    %77 = arith.maximumf %76, %75 : vector<8x8xf32>
    %78 = vector.broadcast %cst_35 : f32 to vector<8x8xf32>
    %79 = arith.minimumf %78, %77 : vector<8x8xf32>
    %80 = vector.extract_strided_slice %30 {offsets = [0, 0, 1], sizes = [8, 8, 1], strides = [1, 1, 1]} : vector<8x8x8xf32> to vector<8x8x1xf32>
    %81 = vector.shape_cast %80 : vector<8x8x1xf32> to vector<8x8xf32>
    %82 = arith.addf %79, %81 : vector<8x8xf32>
    %83 = vector.extract_strided_slice %30 {offsets = [0, 0, 5], sizes = [8, 8, 1], strides = [1, 1, 1]} : vector<8x8x8xf32> to vector<8x8x1xf32>
    %84 = vector.shape_cast %83 : vector<8x8x1xf32> to vector<8x8xf32>
    %cst_36 = arith.constant 0.000000e+00 : f32
    %85 = vector.broadcast %cst_36 : f32 to vector<8x8xf32>
    %86 = arith.subf %85, %84 : vector<8x8xf32>
    %87 = math.exp %86 : vector<8x8xf32>
    %cst_37 = arith.constant 1.000000e+00 : f32
    %88 = vector.broadcast %cst_37 : f32 to vector<8x8xf32>
    %89 = arith.addf %88, %87 : vector<8x8xf32>
    %90 = tpu.reciprocal %89 {approx = true} : vector<8x8xf32> -> vector<8x8xf32>
    %cst_38 = arith.constant dense<0xFF800000> : vector<8xf32>
    %91 = vector.multi_reduction <maximumf>, %82, %cst_38 [1] : vector<8x8xf32> to vector<8xf32>
    %92 = vector.shape_cast %91 : vector<8xf32> to vector<8x1xf32>
    %93 = vector.broadcast %92 : vector<8x1xf32> to vector<8x8xf32>
    %94 = arith.subf %82, %93 : vector<8x8xf32>
    %95 = math.exp %94 : vector<8x8xf32>
    %cst_39 = arith.constant dense<0.000000e+00> : vector<8xf32>
    %96 = vector.multi_reduction <add>, %95, %cst_39 [1] : vector<8x8xf32> to vector<8xf32>
    %97 = vector.shape_cast %96 : vector<8xf32> to vector<8x1xf32>
    %98 = tpu.reciprocal %97 {approx = true} : vector<8x1xf32> -> vector<8x1xf32>
    %99 = vector.broadcast %98 : vector<8x1xf32> to vector<8x8xf32>
    %100 = arith.mulf %95, %99 : vector<8x8xf32>
    %101 = arith.mulf %100, %90 : vector<8x8xf32>
    %102 = arith.truncf %101 : vector<8x8xf32> to vector<8x8xbf16>
    %cst_40 = arith.constant dense<0.000000e+00> : vector<8x8xf32>
    %103 = tpu.matmul %102, %74, %cst_40 {dimension_numbers = #tpu.dot_dimension_numbers<[1], [0], [0], [1], [0, 0, 1, 1], [], []>} : vector<8x8xbf16>, vector<8x8xbf16>, vector<8x8xf32> -> vector<8x8xf32>
    %104 = vector.extract_strided_slice %33 {offsets = [0, 16], sizes = [8, 8], strides = [1, 1]} : vector<8x32xbf16> to vector<8x8xbf16>
    %105 = vector.extract_strided_slice %36 {offsets = [0, 16], sizes = [8, 8], strides = [1, 1]} : vector<8x32xbf16> to vector<8x8xbf16>
    %106 = vector.extract_strided_slice %39 {offsets = [0, 16], sizes = [8, 8], strides = [1, 1]} : vector<8x32xbf16> to vector<8x8xbf16>
    %cst_41 = arith.constant dense<0.000000e+00> : vector<8x8xf32>
    %107 = tpu.matmul %104, %105, %cst_41 {dimension_numbers = #tpu.dot_dimension_numbers<[1], [1], [0], [0], [0, 0, 1, 0], [], []>} : vector<8x8xbf16>, vector<8x8xbf16>, vector<8x8xf32> -> vector<8x8xf32>
    %cst_42 = arith.constant -5.000000e+00 : f32
    %cst_43 = arith.constant 5.000000e+00 : f32
    %108 = vector.broadcast %cst_42 : f32 to vector<8x8xf32>
    %109 = arith.maximumf %108, %107 : vector<8x8xf32>
    %110 = vector.broadcast %cst_43 : f32 to vector<8x8xf32>
    %111 = arith.minimumf %110, %109 : vector<8x8xf32>
    %112 = vector.extract_strided_slice %30 {offsets = [0, 0, 2], sizes = [8, 8, 1], strides = [1, 1, 1]} : vector<8x8x8xf32> to vector<8x8x1xf32>
    %113 = vector.shape_cast %112 : vector<8x8x1xf32> to vector<8x8xf32>
    %114 = arith.addf %111, %113 : vector<8x8xf32>
    %115 = vector.extract_strided_slice %30 {offsets = [0, 0, 6], sizes = [8, 8, 1], strides = [1, 1, 1]} : vector<8x8x8xf32> to vector<8x8x1xf32>
    %116 = vector.shape_cast %115 : vector<8x8x1xf32> to vector<8x8xf32>
    %cst_44 = arith.constant 0.000000e+00 : f32
    %117 = vector.broadcast %cst_44 : f32 to vector<8x8xf32>
    %118 = arith.subf %117, %116 : vector<8x8xf32>
    %119 = math.exp %118 : vector<8x8xf32>
    %cst_45 = arith.constant 1.000000e+00 : f32
    %120 = vector.broadcast %cst_45 : f32 to vector<8x8xf32>
    %121 = arith.addf %120, %119 : vector<8x8xf32>
    %122 = tpu.reciprocal %121 {approx = true} : vector<8x8xf32> -> vector<8x8xf32>
    %cst_46 = arith.constant dense<0xFF800000> : vector<8xf32>
    %123 = vector.multi_reduction <maximumf>, %114, %cst_46 [1] : vector<8x8xf32> to vector<8xf32>
    %124 = vector.shape_cast %123 : vector<8xf32> to vector<8x1xf32>
    %125 = vector.broadcast %124 : vector<8x1xf32> to vector<8x8xf32>
    %126 = arith.subf %114, %125 : vector<8x8xf32>
    %127 = math.exp %126 : vector<8x8xf32>
    %cst_47 = arith.constant dense<0.000000e+00> : vector<8xf32>
    %128 = vector.multi_reduction <add>, %127, %cst_47 [1] : vector<8x8xf32> to vector<8xf32>
    %129 = vector.shape_cast %128 : vector<8xf32> to vector<8x1xf32>
    %130 = tpu.reciprocal %129 {approx = true} : vector<8x1xf32> -> vector<8x1xf32>
    %131 = vector.broadcast %130 : vector<8x1xf32> to vector<8x8xf32>
    %132 = arith.mulf %127, %131 : vector<8x8xf32>
    %133 = arith.mulf %132, %122 : vector<8x8xf32>
    %134 = arith.truncf %133 : vector<8x8xf32> to vector<8x8xbf16>
    %cst_48 = arith.constant dense<0.000000e+00> : vector<8x8xf32>
    %135 = tpu.matmul %134, %106, %cst_48 {dimension_numbers = #tpu.dot_dimension_numbers<[1], [0], [0], [1], [0, 0, 1, 1], [], []>} : vector<8x8xbf16>, vector<8x8xbf16>, vector<8x8xf32> -> vector<8x8xf32>
    %136 = vector.extract_strided_slice %33 {offsets = [0, 24], sizes = [8, 8], strides = [1, 1]} : vector<8x32xbf16> to vector<8x8xbf16>
    %137 = vector.extract_strided_slice %36 {offsets = [0, 24], sizes = [8, 8], strides = [1, 1]} : vector<8x32xbf16> to vector<8x8xbf16>
    %138 = vector.extract_strided_slice %39 {offsets = [0, 24], sizes = [8, 8], strides = [1, 1]} : vector<8x32xbf16> to vector<8x8xbf16>
    %cst_49 = arith.constant dense<0.000000e+00> : vector<8x8xf32>
    %139 = tpu.matmul %136, %137, %cst_49 {dimension_numbers = #tpu.dot_dimension_numbers<[1], [1], [0], [0], [0, 0, 1, 0], [], []>} : vector<8x8xbf16>, vector<8x8xbf16>, vector<8x8xf32> -> vector<8x8xf32>
    %cst_50 = arith.constant -5.000000e+00 : f32
    %cst_51 = arith.constant 5.000000e+00 : f32
    %140 = vector.broadcast %cst_50 : f32 to vector<8x8xf32>
    %141 = arith.maximumf %140, %139 : vector<8x8xf32>
    %142 = vector.broadcast %cst_51 : f32 to vector<8x8xf32>
    %143 = arith.minimumf %142, %141 : vector<8x8xf32>
    %144 = vector.extract_strided_slice %30 {offsets = [0, 0, 3], sizes = [8, 8, 1], strides = [1, 1, 1]} : vector<8x8x8xf32> to vector<8x8x1xf32>
    %145 = vector.shape_cast %144 : vector<8x8x1xf32> to vector<8x8xf32>
    %146 = arith.addf %143, %145 : vector<8x8xf32>
    %147 = vector.extract_strided_slice %30 {offsets = [0, 0, 7], sizes = [8, 8, 1], strides = [1, 1, 1]} : vector<8x8x8xf32> to vector<8x8x1xf32>
    %148 = vector.shape_cast %147 : vector<8x8x1xf32> to vector<8x8xf32>
    %cst_52 = arith.constant 0.000000e+00 : f32
    %149 = vector.broadcast %cst_52 : f32 to vector<8x8xf32>
    %150 = arith.subf %149, %148 : vector<8x8xf32>
    %151 = math.exp %150 : vector<8x8xf32>
    %cst_53 = arith.constant 1.000000e+00 : f32
    %152 = vector.broadcast %cst_53 : f32 to vector<8x8xf32>
    %153 = arith.addf %152, %151 : vector<8x8xf32>
    %154 = tpu.reciprocal %153 {approx = true} : vector<8x8xf32> -> vector<8x8xf32>
    %cst_54 = arith.constant dense<0xFF800000> : vector<8xf32>
    %155 = vector.multi_reduction <maximumf>, %146, %cst_54 [1] : vector<8x8xf32> to vector<8xf32>
    %156 = vector.shape_cast %155 : vector<8xf32> to vector<8x1xf32>
    %157 = vector.broadcast %156 : vector<8x1xf32> to vector<8x8xf32>
    %158 = arith.subf %146, %157 : vector<8x8xf32>
    %159 = math.exp %158 : vector<8x8xf32>
    %cst_55 = arith.constant dense<0.000000e+00> : vector<8xf32>
    %160 = vector.multi_reduction <add>, %159, %cst_55 [1] : vector<8x8xf32> to vector<8xf32>
    %161 = vector.shape_cast %160 : vector<8xf32> to vector<8x1xf32>
    %162 = tpu.reciprocal %161 {approx = true} : vector<8x1xf32> -> vector<8x1xf32>
    %163 = vector.broadcast %162 : vector<8x1xf32> to vector<8x8xf32>
    %164 = arith.mulf %159, %163 : vector<8x8xf32>
    %165 = arith.mulf %164, %154 : vector<8x8xf32>
    %166 = arith.truncf %165 : vector<8x8xf32> to vector<8x8xbf16>
    %cst_56 = arith.constant dense<0.000000e+00> : vector<8x8xf32>
    %167 = tpu.matmul %166, %138, %cst_56 {dimension_numbers = #tpu.dot_dimension_numbers<[1], [0], [0], [1], [0, 0, 1, 1], [], []>} : vector<8x8xbf16>, vector<8x8xbf16>, vector<8x8xf32> -> vector<8x8xf32>
    %168 = tpu.concatenate %71, %103, %135, %167 in 1 : vector<8x8xf32>, vector<8x8xf32>, vector<8x8xf32>, vector<8x8xf32> -> vector<8x32xf32>
    %c0_57 = arith.constant 0 : index
    %c0_58 = arith.constant 0 : index
    %169 = vector.load %arg11[%c0_57, %c0_58] : memref<32x32xf32, #tpu.memory_space<vmem>>, vector<32x32xf32>
    %cst_59 = arith.constant dense<0.000000e+00> : vector<8x32xf32>
    %170 = tpu.matmul %168, %169, %cst_59 {dimension_numbers = #tpu.dot_dimension_numbers<[1], [0], [0], [1], [0, 0, 1, 1], [], []>} : vector<8x32xf32>, vector<32x32xf32>, vector<8x32xf32> -> vector<8x32xf32>
    %c0_60 = arith.constant 0 : index
    %c0_61 = arith.constant 0 : index
    %171 = vector.load %arg12[%c0_60, %c0_61] : memref<1x32xf32, #tpu.memory_space<vmem>>, vector<1x32xf32>
    %172 = vector.broadcast %171 : vector<1x32xf32> to vector<8x32xf32>
    %173 = arith.addf %170, %172 : vector<8x32xf32>
    %c0_62 = arith.constant 0 : index
    %c0_63 = arith.constant 0 : index
    %c0_64 = arith.constant 0 : index
    %174 = vector.load %arg5[%c0_62, %c0_63, %c0_64] : memref<1x8x32xf32, #tpu.memory_space<vmem>>, vector<1x8x32xf32>
    %175 = vector.shape_cast %174 : vector<1x8x32xf32> to vector<8x32xf32>
    %176 = arith.addf %173, %175 : vector<8x32xf32>
    %c0_65 = arith.constant 0 : index
    %c0_66 = arith.constant 0 : index
    %c0_67 = arith.constant 0 : index
    %177 = vector.load %arg15[%c0_65, %c0_66, %c0_67] : memref<1x8x32xf32, #tpu.memory_space<vmem>>, vector<1x8x32xf32>
    %178 = vector.shape_cast %177 : vector<1x8x32xf32> to vector<8x32xf32>
    %179 = vector.shape_cast %176 : vector<8x32xf32> to vector<1x8x32xf32>
    tpu.vector_store %arg15[%c0_65, %c0_66, %c0_67], %179 {strides = array<i32>} : memref<1x8x32xf32, #tpu.memory_space<vmem>>, vector<1x8x32xf32>,
    %180 = vector.shape_cast %50 : vector<8x8xf32> to vector<8x8x1xf32>
    %181 = vector.shape_cast %82 : vector<8x8xf32> to vector<8x8x1xf32>
    %182 = vector.shape_cast %114 : vector<8x8xf32> to vector<8x8x1xf32>
    %183 = vector.shape_cast %146 : vector<8x8xf32> to vector<8x8x1xf32>
    %184 = tpu.concatenate %180, %181, %182, %183 in 2 : vector<8x8x1xf32>, vector<8x8x1xf32>, vector<8x8x1xf32>, vector<8x8x1xf32> -> vector<8x8x4xf32>
    %185 = vector.shape_cast %184 : vector<8x8x4xf32> to vector<64x4xf32>
    %c0_68 = arith.constant 0 : index
    %c0_69 = arith.constant 0 : index
    %186 = vector.load %arg13[%c0_68, %c0_69] : memref<4x16xf32, #tpu.memory_space<vmem>>, vector<4x16xf32>
    %cst_70 = arith.constant dense<0.000000e+00> : vector<64x16xf32>
    %187 = tpu.matmul %185, %186, %cst_70 {dimension_numbers = #tpu.dot_dimension_numbers<[1], [0], [0], [1], [0, 0, 1, 1], [], []>} : vector<64x4xf32>, vector<4x16xf32>, vector<64x16xf32> -> vector<64x16xf32>
    %c0_71 = arith.constant 0 : index
    %c0_72 = arith.constant 0 : index
    %188 = vector.load %arg14[%c0_71, %c0_72] : memref<1x16xf32, #tpu.memory_space<vmem>>, vector<1x16xf32>
    %189 = vector.broadcast %188 : vector<1x16xf32> to vector<64x16xf32>
    %190 = arith.addf %187, %189 : vector<64x16xf32>
    %191 = arith.addf %190, %2 : vector<64x16xf32>
    %192 = vector.shape_cast %191 : vector<64x16xf32> to vector<8x8x16xf32>
    %c0_73 = arith.constant 0 : index
    %c0_74 = arith.constant 0 : index
    %c0_75 = arith.constant 0 : index
    %c0_76 = arith.constant 0 : index
    %193 = vector.load %arg16[%c0_73, %c0_74, %c0_75, %c0_76] : memref<1x8x8x16xf32, #tpu.memory_space<vmem>>, vector<1x8x8x16xf32>
    %194 = vector.shape_cast %193 : vector<1x8x8x16xf32> to vector<8x8x16xf32>
    %195 = vector.shape_cast %192 : vector<8x8x16xf32> to vector<1x8x8x16xf32>
    tpu.vector_store %arg16[%c0_73, %c0_74, %c0_75, %c0_76], %195 {strides = array<i32>} : memref<1x8x8x16xf32, #tpu.memory_space<vmem>>, vector<1x8x8x16xf32>,
    return
  }
  func.func @transform_0(%arg0: i32, %arg1: i32) -> (i32, i32, i32) {
    %c0_i32 = arith.constant 0 : i32
    %c0_i32_0 = arith.constant 0 : i32
    return %arg0, %arg1, %c0_i32 : i32, i32, i32
  }
  func.func @transform_1(%arg0: i32, %arg1: i32) -> (i32, i32, i32) {
    %c0_i32 = arith.constant 0 : i32
    %c0_i32_0 = arith.constant 0 : i32
    %c0_i32_1 = arith.constant 0 : i32
    return %arg0, %c0_i32, %c0_i32_0 : i32, i32, i32
  }
  func.func @transform_2(%arg0: i32, %arg1: i32) -> (i32, i32, i32) {
    %c0_i32 = arith.constant 0 : i32
    %c0_i32_0 = arith.constant 0 : i32
    %c0_i32_1 = arith.constant 0 : i32
    return %arg0, %c0_i32, %c0_i32_0 : i32, i32, i32
  }
  func.func @transform_3(%arg0: i32, %arg1: i32) -> (i32, i32, i32) {
    %c0_i32 = arith.constant 0 : i32
    %c0_i32_0 = arith.constant 0 : i32
    return %arg0, %arg1, %c0_i32 : i32, i32, i32
  }
  func.func @transform_4(%arg0: i32, %arg1: i32) -> (i32, i32, i32, i32) {
    %c0_i32 = arith.constant 0 : i32
    %c0_i32_0 = arith.constant 0 : i32
    %c0_i32_1 = arith.constant 0 : i32
    return %arg0, %arg1, %c0_i32, %c0_i32_0 : i32, i32, i32, i32
  }
  func.func @transform_5(%arg0: i32, %arg1: i32) -> (i32, i32) {
    %c0_i32 = arith.constant 0 : i32
    %c0_i32_0 = arith.constant 0 : i32
    %c0_i32_1 = arith.constant 0 : i32
    return %c0_i32, %c0_i32_0 : i32, i32
  }
  func.func @transform_6(%arg0: i32, %arg1: i32) -> (i32, i32) {
    %c0_i32 = arith.constant 0 : i32
    %c0_i32_0 = arith.constant 0 : i32
    %c0_i32_1 = arith.constant 0 : i32
    return %c0_i32, %c0_i32_0 : i32, i32
  }
  func.func @transform_7(%arg0: i32, %arg1: i32) -> (i32, i32) {
    %c0_i32 = arith.constant 0 : i32
    %c0_i32_0 = arith.constant 0 : i32
    %c0_i32_1 = arith.constant 0 : i32
    return %c0_i32, %c0_i32_0 : i32, i32
  }
  func.func @transform_8(%arg0: i32, %arg1: i32) -> (i32, i32) {
    %c0_i32 = arith.constant 0 : i32
    %c0_i32_0 = arith.constant 0 : i32
    %c0_i32_1 = arith.constant 0 : i32
    return %c0_i32, %c0_i32_0 : i32, i32
  }
  func.func @transform_9(%arg0: i32, %arg1: i32) -> (i32, i32) {
    %c0_i32 = arith.constant 0 : i32
    %c0_i32_0 = arith.constant 0 : i32
    %c0_i32_1 = arith.constant 0 : i32
    return %c0_i32, %c0_i32_0 : i32, i32
  }
  func.func @transform_10(%arg0: i32, %arg1: i32) -> (i32, i32) {
    %c0_i32 = arith.constant 0 : i32
    %c0_i32_0 = arith.constant 0 : i32
    %c0_i32_1 = arith.constant 0 : i32
    return %c0_i32, %c0_i32_0 : i32, i32
  }
  func.func @transform_11(%arg0: i32, %arg1: i32) -> (i32, i32) {
    %c0_i32 = arith.constant 0 : i32
    %c0_i32_0 = arith.constant 0 : i32
    %c0_i32_1 = arith.constant 0 : i32
    return %c0_i32, %c0_i32_0 : i32, i32
  }
  func.func @transform_12(%arg0: i32, %arg1: i32) -> (i32, i32) {
    %c0_i32 = arith.constant 0 : i32
    %c0_i32_0 = arith.constant 0 : i32
    %c0_i32_1 = arith.constant 0 : i32
    return %c0_i32, %c0_i32_0 : i32, i32
  }
  func.func @transform_13(%arg0: i32, %arg1: i32) -> (i32, i32, i32) {
    %c0_i32 = arith.constant 0 : i32
    %c0_i32_0 = arith.constant 0 : i32
    return %arg0, %arg1, %c0_i32 : i32, i32, i32
  }
  func.func @transform_14(%arg0: i32, %arg1: i32) -> (i32, i32, i32, i32) {
    %c0_i32 = arith.constant 0 : i32
    %c0_i32_0 = arith.constant 0 : i32
    %c0_i32_1 = arith.constant 0 : i32
    return %arg0, %arg1, %c0_i32, %c0_i32_0 : i32, i32, i32, i32
  }
}

module attributes {stable_mosaic.version = 11 : i64} {
  func.func @_ffn_kernel(%arg0: i32, %arg1: memref<128x16xf32, #tpu.memory_space<vmem>>, %arg2: memref<1x16xf32, #tpu.memory_space<vmem>>, %arg3: memref<1x16xf32, #tpu.memory_space<vmem>>, %arg4: memref<16x32xf32, #tpu.memory_space<vmem>>, %arg5: memref<1x32xf32, #tpu.memory_space<vmem>>, %arg6: memref<32x16xf32, #tpu.memory_space<vmem>>, %arg7: memref<1x16xf32, #tpu.memory_space<vmem>>, %arg8: memref<128x16xf32, #tpu.memory_space<vmem>>) attributes {dimension_semantics = [#tpu.dimension_semantics<parallel>], iteration_bounds = array<i64: 1>, scalar_prefetch = 0 : i64, scratch_operands = 0 : i64, tpu.core_type = #tpu.core_type<tc>, window_params = [{transform_indices = @transform_0, window_bounds = array<i64: 128, 16>}, {pipeline_mode = #tpu.pipeline_mode<synchronous>, transform_indices = @transform_1, window_bounds = array<i64: 1, 16>}, {pipeline_mode = #tpu.pipeline_mode<synchronous>, transform_indices = @transform_2, window_bounds = array<i64: 1, 16>}, {pipeline_mode = #tpu.pipeline_mode<synchronous>, transform_indices = @transform_3, window_bounds = array<i64: 16, 32>}, {pipeline_mode = #tpu.pipeline_mode<synchronous>, transform_indices = @transform_4, window_bounds = array<i64: 1, 32>}, {pipeline_mode = #tpu.pipeline_mode<synchronous>, transform_indices = @transform_5, window_bounds = array<i64: 32, 16>}, {pipeline_mode = #tpu.pipeline_mode<synchronous>, transform_indices = @transform_6, window_bounds = array<i64: 1, 16>}, {transform_indices = @transform_7, window_bounds = array<i64: 128, 16>}]} {
    %c0 = arith.constant 0 : index
    %c0_0 = arith.constant 0 : index
    %0 = vector.load %arg1[%c0, %c0_0] : memref<128x16xf32, #tpu.memory_space<vmem>>, vector<128x16xf32>
    %cst = arith.constant dense<0.000000e+00> : vector<128xf32>
    %1 = vector.multi_reduction <add>, %0, %cst [1] : vector<128x16xf32> to vector<128xf32>
    %2 = vector.shape_cast %1 : vector<128xf32> to vector<128x1xf32>
    %cst_1 = arith.constant 1.600000e+01 : f32
    %3 = vector.broadcast %cst_1 : f32 to vector<128x1xf32>
    %4 = arith.divf %2, %3 : vector<128x1xf32>
    %5 = vector.broadcast %4 : vector<128x1xf32> to vector<128x16xf32>
    %6 = arith.subf %0, %5 : vector<128x16xf32>
    %7 = arith.mulf %6, %6 : vector<128x16xf32>
    %cst_2 = arith.constant dense<0.000000e+00> : vector<128xf32>
    %8 = vector.multi_reduction <add>, %7, %cst_2 [1] : vector<128x16xf32> to vector<128xf32>
    %9 = vector.shape_cast %8 : vector<128xf32> to vector<128x1xf32>
    %cst_3 = arith.constant 1.600000e+01 : f32
    %10 = vector.broadcast %cst_3 : f32 to vector<128x1xf32>
    %11 = arith.divf %9, %10 : vector<128x1xf32>
    %cst_4 = arith.constant 9.99999974E-6 : f32
    %12 = vector.broadcast %cst_4 : f32 to vector<128x1xf32>
    %13 = arith.addf %11, %12 : vector<128x1xf32>
    %14 = math.rsqrt %13 : vector<128x1xf32>
    %15 = vector.broadcast %14 : vector<128x1xf32> to vector<128x16xf32>
    %16 = arith.mulf %6, %15 : vector<128x16xf32>
    %c0_5 = arith.constant 0 : index
    %c0_6 = arith.constant 0 : index
    %17 = vector.load %arg2[%c0_5, %c0_6] : memref<1x16xf32, #tpu.memory_space<vmem>>, vector<1x16xf32>
    %18 = vector.broadcast %17 : vector<1x16xf32> to vector<128x16xf32>
    %19 = arith.mulf %16, %18 : vector<128x16xf32>
    %c0_7 = arith.constant 0 : index
    %c0_8 = arith.constant 0 : index
    %20 = vector.load %arg3[%c0_7, %c0_8] : memref<1x16xf32, #tpu.memory_space<vmem>>, vector<1x16xf32>
    %21 = vector.broadcast %20 : vector<1x16xf32> to vector<128x16xf32>
    %22 = arith.addf %19, %21 : vector<128x16xf32>
    %c0_9 = arith.constant 0 : index
    %c0_10 = arith.constant 0 : index
    %23 = vector.load %arg4[%c0_9, %c0_10] : memref<16x32xf32, #tpu.memory_space<vmem>>, vector<16x32xf32>
    %cst_11 = arith.constant dense<0.000000e+00> : vector<128x32xf32>
    %24 = tpu.matmul %22, %23, %cst_11 {dimension_numbers = #tpu.dot_dimension_numbers<[1], [0], [0], [1], [0, 0, 1, 1], [], []>} : vector<128x16xf32>, vector<16x32xf32>, vector<128x32xf32> -> vector<128x32xf32>
    %c0_12 = arith.constant 0 : index
    %c0_13 = arith.constant 0 : index
    %25 = vector.load %arg5[%c0_12, %c0_13] : memref<1x32xf32, #tpu.memory_space<vmem>>, vector<1x32xf32>
    %26 = vector.broadcast %25 : vector<1x32xf32> to vector<128x32xf32>
    %27 = arith.addf %24, %26 : vector<128x32xf32>
    %cst_14 = arith.constant 0.000000e+00 : f32
    %28 = vector.broadcast %cst_14 : f32 to vector<128x32xf32>
    %29 = arith.cmpf ogt, %27, %28 : vector<128x32xf32>
    %cst_15 = arith.constant 0.000000e+00 : f32
    %30 = vector.broadcast %cst_15 : f32 to vector<128x32xf32>
    %31 = arith.minimumf %27, %30 : vector<128x32xf32>
    %32 = math.exp %31 : vector<128x32xf32>
    %cst_16 = arith.constant 1.000000e+00 : f32
    %33 = vector.broadcast %cst_16 : f32 to vector<128x32xf32>
    %34 = arith.subf %32, %33 : vector<128x32xf32>
    %35 = arith.select %29, %27, %34 : vector<128x32xi1>, vector<128x32xf32>
    %c0_17 = arith.constant 0 : index
    %c0_18 = arith.constant 0 : index
    %36 = vector.load %arg6[%c0_17, %c0_18] : memref<32x16xf32, #tpu.memory_space<vmem>>, vector<32x16xf32>
    %cst_19 = arith.constant dense<0.000000e+00> : vector<128x16xf32>
    %37 = tpu.matmul %35, %36, %cst_19 {dimension_numbers = #tpu.dot_dimension_numbers<[1], [0], [0], [1], [0, 0, 1, 1], [], []>} : vector<128x32xf32>, vector<32x16xf32>, vector<128x16xf32> -> vector<128x16xf32>
    %c0_20 = arith.constant 0 : index
    %c0_21 = arith.constant 0 : index
    %38 = vector.load %arg7[%c0_20, %c0_21] : memref<1x16xf32, #tpu.memory_space<vmem>>, vector<1x16xf32>
    %39 = vector.broadcast %38 : vector<1x16xf32> to vector<128x16xf32>
    %40 = arith.addf %37, %39 : vector<128x16xf32>
    %41 = arith.addf %40, %0 : vector<128x16xf32>
    %c0_22 = arith.constant 0 : index
    %c0_23 = arith.constant 0 : index
    %42 = vector.load %arg8[%c0_22, %c0_23] : memref<128x16xf32, #tpu.memory_space<vmem>>, vector<128x16xf32>
    tpu.vector_store %arg8[%c0_22, %c0_23], %41 {strides = array<i32>} : memref<128x16xf32, #tpu.memory_space<vmem>>, vector<128x16xf32>,
    return
  }
  func.func @transform_0(%arg0: i32) -> (i32, i32) {
    %c0_i32 = arith.constant 0 : i32
    %c0_i32_0 = arith.constant 0 : i32
    return %arg0, %c0_i32 : i32, i32
  }
  func.func @transform_1(%arg0: i32) -> (i32, i32) {
    %c0_i32 = arith.constant 0 : i32
    %c0_i32_0 = arith.constant 0 : i32
    %c0_i32_1 = arith.constant 0 : i32
    return %c0_i32, %c0_i32_0 : i32, i32
  }
  func.func @transform_2(%arg0: i32) -> (i32, i32) {
    %c0_i32 = arith.constant 0 : i32
    %c0_i32_0 = arith.constant 0 : i32
    %c0_i32_1 = arith.constant 0 : i32
    return %c0_i32, %c0_i32_0 : i32, i32
  }
  func.func @transform_3(%arg0: i32) -> (i32, i32) {
    %c0_i32 = arith.constant 0 : i32
    %c0_i32_0 = arith.constant 0 : i32
    %c0_i32_1 = arith.constant 0 : i32
    return %c0_i32, %c0_i32_0 : i32, i32
  }
  func.func @transform_4(%arg0: i32) -> (i32, i32) {
    %c0_i32 = arith.constant 0 : i32
    %c0_i32_0 = arith.constant 0 : i32
    %c0_i32_1 = arith.constant 0 : i32
    return %c0_i32, %c0_i32_0 : i32, i32
  }
  func.func @transform_5(%arg0: i32) -> (i32, i32) {
    %c0_i32 = arith.constant 0 : i32
    %c0_i32_0 = arith.constant 0 : i32
    %c0_i32_1 = arith.constant 0 : i32
    return %c0_i32, %c0_i32_0 : i32, i32
  }
  func.func @transform_6(%arg0: i32) -> (i32, i32) {
    %c0_i32 = arith.constant 0 : i32
    %c0_i32_0 = arith.constant 0 : i32
    %c0_i32_1 = arith.constant 0 : i32
    return %c0_i32, %c0_i32_0 : i32, i32
  }
  func.func @transform_7(%arg0: i32) -> (i32, i32) {
    %c0_i32 = arith.constant 0 : i32
    %c0_i32_0 = arith.constant 0 : i32
    return %arg0, %c0_i32 : i32, i32
  }
}

</mosaic_0001>

<llo_original>
// kernel: egt_forward.4
$region0: #{egt_forward.4}
  #allocation0 [shape = 'u32[]', space=smem, size = 0x4, offset = 0x4, fixed_abs, tag = 'smem constant byte address 0x4 - core index']
  #allocation1 [shape = 'u32[144,128]{1,0:T(1,128)}', space=vmem, size = 0x12000, scoped, tag = 'internal scratch']
  %s0 = inlined_call_operand.vmem [shape: f32[16,32], index: 0, kind: input, shape index: {}]
  %s1 = inlined_call_operand.vmem [shape: f32[1,32], index: 1, kind: input, shape index: {}]
  %s2 = inlined_call_operand.vmem [shape: f32[1,32], index: 2, kind: input, shape index: {}]
  %s3 = inlined_call_operand.vmem [shape: f32[32,96], index: 3, kind: input, shape index: {}]
  %s4 = inlined_call_operand.vmem [shape: f32[1,96], index: 4, kind: input, shape index: {}]
  %s5 = inlined_call_operand.vmem [shape: f32[16,96], index: 5, kind: output, shape index: {}]
  %s6 = sld [smem:[#allocation0]]
  $region30: #{egt_forward.4} parent=0
    _
  %s8 = ssub.s32 1, %s6
  %s9 = scalar_select 0, %s8, %s6
  // Predicated region
  $region2: #{egt_forward.4} parent=0 // pred_check
    _
  $region3: #{egt_forward.4} parent=0 // pred_check_branch
    %11 = sbr.rel (0) target = $region5
  $region4: #{egt_forward.4} parent=0 // pred_region
    _
  $region5: #{egt_forward.4} parent=0 // pred_fallthru
    _
  // Predicated region
  $region6: #{egt_forward.4} parent=0 // pred_check
    _
  $region7: #{egt_forward.4} parent=0 // pred_check_branch
    %13 = sbr.rel (0) target = $region9
  $region8: #{egt_forward.4} parent=0 // pred_region
    _
  $region9: #{egt_forward.4} parent=0 // pred_fallthru
    _
  // Predicated region
  $region10: #{egt_forward.4} parent=0 // pred_check
    _
  $region11: #{egt_forward.4} parent=0 // pred_check_branch
    %15 = sbr.rel (0) target = $region13
  $region12: #{egt_forward.4} parent=0 // pred_region
    _
  $region13: #{egt_forward.4} parent=0 // pred_fallthru
    _
  // Predicated region
  $region14: #{egt_forward.4} parent=0 // pred_check
    _
  $region15: #{egt_forward.4} parent=0 // pred_check_branch
    %17 = sbr.rel (0) target = $region17
  $region16: #{egt_forward.4} parent=0 // pred_region
    _
  $region17: #{egt_forward.4} parent=0 // pred_fallthru
    _
  // Predicated region
  $region18: #{egt_forward.4} parent=0 // pred_check
    _
  $region19: #{egt_forward.4} parent=0 // pred_check_branch
    %19 = sbr.rel (0) target = $region21
  $region20: #{egt_forward.4} parent=0 // pred_region
    _
  $region21: #{egt_forward.4} parent=0 // pred_fallthru
    _
  %v20 = vld [vmem:[%s0] sm:$0xff]
  %v21 = vld [vmem:[%s0 + $0x8] sm:$0xff]
  %vm22 = vcmask 261120
  %v23 = vsel %vm22, %v20, 0.0
  %24 = vadd.xlane.f32.xlu0 %v23
  %v25 = vpop.xlane.xlu0 %24
  %v26 = vsel %vm22, %v21, 0.0
  %27 = vadd.xlane.f32.xlu0 %v26
  %v28 = vpop.xlane.xlu0 %27
  %v29 = vrcp.pop 32.0
  %v30 = vmul.f32 %v25, %v29
  %v31 = vmul.f32 %v28, %v29
  %v32 = vsub.f32 %v20, %v30
  %v33 = vsub.f32 %v21, %v31
  %v34 = vmul.f32 %v32, %v32
  %v35 = vmul.f32 %v33, %v33
  %v36 = vsel %vm22, %v34, 0.0
  %37 = vadd.xlane.f32.xlu0 %v36
  %v38 = vpop.xlane.xlu0 %37
  %v39 = vsel %vm22, %v35, 0.0
  %40 = vadd.xlane.f32.xlu0 %v39
  %v41 = vpop.xlane.xlu0 %40
  %v42 = vmul.f32 %v38, %v29
  %v43 = vmul.f32 %v41, %v29
  %v44 = vadd.f32 %v42, 1e-05
  %v45 = vadd.f32 %v43, 1e-05
  %v46 = vrsqrt.pop %v44
  %v47 = vrsqrt.pop %v45
  %v48 = vmul.f32 %v32, %v46
  %v49 = vmul.f32 %v33, %v47
  %v50 = vld [vmem:[%s1] sm:$0x1]
  %v52 = vlaneseq
  %v53 = vshrl.u32 %v52, 7
  %v54 = vsub.s32 0, %v53
  %v55 = vrot.slane %v50, %v54
  %v57 = vmul.f32 %v48, %v55
  %v58 = vmul.f32 %v49, %v55
  %v59 = vld [vmem:[%s2] sm:$0x1]
  %v61 = vlaneseq
  %v62 = vshrl.u32 %v61, 7
  %v63 = vsub.s32 0, %v62
  %v64 = vrot.slane %v59, %v63
  %v66 = vadd.f32 %v57, %v64
  %v67 = vadd.f32 %v58, %v64
  %v68 = vld [vmem:[%s3] sm:$0xff]
  %v69 = vld [vmem:[%s3 + $0x8] sm:$0xff]
  %v70 = vld [vmem:[%s3 + $0x10] sm:$0xff]
  %v71 = vld [vmem:[%s3 + $0x18] sm:$0xff]
  %v72 = vld [vmem:[%s4] sm:$0x1]
  %v74 = vlaneseq
  %v75 = vshrl.u32 %v74, 7
  %v76 = vsub.s32 0, %v75
  %v77 = vrot.slane %v72, %v76
  %v80 = vsel %vm22, %v66, 0
  %v83 = vsel %vm22, %v67, 0
  %85 = vmatprep.subr.mxu0 0.0
  %86 = vmatpush1.msra.mxu0 0.0
  %87 = vmatprep.subr.mxu0 0.0
  %88 = vmatpush1.msra.mxu0 0.0
  %89 = vmatprep.subr.mxu0 0.0
  %90 = vmatpush1.msra.mxu0 0.0
  %91 = vmatprep.subr.mxu0 0.0
  %92 = vmatpush1.msra.mxu0 0.0
  %93 = vmatprep.subr.mxu0 0.0
  %94 = vmatpush1.msra.mxu0 0.0
  %95 = vmatprep.subr.mxu0 0.0
  %96 = vmatpush1.msra.mxu0 0.0
  %97 = vmatprep.subr.mxu0 0.0
  %98 = vmatpush1.msra.mxu0 0.0
  %99 = vmatprep.subr.mxu0 0.0
  %100 = vmatpush1.msra.mxu0 0.0
  %101 = vmatprep.subr.mxu0 0.0
  %102 = vmatpush1.msra.mxu0 0.0
  %103 = vmatprep.subr.mxu0 0.0
  %104 = vmatpush1.msra.mxu0 0.0
  %105 = vmatprep.subr.mxu0 0.0
  %106 = vmatpush1.msra.mxu0 0.0
  %107 = vmatprep.subr.mxu0 0.0
  %108 = vmatpush1.msra.mxu0 0.0
  %109 = vmatprep.subr.mxu0 0.0
  %110 = vmatpush1.msra.mxu0 %v71
  %111 = vmatprep.subr.mxu0 0.0
  %112 = vmatpush1.msra.mxu0 %v70
  %113 = vmatprep.subr.mxu0 0.0
  %114 = vmatpush1.msra.mxu0 %v69
  %115 = vmatprep.subr.mxu0 0.0
  %116 = vmatpush1.msra.mxu0 %v68
  %117 = vmatprep.subr.mxu0 0.0
  %118 = vmatpush2.msra.mxu0 0.0
  %119 = vmatprep.subr.mxu0 0.0
  %120 = vmatpush2.msra.mxu0 0.0
  %121 = vmatprep.subr.mxu0 0.0
  %122 = vmatpush2.msra.mxu0 0.0
  %123 = vmatprep.subr.mxu0 0.0
  %124 = vmatpush2.msra.mxu0 0.0
  %125 = vmatprep.subr.mxu0 0.0
  %126 = vmatpush2.msra.mxu0 0.0
  %127 = vmatprep.subr.mxu0 0.0
  %128 = vmatpush2.msra.mxu0 0.0
  %129 = vmatprep.subr.mxu0 0.0
  %130 = vmatpush2.msra.mxu0 0.0
  %131 = vmatprep.subr.mxu0 0.0
  %132 = vmatpush2.msra.mxu0 0.0
  %133 = vmatprep.subr.mxu0 0.0
  %134 = vmatpush2.msra.mxu0 0.0
  %135 = vmatprep.subr.mxu0 0.0
  %136 = vmatpush2.msra.mxu0 0.0
  %137 = vmatprep.subr.mxu0 0.0
  %138 = vmatpush2.msra.mxu0 0.0
  %139 = vmatprep.subr.mxu0 0.0
  %140 = vmatpush2.msra.mxu0 0.0
  %141 = vmatprep.subr.mxu0 0.0
  %142 = vmatpush2.msra.mxu0 0.0
  %143 = vmatprep.subr.mxu0 0.0
  %144 = vmatpush2.msra.mxu0 0.0
  %145 = vmatprep.subr.mxu0 0.0
  %146 = vmatpush2.msra.mxu0 0.0
  %147 = vmatprep.subr.mxu0 0.0
  %148 = vmatpush2.msra.mxu0 0.0
  %149 = vmatprep.mubr.f32.mxu0 0.0
  %150 = vmatmul.mubr.f32.gmra.mxu0 %v80
  %v151 = vpop.f32.mrf.mxu0
  %v152 = vadd.f32 %v77, %v151
  %v153 = vpop.f32.mrf.mxu0
  %154 = vmatprep.mubr.f32.mxu0 0.0
  %155 = vmatmul.mubr.f32.gmra.mxu0 %v83
  %v156 = vpop.f32.mrf.mxu0
  %v157 = vadd.f32 %v77, %v156
  %v158 = vpop.f32.mrf.mxu0
  %159 = vdwg.mxu0
  %vm160 = vcmask 785408
  %161 = vst.msk [vmem:[%s5] sm:$0xff] %vm160, %v152
  %162 = vst.msk [vmem:[%s5 + $0x8] sm:$0xff] %vm160, %v157
  // Predicated region
  $region22: #{egt_forward.4} parent=0 // pred_check
    _
  $region23: #{egt_forward.4} parent=0 // pred_check_branch
    %164 = sbr.rel (0) target = $region25
  $region24: #{egt_forward.4} parent=0 // pred_region
    _
  $region25: #{egt_forward.4} parent=0 // pred_fallthru
    _
  // Predicated region
  $region26: #{egt_forward.4} parent=0 // pred_check
    _
  $region27: #{egt_forward.4} parent=0 // pred_check_branch
    %166 = sbr.rel (0) target = $region29
  $region28: #{egt_forward.4} parent=0 // pred_region
    _
  $region29: #{egt_forward.4} parent=0 // pred_fallthru
    _

// kernel: egt_forward.6
$region0: #{egt_forward.6}
  #allocation0 [shape = 'u32[]', space=smem, size = 0x4, offset = 0x4, fixed_abs, tag = 'smem constant byte address 0x4 - core index']
  #allocation1 [shape = 'u32[144,128]{1,0:T(1,128)}', space=vmem, size = 0x12000, scoped, tag = 'internal scratch']
  %s0 = inlined_call_operand.vmem [shape: f32[16,32], index: 0, kind: input, shape index: {}]
  %s1 = inlined_call_operand.vmem [shape: f32[1,32], index: 1, kind: input, shape index: {}]
  %s2 = inlined_call_operand.vmem [shape: f32[1,32], index: 2, kind: input, shape index: {}]
  %s3 = inlined_call_operand.vmem [shape: f32[32,64], index: 3, kind: input, shape index: {}]
  %s4 = inlined_call_operand.vmem [shape: f32[1,64], index: 4, kind: input, shape index: {}]
  %s5 = inlined_call_operand.vmem [shape: f32[64,32], index: 5, kind: input, shape index: {}]
  %s6 = inlined_call_operand.vmem [shape: f32[1,32], index: 6, kind: input, shape index: {}]
  %s7 = inlined_call_operand.hbm [shape: f32[16,32], index: 7, kind: output, shape index: {}]
  %s8 = sld [smem:[#allocation0]]
  $region38: #{egt_forward.6} parent=0
    _
  %s10 = ssub.s32 1, %s8
  %s11 = scalar_select 0, %s10, %s8
  $region1: #{egt_forward.6} parent=0
    #allocation2 [shape = 'u8[8192]{0}', space=vmem, size = 0x2000, scoped, tag = 'output window, operand 0, single buffered']
    #allocation3 [shape = 's32[1]{0}', space=sflag, size = 0x4, scoped, tag = 'scoped memory for egt_forward.6']
    %12 = vsyncpa [#allocation3], 0
    // Predicated region
    $region2: #{egt_forward.6} parent=1 // pred_check
      _
    $region3: #{egt_forward.6} parent=1 // pred_check_branch
      %14 = sbr.rel (0) target = $region5
    $region4: #{egt_forward.6} parent=1 // pred_region
      _
    $region5: #{egt_forward.6} parent=1 // pred_fallthru
      _
    // Predicated region
    $region6: #{egt_forward.6} parent=1 // pred_check
      _
    $region7: #{egt_forward.6} parent=1 // pred_check_branch
      %16 = sbr.rel (0) target = $region9
    $region8: #{egt_forward.6} parent=1 // pred_region
      _
    $region9: #{egt_forward.6} parent=1 // pred_fallthru
      _
    // Predicated region
    $region10: #{egt_forward.6} parent=1 // pred_check
      _
    $region11: #{egt_forward.6} parent=1 // pred_check_branch
      %18 = sbr.rel (0) target = $region13
    $region12: #{egt_forward.6} parent=1 // pred_region
      _
    $region13: #{egt_forward.6} parent=1 // pred_fallthru
      _
    // Predicated region
    $region14: #{egt_forward.6} parent=1 // pred_check
      _
    $region15: #{egt_forward.6} parent=1 // pred_check_branch
      %20 = sbr.rel (0) target = $region17
    $region16: #{egt_forward.6} parent=1 // pred_region
      _
    $region17: #{egt_forward.6} parent=1 // pred_fallthru
      _
    // Predicated region
    $region18: #{egt_forward.6} parent=1 // pred_check
      _
    $region19: #{egt_forward.6} parent=1 // pred_check_branch
      %22 = sbr.rel (0) target = $region21
    $region20: #{egt_forward.6} parent=1 // pred_region
      _
    $region21: #{egt_forward.6} parent=1 // pred_fallthru
      _
    // Predicated region
    $region22: #{egt_forward.6} parent=1 // pred_check
      _
    $region23: #{egt_forward.6} parent=1 // pred_check_branch
      %24 = sbr.rel (0) target = $region25
    $region24: #{egt_forward.6} parent=1 // pred_region
      _
    $region25: #{egt_forward.6} parent=1 // pred_fallthru
      _
    // Predicated region
    $region26: #{egt_forward.6} parent=1 // pred_check
      _
    $region27: #{egt_forward.6} parent=1 // pred_check_branch
      %26 = sbr.rel (0) target = $region29
    $region28: #{egt_forward.6} parent=1 // pred_region
      _
    $region29: #{egt_forward.6} parent=1 // pred_fallthru
      _
    %v27 = vld [vmem:[%s0] sm:$0xff]
    %v28 = vld [vmem:[%s0 + $0x8] sm:$0xff]
    %vm29 = vcmask 261120
    %v30 = vsel %vm29, %v27, 0.0
    %31 = vadd.xlane.f32.xlu0 %v30
    %v32 = vpop.xlane.xlu0 %31
    %v33 = vsel %vm29, %v28, 0.0
    %34 = vadd.xlane.f32.xlu0 %v33
    %v35 = vpop.xlane.xlu0 %34
    %v36 = vrcp.pop 32.0
    %v37 = vmul.f32 %v32, %v36
    %v38 = vmul.f32 %v35, %v36
    %v39 = vsub.f32 %v27, %v37
    %v40 = vsub.f32 %v28, %v38
    %v41 = vmul.f32 %v39, %v39
    %v42 = vmul.f32 %v40, %v40
    %v43 = vsel %vm29, %v41, 0.0
    %44 = vadd.xlane.f32.xlu0 %v43
    %v45 = vpop.xlane.xlu0 %44
    %v46 = vsel %vm29, %v42, 0.0
    %47 = vadd.xlane.f32.xlu0 %v46
    %v48 = vpop.xlane.xlu0 %47
    %v49 = vmul.f32 %v45, %v36
    %v50 = vmul.f32 %v48, %v36
    %v51 = vadd.f32 %v49, 1e-05
    %v52 = vadd.f32 %v50, 1e-05
    %v53 = vrsqrt.pop %v51
    %v54 = vrsqrt.pop %v52
    %v55 = vmul.f32 %v39, %v53
    %v56 = vmul.f32 %v40, %v54
    %v57 = vld [vmem:[%s1] sm:$0x1]
    %v59 = vlaneseq
    %v60 = vshrl.u32 %v59, 7
    %v61 = vsub.s32 0, %v60
    %v62 = vrot.slane %v57, %v61
    %v64 = vmul.f32 %v55, %v62
    %v65 = vmul.f32 %v56, %v62
    %v66 = vld [vmem:[%s2] sm:$0x1]
    %v68 = vlaneseq
    %v69 = vshrl.u32 %v68, 7
    %v70 = vsub.s32 0, %v69
    %v71 = vrot.slane %v66, %v70
    %v73 = vadd.f32 %v64, %v71
    %v74 = vadd.f32 %v65, %v71
    %v75 = vld [vmem:[%s3] sm:$0xff]
    %v76 = vld [vmem:[%s3 + $0x8] sm:$0xff]
    %v77 = vld [vmem:[%s3 + $0x10] sm:$0xff]
    %v78 = vld [vmem:[%s3 + $0x18] sm:$0xff]
    %v79 = vld [vmem:[%s4] sm:$0x1]
    %v81 = vlaneseq
    %v82 = vshrl.u32 %v81, 7
    %v83 = vsub.s32 0, %v82
    %v84 = vrot.slane %v79, %v83
    %v87 = vsel %vm29, %v73, 0
    %v90 = vsel %vm29, %v74, 0
    %92 = vmatprep.subr.mxu0 0.0
    %93 = vmatpush1.msra.mxu0 0.0
    %94 = vmatprep.subr.mxu0 0.0
    %95 = vmatpush1.msra.mxu0 0.0
    %96 = vmatprep.subr.mxu0 0.0
    %97 = vmatpush1.msra.mxu0 0.0
    %98 = vmatprep.subr.mxu0 0.0
    %99 = vmatpush1.msra.mxu0 0.0
    %100 = vmatprep.subr.mxu0 0.0
    %101 = vmatpush1.msra.mxu0 0.0
    %102 = vmatprep.subr.mxu0 0.0
    %103 = vmatpush1.msra.mxu0 0.0
    %104 = vmatprep.subr.mxu0 0.0
    %105 = vmatpush1.msra.mxu0 0.0
    %106 = vmatprep.subr.mxu0 0.0
    %107 = vmatpush1.msra.mxu0 0.0
    %108 = vmatprep.subr.mxu0 0.0
    %109 = vmatpush1.msra.mxu0 0.0
    %110 = vmatprep.subr.mxu0 0.0
    %111 = vmatpush1.msra.mxu0 0.0
    %112 = vmatprep.subr.mxu0 0.0
    %113 = vmatpush1.msra.mxu0 0.0
    %114 = vmatprep.subr.mxu0 0.0
    %115 = vmatpush1.msra.mxu0 0.0
    %116 = vmatprep.subr.mxu0 0.0
    %117 = vmatpush1.msra.mxu0 %v78
    %118 = vmatprep.subr.mxu0 0.0
    %119 = vmatpush1.msra.mxu0 %v77
    %120 = vmatprep.subr.mxu0 0.0
    %121 = vmatpush1.msra.mxu0 %v76
    %122 = vmatprep.subr.mxu0 0.0
    %123 = vmatpush1.msra.mxu0 %v75
    %124 = vmatprep.subr.mxu0 0.0
    %125 = vmatpush2.msra.mxu0 0.0
    %126 = vmatprep.subr.mxu0 0.0
    %127 = vmatpush2.msra.mxu0 0.0
    %128 = vmatprep.subr.mxu0 0.0
    %129 = vmatpush2.msra.mxu0 0.0
    %130 = vmatprep.subr.mxu0 0.0
    %131 = vmatpush2.msra.mxu0 0.0
    %132 = vmatprep.subr.mxu0 0.0
    %133 = vmatpush2.msra.mxu0 0.0
    %134 = vmatprep.subr.mxu0 0.0
    %135 = vmatpush2.msra.mxu0 0.0
    %136 = vmatprep.subr.mxu0 0.0
    %137 = vmatpush2.msra.mxu0 0.0
    %138 = vmatprep.subr.mxu0 0.0
    %139 = vmatpush2.msra.mxu0 0.0
    %140 = vmatprep.subr.mxu0 0.0
    %141 = vmatpush2.msra.mxu0 0.0
    %142 = vmatprep.subr.mxu0 0.0
    %143 = vmatpush2.msra.mxu0 0.0
    %144 = vmatprep.subr.mxu0 0.0
    %145 = vmatpush2.msra.mxu0 0.0
    %146 = vmatprep.subr.mxu0 0.0
    %147 = vmatpush2.msra.mxu0 0.0
    %148 = vmatprep.subr.mxu0 0.0
    %149 = vmatpush2.msra.mxu0 0.0
    %150 = vmatprep.subr.mxu0 0.0
    %151 = vmatpush2.msra.mxu0 0.0
    %152 = vmatprep.subr.mxu0 0.0
    %153 = vmatpush2.msra.mxu0 0.0
    %154 = vmatprep.subr.mxu0 0.0
    %155 = vmatpush2.msra.mxu0 0.0
    %156 = vmatprep.mubr.f32.mxu0 0.0
    %157 = vmatmul.mubr.f32.gmra.mxu0 %v87
    %v158 = vpop.f32.mrf.mxu0
    %v159 = vadd.f32 %v84, %v158
    %v160 = vpop.f32.mrf.mxu0
    %161 = vmatprep.mubr.f32.mxu0 0.0
    %162 = vmatmul.mubr.f32.gmra.mxu0 %v90
    %v163 = vpop.f32.mrf.mxu0
    %v164 = vadd.f32 %v84, %v163
    %v165 = vpop.f32.mrf.mxu0
    %166 = vdwg.mxu0
    %vm167 = vcmp.gt.f32.partialorder %v159, 0.0
    %vm168 = vcmp.gt.f32.partialorder %v164, 0.0
    %v169 = vmin.f32 %v159, 0.0
    %v170 = vmin.f32 %v164, 0.0
    %v171 = vmul.f32 %v169, 1.442695
    %v172 = vpow.pop %v171
    %v173 = vmul.f32 %v170, 1.442695
    %v174 = vpow.pop %v173
    %v175 = vsub.f32 %v172, 1.0
    %v176 = vsub.f32 %v174, 1.0
    %v177 = vsel %vm167, %v159, %v175
    %v178 = vsel %vm168, %v164, %v176
    %v179 = vld [vmem:[%s5] sm:$0xff]
    %v180 = vld [vmem:[%s5 + $0x8] sm:$0xff]
    %v181 = vld [vmem:[%s5 + $0x10] sm:$0xff]
    %v182 = vld [vmem:[%s5 + $0x18] sm:$0xff]
    %v183 = vld [vmem:[%s5 + $0x20] sm:$0xff]
    %v184 = vld [vmem:[%s5 + $0x28] sm:$0xff]
    %v185 = vld [vmem:[%s5 + $0x30] sm:$0xff]
    %v186 = vld [vmem:[%s5 + $0x38] sm:$0xff]
    %v187 = vld [vmem:[%s6] sm:$0x1]
    %v189 = vlaneseq
    %v190 = vshrl.u32 %v189, 7
    %v191 = vsub.s32 0, %v190
    %v192 = vrot.slane %v187, %v191
    %vm194 = vcmask 523264
    %v196 = vsel %vm194, %v177, 0
    %v199 = vsel %vm194, %v178, 0
    %201 = vmatprep.subr.mxu0 0.0
    %202 = vmatpush1.msra.mxu0 0.0
    %203 = vmatprep.subr.mxu0 0.0
    %204 = vmatpush1.msra.mxu0 0.0
    %205 = vmatprep.subr.mxu0 0.0
    %206 = vmatpush1.msra.mxu0 0.0
    %207 = vmatprep.subr.mxu0 0.0
    %208 = vmatpush1.msra.mxu0 0.0
    %209 = vmatprep.subr.mxu0 0.0
    %210 = vmatpush1.msra.mxu0 0.0
    %211 = vmatprep.subr.mxu0 0.0
    %212 = vmatpush1.msra.mxu0 0.0
    %213 = vmatprep.subr.mxu0 0.0
    %214 = vmatpush1.msra.mxu0 0.0
    %215 = vmatprep.subr.mxu0 0.0
    %216 = vmatpush1.msra.mxu0 0.0
    %217 = vmatprep.subr.mxu0 0.0
    %218 = vmatpush1.msra.mxu0 %v186
    %219 = vmatprep.subr.mxu0 0.0
    %220 = vmatpush1.msra.mxu0 %v185
    %221 = vmatprep.subr.mxu0 0.0
    %222 = vmatpush1.msra.mxu0 %v184
    %223 = vmatprep.subr.mxu0 0.0
    %224 = vmatpush1.msra.mxu0 %v183
    %225 = vmatprep.subr.mxu0 0.0
    %226 = vmatpush1.msra.mxu0 %v182
    %227 = vmatprep.subr.mxu0 0.0
    %228 = vmatpush1.msra.mxu0 %v181
    %229 = vmatprep.subr.mxu0 0.0
    %230 = vmatpush1.msra.mxu0 %v180
    %231 = vmatprep.subr.mxu0 0.0
    %232 = vmatpush1.msra.mxu0 %v179
    %233 = vmatprep.subr.mxu0 0.0
    %234 = vmatpush2.msra.mxu0 0.0
    %235 = vmatprep.subr.mxu0 0.0
    %236 = vmatpush2.msra.mxu0 0.0
    %237 = vmatprep.subr.mxu0 0.0
    %238 = vmatpush2.msra.mxu0 0.0
    %239 = vmatprep.subr.mxu0 0.0
    %240 = vmatpush2.msra.mxu0 0.0
    %241 = vmatprep.subr.mxu0 0.0
    %242 = vmatpush2.msra.mxu0 0.0
    %243 = vmatprep.subr.mxu0 0.0
    %244 = vmatpush2.msra.mxu0 0.0
    %245 = vmatprep.subr.mxu0 0.0
    %246 = vmatpush2.msra.mxu0 0.0
    %247 = vmatprep.subr.mxu0 0.0
    %248 = vmatpush2.msra.mxu0 0.0
    %249 = vmatprep.subr.mxu0 0.0
    %250 = vmatpush2.msra.mxu0 0.0
    %251 = vmatprep.subr.mxu0 0.0
    %252 = vmatpush2.msra.mxu0 0.0
    %253 = vmatprep.subr.mxu0 0.0
    %254 = vmatpush2.msra.mxu0 0.0
    %255 = vmatprep.subr.mxu0 0.0
    %256 = vmatpush2.msra.mxu0 0.0
    %257 = vmatprep.subr.mxu0 0.0
    %258 = vmatpush2.msra.mxu0 0.0
    %259 = vmatprep.subr.mxu0 0.0
    %260 = vmatpush2.msra.mxu0 0.0
    %261 = vmatprep.subr.mxu0 0.0
    %262 = vmatpush2.msra.mxu0 0.0
    %263 = vmatprep.subr.mxu0 0.0
    %264 = vmatpush2.msra.mxu0 0.0
    %265 = vmatprep.mubr.f32.mxu0 0.0
    %266 = vmatmul.mubr.f32.gmra.mxu0 %v196
    %v267 = vpop.f32.mrf.mxu0
    %v268 = vadd.f32 %v192, %v267
    %v269 = vpop.f32.mrf.mxu0
    %270 = vmatprep.mubr.f32.mxu0 0.0
    %271 = vmatmul.mubr.f32.gmra.mxu0 %v199
    %v272 = vpop.f32.mrf.mxu0
    %v273 = vadd.f32 %v192, %v272
    %v274 = vpop.f32.mrf.mxu0
    %275 = vdwg.mxu0
    %v276 = vadd.f32 %v268, %v27
    %v277 = vadd.f32 %v273, %v28
    %278 = vst.msk [vmem:[#allocation2] sm:$0xff] %vm29, %v276
    %279 = vst.msk [vmem:[#allocation2 + $0x8] sm:$0xff] %vm29, %v277
    // Predicated region
    $region30: #{egt_forward.6} parent=1 // pred_check
      _
    $region31: #{egt_forward.6} parent=1 // pred_check_branch
      %281 = sbr.rel (0) target = $region33
    $region32: #{egt_forward.6} parent=1 // pred_region
      %s283 = ssub.s32 256, 256
      %284 = vsyncadd [#allocation3], %s283
      %s285 = sshll.u32 [#allocation2], 4
      %s286 = int_to_ptr.vmem [resolvable:$true] %s285
      %291 = dma.vmem_to_hbm [thread:$0]  %s286, 256, %s7, [#allocation3], 128, 128, 8
    $region33: #{egt_forward.6} parent=1 // pred_fallthru
      _
    // Predicated region
    $region34: #{egt_forward.6} parent=1 // pred_check
      _
    $region35: #{egt_forward.6} parent=1 // pred_check_branch
      %293 = sbr.rel (0) target = $region37
    $region36: #{egt_forward.6} parent=1 // pred_region
      %294 = dma.done [#allocation3], 256
    $region37: #{egt_forward.6} parent=1 // pred_fallthru
      _
    %295 = vsyncpa [#allocation3], 1

// kernel: egt_forward.7
$region0: #{egt_forward.7}
  #allocation0 [shape = 'u32[]', space=smem, size = 0x4, offset = 0x4, fixed_abs, tag = 'smem constant byte address 0x4 - core index']
  #allocation1 [shape = 'u32[144,128]{1,0:T(1,128)}', space=vmem, size = 0x12000, scoped, tag = 'internal scratch']
  %s0 = inlined_call_operand.vmem [shape: f32[128,16], index: 0, kind: input, shape index: {}]
  %s1 = inlined_call_operand.vmem [shape: f32[1,16], index: 1, kind: input, shape index: {}]
  %s2 = inlined_call_operand.vmem [shape: f32[1,16], index: 2, kind: input, shape index: {}]
  %s3 = inlined_call_operand.vmem [shape: f32[16,32], index: 3, kind: input, shape index: {}]
  %s4 = inlined_call_operand.vmem [shape: f32[1,32], index: 4, kind: input, shape index: {}]
  %s5 = inlined_call_operand.vmem [shape: f32[32,16], index: 5, kind: input, shape index: {}]
  %s6 = inlined_call_operand.vmem [shape: f32[1,16], index: 6, kind: input, shape index: {}]
  %s7 = inlined_call_operand.hbm [shape: f32[128,16], index: 7, kind: output, shape index: {}]
  %s8 = sld [smem:[#allocation0]]
  $region38: #{egt_forward.7} parent=0
    _
  %s10 = ssub.s32 1, %s8
  %s11 = scalar_select 0, %s10, %s8
  $region1: #{egt_forward.7} parent=0
    #allocation2 [shape = 'u8[65536]{0}', space=vmem, size = 0x10000, scoped, tag = 'output window, operand 0, single buffered']
    #allocation3 [shape = 's32[1]{0}', space=sflag, size = 0x4, scoped, tag = 'scoped memory for egt_forward.7']
    %12 = vsyncpa [#allocation3], 0
    // Predicated region
    $region2: #{egt_forward.7} parent=1 // pred_check
      _
    $region3: #{egt_forward.7} parent=1 // pred_check_branch
      %14 = sbr.rel (0) target = $region5
    $region4: #{egt_forward.7} parent=1 // pred_region
      _
    $region5: #{egt_forward.7} parent=1 // pred_fallthru
      _
    // Predicated region
    $region6: #{egt_forward.7} parent=1 // pred_check
      _
    $region7: #{egt_forward.7} parent=1 // pred_check_branch
      %16 = sbr.rel (0) target = $region9
    $region8: #{egt_forward.7} parent=1 // pred_region
      _
    $region9: #{egt_forward.7} parent=1 // pred_fallthru
      _
    // Predicated region
    $region10: #{egt_forward.7} parent=1 // pred_check
      _
    $region11: #{egt_forward.7} parent=1 // pred_check_branch
      %18 = sbr.rel (0) target = $region13
    $region12: #{egt_forward.7} parent=1 // pred_region
      _
    $region13: #{egt_forward.7} parent=1 // pred_fallthru
      _
    // Predicated region
    $region14: #{egt_forward.7} parent=1 // pred_check
      _
    $region15: #{egt_forward.7} parent=1 // pred_check_branch
      %20 = sbr.rel (0) target = $region17
    $region16: #{egt_forward.7} parent=1 // pred_region
      _
    $region17: #{egt_forward.7} parent=1 // pred_fallthru
      _
    // Predicated region
    $region18: #{egt_forward.7} parent=1 // pred_check
      _
    $region19: #{egt_forward.7} parent=1 // pred_check_branch
      %22 = sbr.rel (0) target = $region21
    $region20: #{egt_forward.7} parent=1 // pred_region
      _
    $region21: #{egt_forward.7} parent=1 // pred_fallthru
      _
    // Predicated region
    $region22: #{egt_forward.7} parent=1 // pred_check
      _
    $region23: #{egt_forward.7} parent=1 // pred_check_branch
      %24 = sbr.rel (0) target = $region25
    $region24: #{egt_forward.7} parent=1 // pred_region
      _
    $region25: #{egt_forward.7} parent=1 // pred_fallthru
      _
    // Predicated region
    $region26: #{egt_forward.7} parent=1 // pred_check
      _
    $region27: #{egt_forward.7} parent=1 // pred_check_branch
      %26 = sbr.rel (0) target = $region29
    $region28: #{egt_forward.7} parent=1 // pred_region
      _
    $region29: #{egt_forward.7} parent=1 // pred_fallthru
      _
    %v27 = vld [vmem:[%s0] sm:$0xff]
    %v28 = vld [vmem:[%s0 + $0x8] sm:$0xff]
    %v29 = vld [vmem:[%s0 + $0x10] sm:$0xff]
    %v30 = vld [vmem:[%s0 + $0x18] sm:$0xff]
    %v31 = vld [vmem:[%s0 + $0x20] sm:$0xff]
    %v32 = vld [vmem:[%s0 + $0x28] sm:$0xff]
    %v33 = vld [vmem:[%s0 + $0x30] sm:$0xff]
    %v34 = vld [vmem:[%s0 + $0x38] sm:$0xff]
    %v35 = vld [vmem:[%s0 + $0x40] sm:$0xff]
    %v36 = vld [vmem:[%s0 + $0x48] sm:$0xff]
    %v37 = vld [vmem:[%s0 + $0x50] sm:$0xff]
    %v38 = vld [vmem:[%s0 + $0x58] sm:$0xff]
    %v39 = vld [vmem:[%s0 + $0x60] sm:$0xff]
    %v40 = vld [vmem:[%s0 + $0x68] sm:$0xff]
    %v41 = vld [vmem:[%s0 + $0x70] sm:$0xff]
    %v42 = vld [vmem:[%s0 + $0x78] sm:$0xff]
    %vm43 = vcmask 130048
    %v44 = vsel %vm43, %v27, 0.0
    %45 = vadd.xlane.f32.xlu0 %v44
    %v46 = vpop.xlane.xlu0 %45
    %v47 = vsel %vm43, %v28, 0.0
    %48 = vadd.xlane.f32.xlu0 %v47
    %v49 = vpop.xlane.xlu0 %48
    %v50 = vsel %vm43, %v29, 0.0
    %51 = vadd.xlane.f32.xlu0 %v50
    %v52 = vpop.xlane.xlu0 %51
    %v53 = vsel %vm43, %v30, 0.0
    %54 = vadd.xlane.f32.xlu0 %v53
    %v55 = vpop.xlane.xlu0 %54
    %v56 = vsel %vm43, %v31, 0.0
    %57 = vadd.xlane.f32.xlu0 %v56
    %v58 = vpop.xlane.xlu0 %57
    %v59 = vsel %vm43, %v32, 0.0
    %60 = vadd.xlane.f32.xlu0 %v59
    %v61 = vpop.xlane.xlu0 %60
    %v62 = vsel %vm43, %v33, 0.0
    %63 = vadd.xlane.f32.xlu0 %v62
    %v64 = vpop.xlane.xlu0 %63
    %v65 = vsel %vm43, %v34, 0.0
    %66 = vadd.xlane.f32.xlu0 %v65
    %v67 = vpop.xlane.xlu0 %66
    %v68 = vsel %vm43, %v35, 0.0
    %69 = vadd.xlane.f32.xlu0 %v68
    %v70 = vpop.xlane.xlu0 %69
    %v71 = vsel %vm43, %v36, 0.0
    %72 = vadd.xlane.f32.xlu0 %v71
    %v73 = vpop.xlane.xlu0 %72
    %v74 = vsel %vm43, %v37, 0.0
    %75 = vadd.xlane.f32.xlu0 %v74
    %v76 = vpop.xlane.xlu0 %75
    %v77 = vsel %vm43, %v38, 0.0
    %78 = vadd.xlane.f32.xlu0 %v77
    %v79 = vpop.xlane.xlu0 %78
    %v80 = vsel %vm43, %v39, 0.0
    %81 = vadd.xlane.f32.xlu0 %v80
    %v82 = vpop.xlane.xlu0 %81
    %v83 = vsel %vm43, %v40, 0.0
    %84 = vadd.xlane.f32.xlu0 %v83
    %v85 = vpop.xlane.xlu0 %84
    %v86 = vsel %vm43, %v41, 0.0
    %87 = vadd.xlane.f32.xlu0 %v86
    %v88 = vpop.xlane.xlu0 %87
    %v89 = vsel %vm43, %v42, 0.0
    %90 = vadd.xlane.f32.xlu0 %v89
    %v91 = vpop.xlane.xlu0 %90
    %v92 = vrcp.pop 16.0
    %v93 = vmul.f32 %v46, %v92
    %v94 = vmul.f32 %v49, %v92
    %v95 = vmul.f32 %v52, %v92
    %v96 = vmul.f32 %v55, %v92
    %v97 = vmul.f32 %v58, %v92
    %v98 = vmul.f32 %v61, %v92
    %v99 = vmul.f32 %v64, %v92
    %v100 = vmul.f32 %v67, %v92
    %v101 = vmul.f32 %v70, %v92
    %v102 = vmul.f32 %v73, %v92
    %v103 = vmul.f32 %v76, %v92
    %v104 = vmul.f32 %v79, %v92
    %v105 = vmul.f32 %v82, %v92
    %v106 = vmul.f32 %v85, %v92
    %v107 = vmul.f32 %v88, %v92
    %v108 = vmul.f32 %v91, %v92
    %v109 = vsub.f32 %v27, %v93
    %v110 = vsub.f32 %v28, %v94
    %v111 = vsub.f32 %v29, %v95
    %v112 = vsub.f32 %v30, %v96
    %v113 = vsub.f32 %v31, %v97
    %v114 = vsub.f32 %v32, %v98
    %v115 = vsub.f32 %v33, %v99
    %v116 = vsub.f32 %v34, %v100
    %v117 = vsub.f32 %v35, %v101
    %v118 = vsub.f32 %v36, %v102
    %v119 = vsub.f32 %v37, %v103
    %v120 = vsub.f32 %v38, %v104
    %v121 = vsub.f32 %v39, %v105
    %v122 = vsub.f32 %v40, %v106
    %v123 = vsub.f32 %v41, %v107
    %v124 = vsub.f32 %v42, %v108
    %v125 = vmul.f32 %v109, %v109
    %v126 = vmul.f32 %v110, %v110
    %v127 = vmul.f32 %v111, %v111
    %v128 = vmul.f32 %v112, %v112
    %v129 = vmul.f32 %v113, %v113
    %v130 = vmul.f32 %v114, %v114
    %v131 = vmul.f32 %v115, %v115
    %v132 = vmul.f32 %v116, %v116
    %v133 = vmul.f32 %v117, %v117
    %v134 = vmul.f32 %v118, %v118
    %v135 = vmul.f32 %v119, %v119
    %v136 = vmul.f32 %v120, %v120
    %v137 = vmul.f32 %v121, %v121
    %v138 = vmul.f32 %v122, %v122
    %v139 = vmul.f32 %v123, %v123
    %v140 = vmul.f32 %v124, %v124
    %v141 = vsel %vm43, %v125, 0.0
    %142 = vadd.xlane.f32.xlu0 %v141
    %v143 = vpop.xlane.xlu0 %142
    %v144 = vsel %vm43, %v126, 0.0
    %145 = vadd.xlane.f32.xlu0 %v144
    %v146 = vpop.xlane.xlu0 %145
    %v147 = vsel %vm43, %v127, 0.0
    %148 = vadd.xlane.f32.xlu0 %v147
    %v149 = vpop.xlane.xlu0 %148
    %v150 = vsel %vm43, %v128, 0.0
    %151 = vadd.xlane.f32.xlu0 %v150
    %v152 = vpop.xlane.xlu0 %151
    %v153 = vsel %vm43, %v129, 0.0
    %154 = vadd.xlane.f32.xlu0 %v153
    %v155 = vpop.xlane.xlu0 %154
    %v156 = vsel %vm43, %v130, 0.0
    %157 = vadd.xlane.f32.xlu0 %v156
    %v158 = vpop.xlane.xlu0 %157
    %v159 = vsel %vm43, %v131, 0.0
    %160 = vadd.xlane.f32.xlu0 %v159
    %v161 = vpop.xlane.xlu0 %160
    %v162 = vsel %vm43, %v132, 0.0
    %163 = vadd.xlane.f32.xlu0 %v162
    %v164 = vpop.xlane.xlu0 %163
    %v165 = vsel %vm43, %v133, 0.0
    %166 = vadd.xlane.f32.xlu0 %v165
    %v167 = vpop.xlane.xlu0 %166
    %v168 = vsel %vm43, %v134, 0.0
    %169 = vadd.xlane.f32.xlu0 %v168
    %v170 = vpop.xlane.xlu0 %169
    %v171 = vsel %vm43, %v135, 0.0
    %172 = vadd.xlane.f32.xlu0 %v171
    %v173 = vpop.xlane.xlu0 %172
    %v174 = vsel %vm43, %v136, 0.0
    %175 = vadd.xlane.f32.xlu0 %v174
    %v176 = vpop.xlane.xlu0 %175
    %v177 = vsel %vm43, %v137, 0.0
    %178 = vadd.xlane.f32.xlu0 %v177
    %v179 = vpop.xlane.xlu0 %178
    %v180 = vsel %vm43, %v138, 0.0
    %181 = vadd.xlane.f32.xlu0 %v180
    %v182 = vpop.xlane.xlu0 %181
    %v183 = vsel %vm43, %v139, 0.0
    %184 = vadd.xlane.f32.xlu0 %v183
    %v185 = vpop.xlane.xlu0 %184
    %v186 = vsel %vm43, %v140, 0.0
    %187 = vadd.xlane.f32.xlu0 %v186
    %v188 = vpop.xlane.xlu0 %187
    %v189 = vmul.f32 %v143, %v92
    %v190 = vmul.f32 %v146, %v92
    %v191 = vmul.f32 %v149, %v92
    %v192 = vmul.f32 %v152, %v92
    %v193 = vmul.f32 %v155, %v92
    %v194 = vmul.f32 %v158, %v92
    %v195 = vmul.f32 %v161, %v92
    %v196 = vmul.f32 %v164, %v92
    %v197 = vmul.f32 %v167, %v92
    %v198 = vmul.f32 %v170, %v92
    %v199 = vmul.f32 %v173, %v92
    %v200 = vmul.f32 %v176, %v92
    %v201 = vmul.f32 %v179, %v92
    %v202 = vmul.f32 %v182, %v92
    %v203 = vmul.f32 %v185, %v92
    %v204 = vmul.f32 %v188, %v92
    %v205 = vadd.f32 %v189, 1e-05
    %v206 = vadd.f32 %v190, 1e-05
    %v207 = vadd.f32 %v191, 1e-05
    %v208 = vadd.f32 %v192, 1e-05
    %v209 = vadd.f32 %v193, 1e-05
    %v210 = vadd.f32 %v194, 1e-05
    %v211 = vadd.f32 %v195, 1e-05
    %v212 = vadd.f32 %v196, 1e-05
    %v213 = vadd.f32 %v197, 1e-05
    %v214 = vadd.f32 %v198, 1e-05
    %v215 = vadd.f32 %v199, 1e-05
    %v216 = vadd.f32 %v200, 1e-05
    %v217 = vadd.f32 %v201, 1e-05
    %v218 = vadd.f32 %v202, 1e-05
    %v219 = vadd.f32 %v203, 1e-05
    %v220 = vadd.f32 %v204, 1e-05
    %v221 = vrsqrt.pop %v205
    %v222 = vrsqrt.pop %v206
    %v223 = vrsqrt.pop %v207
    %v224 = vrsqrt.pop %v208
    %v225 = vrsqrt.pop %v209
    %v226 = vrsqrt.pop %v210
    %v227 = vrsqrt.pop %v211
    %v228 = vrsqrt.pop %v212
    %v229 = vrsqrt.pop %v213
    %v230 = vrsqrt.pop %v214
    %v231 = vrsqrt.pop %v215
    %v232 = vrsqrt.pop %v216
    %v233 = vrsqrt.pop %v217
    %v234 = vrsqrt.pop %v218
    %v235 = vrsqrt.pop %v219
    %v236 = vrsqrt.pop %v220
    %v237 = vmul.f32 %v109, %v221
    %v238 = vmul.f32 %v110, %v222
    %v239 = vmul.f32 %v111, %v223
    %v240 = vmul.f32 %v112, %v224
    %v241 = vmul.f32 %v113, %v225
    %v242 = vmul.f32 %v114, %v226
    %v243 = vmul.f32 %v115, %v227
    %v244 = vmul.f32 %v116, %v228
    %v245 = vmul.f32 %v117, %v229
    %v246 = vmul.f32 %v118, %v230
    %v247 = vmul.f32 %v119, %v231
    %v248 = vmul.f32 %v120, %v232
    %v249 = vmul.f32 %v121, %v233
    %v250 = vmul.f32 %v122, %v234
    %v251 = vmul.f32 %v123, %v235
    %v252 = vmul.f32 %v124, %v236
    %v253 = vld [vmem:[%s1] sm:$0x1]
    %v255 = vlaneseq
    %v256 = vshrl.u32 %v255, 7
    %v257 = vsub.s32 0, %v256
    %v258 = vrot.slane %v253, %v257
    %v260 = vmul.f32 %v237, %v258
    %v261 = vmul.f32 %v238, %v258
    %v262 = vmul.f32 %v239, %v258
    %v263 = vmul.f32 %v240, %v258
    %v264 = vmul.f32 %v241, %v258
    %v265 = vmul.f32 %v242, %v258
    %v266 = vmul.f32 %v243, %v258
    %v267 = vmul.f32 %v244, %v258
    %v268 = vmul.f32 %v245, %v258
    %v269 = vmul.f32 %v246, %v258
    %v270 = vmul.f32 %v247, %v258
    %v271 = vmul.f32 %v248, %v258
    %v272 = vmul.f32 %v249, %v258
    %v273 = vmul.f32 %v250, %v258
    %v274 = vmul.f32 %v251, %v258
    %v275 = vmul.f32 %v252, %v258
    %v276 = vld [vmem:[%s2] sm:$0x1]
    %v278 = vlaneseq
    %v279 = vshrl.u32 %v278, 7
    %v280 = vsub.s32 0, %v279
    %v281 = vrot.slane %v276, %v280
    %v283 = vadd.f32 %v260, %v281
    %v284 = vadd.f32 %v261, %v281
    %v285 = vadd.f32 %v262, %v281
    %v286 = vadd.f32 %v263, %v281
    %v287 = vadd.f32 %v264, %v281
    %v288 = vadd.f32 %v265, %v281
    %v289 = vadd.f32 %v266, %v281
    %v290 = vadd.f32 %v267, %v281
    %v291 = vadd.f32 %v268, %v281
    %v292 = vadd.f32 %v269, %v281
    %v293 = vadd.f32 %v270, %v281
    %v294 = vadd.f32 %v271, %v281
    %v295 = vadd.f32 %v272, %v281
    %v296 = vadd.f32 %v273, %v281
    %v297 = vadd.f32 %v274, %v281
    %v298 = vadd.f32 %v275, %v281
    %v299 = vld [vmem:[%s3] sm:$0xff]
    %v300 = vld [vmem:[%s3 + $0x8] sm:$0xff]
    %v301 = vld [vmem:[%s4] sm:$0x1]
    %v303 = vlaneseq
    %v304 = vshrl.u32 %v303, 7
    %v305 = vsub.s32 0, %v304
    %v306 = vrot.slane %v301, %v305
    %v309 = vsel %vm43, %v283, 0
    %v312 = vsel %vm43, %v284, 0
    %v315 = vsel %vm43, %v285, 0
    %v318 = vsel %vm43, %v286, 0
    %v321 = vsel %vm43, %v287, 0
    %v324 = vsel %vm43, %v288, 0
    %v327 = vsel %vm43, %v289, 0
    %v330 = vsel %vm43, %v290, 0
    %v333 = vsel %vm43, %v291, 0
    %v336 = vsel %vm43, %v292, 0
    %v339 = vsel %vm43, %v293, 0
    %v342 = vsel %vm43, %v294, 0
    %v345 = vsel %vm43, %v295, 0
    %v348 = vsel %vm43, %v296, 0
    %v351 = vsel %vm43, %v297, 0
    %v354 = vsel %vm43, %v298, 0
    %356 = vmatprep.subr.mxu0 0.0
    %357 = vmatpush1.msra.mxu0 0.0
    %358 = vmatprep.subr.mxu0 0.0
    %359 = vmatpush1.msra.mxu0 0.0
    %360 = vmatprep.subr.mxu0 0.0
    %361 = vmatpush1.msra.mxu0 0.0
    %362 = vmatprep.subr.mxu0 0.0
    %363 = vmatpush1.msra.mxu0 0.0
    %364 = vmatprep.subr.mxu0 0.0
    %365 = vmatpush1.msra.mxu0 0.0
    %366 = vmatprep.subr.mxu0 0.0
    %367 = vmatpush1.msra.mxu0 0.0
    %368 = vmatprep.subr.mxu0 0.0
    %369 = vmatpush1.msra.mxu0 0.0
    %370 = vmatprep.subr.mxu0 0.0
    %371 = vmatpush1.msra.mxu0 0.0
    %372 = vmatprep.subr.mxu0 0.0
    %373 = vmatpush1.msra.mxu0 0.0
    %374 = vmatprep.subr.mxu0 0.0
    %375 = vmatpush1.msra.mxu0 0.0
    %376 = vmatprep.subr.mxu0 0.0
    %377 = vmatpush1.msra.mxu0 0.0
    %378 = vmatprep.subr.mxu0 0.0
    %379 = vmatpush1.msra.mxu0 0.0
    %380 = vmatprep.subr.mxu0 0.0
    %381 = vmatpush1.msra.mxu0 0.0
    %382 = vmatprep.subr.mxu0 0.0
    %383 = vmatpush1.msra.mxu0 0.0
    %384 = vmatprep.subr.mxu0 0.0
    %385 = vmatpush1.msra.mxu0 %v300
    %386 = vmatprep.subr.mxu0 0.0
    %387 = vmatpush1.msra.mxu0 %v299
    %388 = vmatprep.subr.mxu0 0.0
    %389 = vmatpush2.msra.mxu0 0.0
    %390 = vmatprep.subr.mxu0 0.0
    %391 = vmatpush2.msra.mxu0 0.0
    %392 = vmatprep.subr.mxu0 0.0
    %393 = vmatpush2.msra.mxu0 0.0
    %394 = vmatprep.subr.mxu0 0.0
    %395 = vmatpush2.msra.mxu0 0.0
    %396 = vmatprep.subr.mxu0 0.0
    %397 = vmatpush2.msra.mxu0 0.0
    %398 = vmatprep.subr.mxu0 0.0
    %399 = vmatpush2.msra.mxu0 0.0
    %400 = vmatprep.subr.mxu0 0.0
    %401 = vmatpush2.msra.mxu0 0.0
    %402 = vmatprep.subr.mxu0 0.0
    %403 = vmatpush2.msra.mxu0 0.0
    %404 = vmatprep.subr.mxu0 0.0
    %405 = vmatpush2.msra.mxu0 0.0
    %406 = vmatprep.subr.mxu0 0.0
    %407 = vmatpush2.msra.mxu0 0.0
    %408 = vmatprep.subr.mxu0 0.0
    %409 = vmatpush2.msra.mxu0 0.0
    %410 = vmatprep.subr.mxu0 0.0
    %411 = vmatpush2.msra.mxu0 0.0
    %412 = vmatprep.subr.mxu0 0.0
    %413 = vmatpush2.msra.mxu0 0.0
    %414 = vmatprep.subr.mxu0 0.0
    %415 = vmatpush2.msra.mxu0 0.0
    %416 = vmatprep.subr.mxu0 0.0
    %417 = vmatpush2.msra.mxu0 0.0
    %418 = vmatprep.subr.mxu0 0.0
    %419 = vmatpush2.msra.mxu0 0.0
    %420 = vmatprep.mubr.f32.mxu0 0.0
    %421 = vmatmul.mubr.f32.gmra.mxu0 %v309
    %v422 = vpop.f32.mrf.mxu0
    %v423 = vadd.f32 %v306, %v422
    %v424 = vpop.f32.mrf.mxu0
    %425 = vmatprep.mubr.f32.mxu0 0.0
    %426 = vmatmul.mubr.f32.gmra.mxu0 %v312
    %v427 = vpop.f32.mrf.mxu0
    %v428 = vadd.f32 %v306, %v427
    %v429 = vpop.f32.mrf.mxu0
    %430 = vmatprep.mubr.f32.mxu0 0.0
    %431 = vmatmul.mubr.f32.gmra.mxu0 %v315
    %v432 = vpop.f32.mrf.mxu0
    %v433 = vadd.f32 %v306, %v432
    %v434 = vpop.f32.mrf.mxu0
    %435 = vmatprep.mubr.f32.mxu0 0.0
    %436 = vmatmul.mubr.f32.gmra.mxu0 %v318
    %v437 = vpop.f32.mrf.mxu0
    %v438 = vadd.f32 %v306, %v437
    %v439 = vpop.f32.mrf.mxu0
    %440 = vmatprep.mubr.f32.mxu0 0.0
    %441 = vmatmul.mubr.f32.gmra.mxu0 %v321
    %v442 = vpop.f32.mrf.mxu0
    %v443 = vadd.f32 %v306, %v442
    %v444 = vpop.f32.mrf.mxu0
    %445 = vmatprep.mubr.f32.mxu0 0.0
    %446 = vmatmul.mubr.f32.gmra.mxu0 %v324
    %v447 = vpop.f32.mrf.mxu0
    %v448 = vadd.f32 %v306, %v447
    %v449 = vpop.f32.mrf.mxu0
    %450 = vmatprep.mubr.f32.mxu0 0.0
    %451 = vmatmul.mubr.f32.gmra.mxu0 %v327
    %v452 = vpop.f32.mrf.mxu0
    %v453 = vadd.f32 %v306, %v452
    %v454 = vpop.f32.mrf.mxu0
    %455 = vmatprep.mubr.f32.mxu0 0.0
    %456 = vmatmul.mubr.f32.gmra.mxu0 %v330
    %v457 = vpop.f32.mrf.mxu0
    %v458 = vadd.f32 %v306, %v457
    %v459 = vpop.f32.mrf.mxu0
    %460 = vmatprep.mubr.f32.mxu0 0.0
    %461 = vmatmul.mubr.f32.gmra.mxu0 %v333
    %v462 = vpop.f32.mrf.mxu0
    %v463 = vadd.f32 %v306, %v462
    %v464 = vpop.f32.mrf.mxu0
    %465 = vmatprep.mubr.f32.mxu0 0.0
    %466 = vmatmul.mubr.f32.gmra.mxu0 %v336
    %v467 = vpop.f32.mrf.mxu0
    %v468 = vadd.f32 %v306, %v467
    %v469 = vpop.f32.mrf.mxu0
    %470 = vmatprep.mubr.f32.mxu0 0.0
    %471 = vmatmul.mubr.f32.gmra.mxu0 %v339
    %v472 = vpop.f32.mrf.mxu0
    %v473 = vadd.f32 %v306, %v472
    %v474 = vpop.f32.mrf.mxu0
    %475 = vmatprep.mubr.f32.mxu0 0.0
    %476 = vmatmul.mubr.f32.gmra.mxu0 %v342
    %v477 = vpop.f32.mrf.mxu0
    %v478 = vadd.f32 %v306, %v477
    %v479 = vpop.f32.mrf.mxu0
    %480 = vmatprep.mubr.f32.mxu0 0.0
    %481 = vmatmul.mubr.f32.gmra.mxu0 %v345
    %v482 = vpop.f32.mrf.mxu0
    %v483 = vadd.f32 %v306, %v482
    %v484 = vpop.f32.mrf.mxu0
    %485 = vmatprep.mubr.f32.mxu0 0.0
    %486 = vmatmul.mubr.f32.gmra.mxu0 %v348
    %v487 = vpop.f32.mrf.mxu0
    %v488 = vadd.f32 %v306, %v487
    %v489 = vpop.f32.mrf.mxu0
    %490 = vmatprep.mubr.f32.mxu0 0.0
    %491 = vmatmul.mubr.f32.gmra.mxu0 %v351
    %v492 = vpop.f32.mrf.mxu0
    %v493 = vadd.f32 %v306, %v492
    %v494 = vpop.f32.mrf.mxu0
    %495 = vmatprep.mubr.f32.mxu0 0.0
    %496 = vmatmul.mubr.f32.gmra.mxu0 %v354
    %v497 = vpop.f32.mrf.mxu0
    %v498 = vadd.f32 %v306, %v497
    %v499 = vpop.f32.mrf.mxu0
    %500 = vdwg.mxu0
    %vm501 = vcmp.gt.f32.partialorder %v423, 0.0
    %vm502 = vcmp.gt.f32.partialorder %v428, 0.0
    %vm503 = vcmp.gt.f32.partialorder %v433, 0.0
    %vm504 = vcmp.gt.f32.partialorder %v438, 0.0
    %vm505 = vcmp.gt.f32.partialorder %v443, 0.0
    %vm506 = vcmp.gt.f32.partialorder %v448, 0.0
    %vm507 = vcmp.gt.f32.partialorder %v453, 0.0
    %vm508 = vcmp.gt.f32.partialorder %v458, 0.0
    %vm509 = vcmp.gt.f32.partialorder %v463, 0.0
    %vm510 = vcmp.gt.f32.partialorder %v468, 0.0
    %vm511 = vcmp.gt.f32.partialorder %v473, 0.0
    %vm512 = vcmp.gt.f32.partialorder %v478, 0.0
    %vm513 = vcmp.gt.f32.partialorder %v483, 0.0
    %vm514 = vcmp.gt.f32.partialorder %v488, 0.0
    %vm515 = vcmp.gt.f32.partialorder %v493, 0.0
    %vm516 = vcmp.gt.f32.partialorder %v498, 0.0
    %v517 = vmin.f32 %v423, 0.0
    %v518 = vmin.f32 %v428, 0.0
    %v519 = vmin.f32 %v433, 0.0
    %v520 = vmin.f32 %v438, 0.0
    %v521 = vmin.f32 %v443, 0.0
    %v522 = vmin.f32 %v448, 0.0
    %v523 = vmin.f32 %v453, 0.0
    %v524 = vmin.f32 %v458, 0.0
    %v525 = vmin.f32 %v463, 0.0
    %v526 = vmin.f32 %v468, 0.0
    %v527 = vmin.f32 %v473, 0.0
    %v528 = vmin.f32 %v478, 0.0
    %v529 = vmin.f32 %v483, 0.0
    %v530 = vmin.f32 %v488, 0.0
    %v531 = vmin.f32 %v493, 0.0
    %v532 = vmin.f32 %v498, 0.0
    %v533 = vmul.f32 %v517, 1.442695
    %v534 = vpow.pop %v533
    %v535 = vmul.f32 %v518, 1.442695
    %v536 = vpow.pop %v535
    %v537 = vmul.f32 %v519, 1.442695
    %v538 = vpow.pop %v537
    %v539 = vmul.f32 %v520, 1.442695
    %v540 = vpow.pop %v539
    %v541 = vmul.f32 %v521, 1.442695
    %v542 = vpow.pop %v541
    %v543 = vmul.f32 %v522, 1.442695
    %v544 = vpow.pop %v543
    %v545 = vmul.f32 %v523, 1.442695
    %v546 = vpow.pop %v545
    %v547 = vmul.f32 %v524, 1.442695
    %v548 = vpow.pop %v547
    %v549 = vmul.f32 %v525, 1.442695
    %v550 = vpow.pop %v549
    %v551 = vmul.f32 %v526, 1.442695
    %v552 = vpow.pop %v551
    %v553 = vmul.f32 %v527, 1.442695
    %v554 = vpow.pop %v553
    %v555 = vmul.f32 %v528, 1.442695
    %v556 = vpow.pop %v555
    %v557 = vmul.f32 %v529, 1.442695
    %v558 = vpow.pop %v557
    %v559 = vmul.f32 %v530, 1.442695
    %v560 = vpow.pop %v559
    %v561 = vmul.f32 %v531, 1.442695
    %v562 = vpow.pop %v561
    %v563 = vmul.f32 %v532, 1.442695
    %v564 = vpow.pop %v563
    %v565 = vsub.f32 %v534, 1.0
    %v566 = vsub.f32 %v536, 1.0
    %v567 = vsub.f32 %v538, 1.0
    %v568 = vsub.f32 %v540, 1.0
    %v569 = vsub.f32 %v542, 1.0
    %v570 = vsub.f32 %v544, 1.0
    %v571 = vsub.f32 %v546, 1.0
    %v572 = vsub.f32 %v548, 1.0
    %v573 = vsub.f32 %v550, 1.0
    %v574 = vsub.f32 %v552, 1.0
    %v575 = vsub.f32 %v554, 1.0
    %v576 = vsub.f32 %v556, 1.0
    %v577 = vsub.f32 %v558, 1.0
    %v578 = vsub.f32 %v560, 1.0
    %v579 = vsub.f32 %v562, 1.0
    %v580 = vsub.f32 %v564, 1.0
    %v581 = vsel %vm501, %v423, %v565
    %v582 = vsel %vm502, %v428, %v566
    %v583 = vsel %vm503, %v433, %v567
    %v584 = vsel %vm504, %v438, %v568
    %v585 = vsel %vm505, %v443, %v569
    %v586 = vsel %vm506, %v448, %v570
    %v587 = vsel %vm507, %v453, %v571
    %v588 = vsel %vm508, %v458, %v572
    %v589 = vsel %vm509, %v463, %v573
    %v590 = vsel %vm510, %v468, %v574
    %v591 = vsel %vm511, %v473, %v575
    %v592 = vsel %vm512, %v478, %v576
    %v593 = vsel %vm513, %v483, %v577
    %v594 = vsel %vm514, %v488, %v578
    %v595 = vsel %vm515, %v493, %v579
    %v596 = vsel %vm516, %v498, %v580
    %v597 = vld [vmem:[%s5] sm:$0xff]
    %v598 = vld [vmem:[%s5 + $0x8] sm:$0xff]
    %v599 = vld [vmem:[%s5 + $0x10] sm:$0xff]
    %v600 = vld [vmem:[%s5 + $0x18] sm:$0xff]
    %v601 = vld [vmem:[%s6] sm:$0x1]
    %v603 = vlaneseq
    %v604 = vshrl.u32 %v603, 7
    %v605 = vsub.s32 0, %v604
    %v606 = vrot.slane %v601, %v605
    %vm608 = vcmask 261120
    %v610 = vsel %vm608, %v581, 0
    %v613 = vsel %vm608, %v582, 0
    %v616 = vsel %vm608, %v583, 0
    %v619 = vsel %vm608, %v584, 0
    %v622 = vsel %vm608, %v585, 0
    %v625 = vsel %vm608, %v586, 0
    %v628 = vsel %vm608, %v587, 0
    %v631 = vsel %vm608, %v588, 0
    %v634 = vsel %vm608, %v589, 0
    %v637 = vsel %vm608, %v590, 0
    %v640 = vsel %vm608, %v591, 0
    %v643 = vsel %vm608, %v592, 0
    %v646 = vsel %vm608, %v593, 0
    %v649 = vsel %vm608, %v594, 0
    %v652 = vsel %vm608, %v595, 0
    %v655 = vsel %vm608, %v596, 0
    %657 = vmatprep.subr.mxu0 0.0
    %658 = vmatpush1.msra.mxu0 0.0
    %659 = vmatprep.subr.mxu0 0.0
    %660 = vmatpush1.msra.mxu0 0.0
    %661 = vmatprep.subr.mxu0 0.0
    %662 = vmatpush1.msra.mxu0 0.0
    %663 = vmatprep.subr.mxu0 0.0
    %664 = vmatpush1.msra.mxu0 0.0
    %665 = vmatprep.subr.mxu0 0.0
    %666 = vmatpush1.msra.mxu0 0.0
    %667 = vmatprep.subr.mxu0 0.0
    %668 = vmatpush1.msra.mxu0 0.0
    %669 = vmatprep.subr.mxu0 0.0
    %670 = vmatpush1.msra.mxu0 0.0
    %671 = vmatprep.subr.mxu0 0.0
    %672 = vmatpush1.msra.mxu0 0.0
    %673 = vmatprep.subr.mxu0 0.0
    %674 = vmatpush1.msra.mxu0 0.0
    %675 = vmatprep.subr.mxu0 0.0
    %676 = vmatpush1.msra.mxu0 0.0
    %677 = vmatprep.subr.mxu0 0.0
    %678 = vmatpush1.msra.mxu0 0.0
    %679 = vmatprep.subr.mxu0 0.0
    %680 = vmatpush1.msra.mxu0 0.0
    %681 = vmatprep.subr.mxu0 0.0
    %682 = vmatpush1.msra.mxu0 %v600
    %683 = vmatprep.subr.mxu0 0.0
    %684 = vmatpush1.msra.mxu0 %v599
    %685 = vmatprep.subr.mxu0 0.0
    %686 = vmatpush1.msra.mxu0 %v598
    %687 = vmatprep.subr.mxu0 0.0
    %688 = vmatpush1.msra.mxu0 %v597
    %689 = vmatprep.subr.mxu0 0.0
    %690 = vmatpush2.msra.mxu0 0.0
    %691 = vmatprep.subr.mxu0 0.0
    %692 = vmatpush2.msra.mxu0 0.0
    %693 = vmatprep.subr.mxu0 0.0
    %694 = vmatpush2.msra.mxu0 0.0
    %695 = vmatprep.subr.mxu0 0.0
    %696 = vmatpush2.msra.mxu0 0.0
    %697 = vmatprep.subr.mxu0 0.0
    %698 = vmatpush2.msra.mxu0 0.0
    %699 = vmatprep.subr.mxu0 0.0
    %700 = vmatpush2.msra.mxu0 0.0
    %701 = vmatprep.subr.mxu0 0.0
    %702 = vmatpush2.msra.mxu0 0.0
    %703 = vmatprep.subr.mxu0 0.0
    %704 = vmatpush2.msra.mxu0 0.0
    %705 = vmatprep.subr.mxu0 0.0
    %706 = vmatpush2.msra.mxu0 0.0
    %707 = vmatprep.subr.mxu0 0.0
    %708 = vmatpush2.msra.mxu0 0.0
    %709 = vmatprep.subr.mxu0 0.0
    %710 = vmatpush2.msra.mxu0 0.0
    %711 = vmatprep.subr.mxu0 0.0
    %712 = vmatpush2.msra.mxu0 0.0
    %713 = vmatprep.subr.mxu0 0.0
    %714 = vmatpush2.msra.mxu0 0.0
    %715 = vmatprep.subr.mxu0 0.0
    %716 = vmatpush2.msra.mxu0 0.0
    %717 = vmatprep.subr.mxu0 0.0
    %718 = vmatpush2.msra.mxu0 0.0
    %719 = vmatprep.subr.mxu0 0.0
    %720 = vmatpush2.msra.mxu0 0.0
    %721 = vmatprep.mubr.f32.mxu0 0.0
    %722 = vmatmul.mubr.f32.gmra.mxu0 %v610
    %v723 = vpop.f32.mrf.mxu0
    %v724 = vadd.f32 %v606, %v723
    %v725 = vpop.f32.mrf.mxu0
    %726 = vmatprep.mubr.f32.mxu0 0.0
    %727 = vmatmul.mubr.f32.gmra.mxu0 %v613
    %v728 = vpop.f32.mrf.mxu0
    %v729 = vadd.f32 %v606, %v728
    %v730 = vpop.f32.mrf.mxu0
    %731 = vmatprep.mubr.f32.mxu0 0.0
    %732 = vmatmul.mubr.f32.gmra.mxu0 %v616
    %v733 = vpop.f32.mrf.mxu0
    %v734 = vadd.f32 %v606, %v733
    %v735 = vpop.f32.mrf.mxu0
    %736 = vmatprep.mubr.f32.mxu0 0.0
    %737 = vmatmul.mubr.f32.gmra.mxu0 %v619
    %v738 = vpop.f32.mrf.mxu0
    %v739 = vadd.f32 %v606, %v738
    %v740 = vpop.f32.mrf.mxu0
    %741 = vmatprep.mubr.f32.mxu0 0.0
    %742 = vmatmul.mubr.f32.gmra.mxu0 %v622
    %v743 = vpop.f32.mrf.mxu0
    %v744 = vadd.f32 %v606, %v743
    %v745 = vpop.f32.mrf.mxu0
    %746 = vmatprep.mubr.f32.mxu0 0.0
    %747 = vmatmul.mubr.f32.gmra.mxu0 %v625
    %v748 = vpop.f32.mrf.mxu0
    %v749 = vadd.f32 %v606, %v748
    %v750 = vpop.f32.mrf.mxu0
    %751 = vmatprep.mubr.f32.mxu0 0.0
    %752 = vmatmul.mubr.f32.gmra.mxu0 %v628
    %v753 = vpop.f32.mrf.mxu0
    %v754 = vadd.f32 %v606, %v753
    %v755 = vpop.f32.mrf.mxu0
    %756 = vmatprep.mubr.f32.mxu0 0.0
    %757 = vmatmul.mubr.f32.gmra.mxu0 %v631
    %v758 = vpop.f32.mrf.mxu0
    %v759 = vadd.f32 %v606, %v758
    %v760 = vpop.f32.mrf.mxu0
    %761 = vmatprep.mubr.f32.mxu0 0.0
    %762 = vmatmul.mubr.f32.gmra.mxu0 %v634
    %v763 = vpop.f32.mrf.mxu0
    %v764 = vadd.f32 %v606, %v763
    %v765 = vpop.f32.mrf.mxu0
    %766 = vmatprep.mubr.f32.mxu0 0.0
    %767 = vmatmul.mubr.f32.gmra.mxu0 %v637
    %v768 = vpop.f32.mrf.mxu0
    %v769 = vadd.f32 %v606, %v768
    %v770 = vpop.f32.mrf.mxu0
    %771 = vmatprep.mubr.f32.mxu0 0.0
    %772 = vmatmul.mubr.f32.gmra.mxu0 %v640
    %v773 = vpop.f32.mrf.mxu0
    %v774 = vadd.f32 %v606, %v773
    %v775 = vpop.f32.mrf.mxu0
    %776 = vmatprep.mubr.f32.mxu0 0.0
    %777 = vmatmul.mubr.f32.gmra.mxu0 %v643
    %v778 = vpop.f32.mrf.mxu0
    %v779 = vadd.f32 %v606, %v778
    %v780 = vpop.f32.mrf.mxu0
    %781 = vmatprep.mubr.f32.mxu0 0.0
    %782 = vmatmul.mubr.f32.gmra.mxu0 %v646
    %v783 = vpop.f32.mrf.mxu0
    %v784 = vadd.f32 %v606, %v783
    %v785 = vpop.f32.mrf.mxu0
    %786 = vmatprep.mubr.f32.mxu0 0.0
    %787 = vmatmul.mubr.f32.gmra.mxu0 %v649
    %v788 = vpop.f32.mrf.mxu0
    %v789 = vadd.f32 %v606, %v788
    %v790 = vpop.f32.mrf.mxu0
    %791 = vmatprep.mubr.f32.mxu0 0.0
    %792 = vmatmul.mubr.f32.gmra.mxu0 %v652
    %v793 = vpop.f32.mrf.mxu0
    %v794 = vadd.f32 %v606, %v793
    %v795 = vpop.f32.mrf.mxu0
    %796 = vmatprep.mubr.f32.mxu0 0.0
    %797 = vmatmul.mubr.f32.gmra.mxu0 %v655
    %v798 = vpop.f32.mrf.mxu0
    %v799 = vadd.f32 %v606, %v798
    %v800 = vpop.f32.mrf.mxu0
    %801 = vdwg.mxu0
    %v802 = vadd.f32 %v724, %v27
    %v803 = vadd.f32 %v729, %v28
    %v804 = vadd.f32 %v734, %v29
    %v805 = vadd.f32 %v739, %v30
    %v806 = vadd.f32 %v744, %v31
    %v807 = vadd.f32 %v749, %v32
    %v808 = vadd.f32 %v754, %v33
    %v809 = vadd.f32 %v759, %v34
    %v810 = vadd.f32 %v764, %v35
    %v811 = vadd.f32 %v769, %v36
    %v812 = vadd.f32 %v774, %v37
    %v813 = vadd.f32 %v779, %v38
    %v814 = vadd.f32 %v784, %v39
    %v815 = vadd.f32 %v789, %v40
    %v816 = vadd.f32 %v794, %v41
    %v817 = vadd.f32 %v799, %v42
    %818 = vst.msk [vmem:[#allocation2] sm:$0xff] %vm43, %v802
    %819 = vst.msk [vmem:[#allocation2 + $0x8] sm:$0xff] %vm43, %v803
    %820 = vst.msk [vmem:[#allocation2 + $0x10] sm:$0xff] %vm43, %v804
    %821 = vst.msk [vmem:[#allocation2 + $0x18] sm:$0xff] %vm43, %v805
    %822 = vst.msk [vmem:[#allocation2 + $0x20] sm:$0xff] %vm43, %v806
    %823 = vst.msk [vmem:[#allocation2 + $0x28] sm:$0xff] %vm43, %v807
    %824 = vst.msk [vmem:[#allocation2 + $0x30] sm:$0xff] %vm43, %v808
    %825 = vst.msk [vmem:[#allocation2 + $0x38] sm:$0xff] %vm43, %v809
    %826 = vst.msk [vmem:[#allocation2 + $0x40] sm:$0xff] %vm43, %v810
    %827 = vst.msk [vmem:[#allocation2 + $0x48] sm:$0xff] %vm43, %v811
    %828 = vst.msk [vmem:[#allocation2 + $0x50] sm:$0xff] %vm43, %v812
    %829 = vst.msk [vmem:[#allocation2 + $0x58] sm:$0xff] %vm43, %v813
    %830 = vst.msk [vmem:[#allocation2 + $0x60] sm:$0xff] %vm43, %v814
    %831 = vst.msk [vmem:[#allocation2 + $0x68] sm:$0xff] %vm43, %v815
    %832 = vst.msk [vmem:[#allocation2 + $0x70] sm:$0xff] %vm43, %v816
    %833 = vst.msk [vmem:[#allocation2 + $0x78] sm:$0xff] %vm43, %v817
    // Predicated region
    $region30: #{egt_forward.7} parent=1 // pred_check
      _
    $region31: #{egt_forward.7} parent=1 // pred_check_branch
      %835 = sbr.rel (0) target = $region33
    $region32: #{egt_forward.7} parent=1 // pred_region
      %s837 = ssub.s32 2048, 2048
      %838 = vsyncadd [#allocation3], %s837
      %s839 = sshll.u32 [#allocation2], 4
      %s840 = int_to_ptr.vmem [resolvable:$true] %s839
      %845 = dma.vmem_to_hbm [thread:$0]  %s840, 2048, %s7, [#allocation3], 128, 128, 8
    $region33: #{egt_forward.7} parent=1 // pred_fallthru
      _
    // Predicated region
    $region34: #{egt_forward.7} parent=1 // pred_check
      _
    $region35: #{egt_forward.7} parent=1 // pred_check_branch
      %847 = sbr.rel (0) target = $region37
    $region36: #{egt_forward.7} parent=1 // pred_region
      %848 = dma.done [#allocation3], 2048
    $region37: #{egt_forward.7} parent=1 // pred_fallthru
      _
    %849 = vsyncpa [#allocation3], 1

// kernel: egt_forward.5
$region0: #{egt_forward.5}
  #allocation0 [shape = 'u32[]', space=smem, size = 0x4, offset = 0x4, fixed_abs, tag = 'smem constant byte address 0x4 - core index']
  #allocation1 [shape = 'u32[144,128]{1,0:T(1,128)}', space=vmem, size = 0x12000, scoped, tag = 'internal scratch']
  %s0 = inlined_call_operand.vmem [shape: f32[2,8,32], index: 0, kind: input, shape index: {}]
  %s1 = inlined_call_operand.vmem [shape: f32[2,8,32], index: 1, kind: input, shape index: {}]
  %s2 = inlined_call_operand.vmem [shape: f32[2,8,32], index: 2, kind: input, shape index: {}]
  %s3 = inlined_call_operand.vmem [shape: f32[2,8,32], index: 3, kind: input, shape index: {}]
  %s4 = inlined_call_operand.vmem [shape: f32[2,8,8,16], index: 4, kind: input, shape index: {}]
  %s5 = inlined_call_operand.vmem [shape: f32[1,16], index: 5, kind: input, shape index: {}]
  %s6 = inlined_call_operand.vmem [shape: f32[1,16], index: 6, kind: input, shape index: {}]
  %s7 = inlined_call_operand.vmem [shape: f32[16,8], index: 7, kind: input, shape index: {}]
  %s8 = inlined_call_operand.vmem [shape: f32[1,8], index: 8, kind: input, shape index: {}]
  %s9 = inlined_call_operand.vmem [shape: f32[32,32], index: 9, kind: input, shape index: {}]
  %s10 = inlined_call_operand.vmem [shape: f32[1,32], index: 10, kind: input, shape index: {}]
  %s11 = inlined_call_operand.vmem [shape: f32[4,16], index: 11, kind: input, shape index: {}]
  %s12 = inlined_call_operand.vmem [shape: f32[1,16], index: 12, kind: input, shape index: {}]
  %s13 = inlined_call_operand.vmem [shape: f32[2,8,32], index: 13, kind: output, shape index: {0}]
  %s14 = inlined_call_operand.vmem [shape: f32[2,8,8,16], index: 14, kind: output, shape index: {1}]
  %15 = xla_tuple %s13, %s14
  %s16 = sld [smem:[#allocation0]]
  $region93: #{egt_forward.5} parent=0
    _
  %s18 = ssub.s32 1, %s16
  %s19 = scalar_select 0, %s18, %s16
  loop: start=0, step=1, limit=4
  $region2: #{egt_forward.5} parent=0 // loop_pre_header
    _
  $region3: #{egt_forward.5} parent=0 // loop_header
    %s21 = sphi 0, %s25
    %p22 = scmp.ge.s32.totalorder %s21, 4
    %s28 = sphi 0, %s40
    %s29 = sphi 0, %s36
    %s30 = sphi 0, %s28
    %s31 = sphi 0, %s29
    %s32 = sphi 0, %s30
    %s33 = sphi 0, %s31
    %s45 = sphi 0, %s47
    %s48 = sphi 0, %s45
    %s49 = sphi 0, %s48
    %s65 = sphi 0, %s49
    %s71 = sphi 0, %s73
    %s74 = sphi 0, %s71
    %s75 = sphi 0, %s74
    %s91 = sphi 0, %s75
    %s97 = sphi 0, %s99
    %s100 = sphi 0, %s97
    %s101 = sphi 0, %s100
    %s117 = sphi 0, %s101
    %s125 = sphi 0, %s127
    %s128 = sphi 0, %s125
    %s129 = sphi 0, %s128
    %s145 = sphi 0, %s129
    %s153 = sphi 0, %s155
    %s156 = sphi 0, %s153
    %s157 = sphi 0, %s156
    %s173 = sphi 0, %s157
    %s177 = sphi 0, %s177
    %s179 = sphi 0, %s177
    %s180 = sphi 0, %s179
    %s194 = sphi 0, %s180
    %s198 = sphi 0, %s198
    %s200 = sphi 0, %s198
    %s201 = sphi 0, %s200
    %s215 = sphi 0, %s201
    %s219 = sphi 0, %s219
    %s221 = sphi 0, %s219
    %s222 = sphi 0, %s221
    %s236 = sphi 0, %s222
    %s240 = sphi 0, %s240
    %s242 = sphi 0, %s240
    %s243 = sphi 0, %s242
    %s257 = sphi 0, %s243
    %s261 = sphi 0, %s261
    %s263 = sphi 0, %s261
    %s264 = sphi 0, %s263
    %s278 = sphi 0, %s264
    %s282 = sphi 0, %s282
    %s284 = sphi 0, %s282
    %s285 = sphi 0, %s284
    %s299 = sphi 0, %s285
    %s303 = sphi 0, %s303
    %s305 = sphi 0, %s303
    %s306 = sphi 0, %s305
    %s320 = sphi 0, %s306
    %s324 = sphi 0, %s324
    %s326 = sphi 0, %s324
    %s327 = sphi 0, %s326
    %s341 = sphi 0, %s327
    %s349 = sphi 0, %s351
    %s352 = sphi 0, %s349
    %s353 = sphi 0, %s352
    %s369 = sphi 0, %s353
    %s377 = sphi 0, %s379
    %s380 = sphi 0, %s377
    %s381 = sphi 0, %s380
    %s397 = sphi 0, %s381
  $region4: #{egt_forward.5} parent=0 // loop_header_branch
    %24 = sbr.rel (%p22) target = $region8
  $region5: #{egt_forward.5} parent=0 // loop_body
    %s26 = ssub.s32 %s21, 1
    %s27 = ssub.s32 %s21, 2
    %s34 = sadd.s32 1, %s29
    %p35 = scmp.ge.s32.totalorder %s34, 1
    %s36 = scalar_select %p35, 0, %s34
    %s37 = sadd.s32 1, %s28
    %s38 = scalar_select %p35, %s37, %s28
    %p39 = scmp.ge.s32.totalorder %s38, 2
    %s40 = scalar_select %p39, 0, %s38
    %s41 = ssub.s32 %s28, %s40
    %s42 = ssub.s32 %s29, %s36
    %s43 = sor.u32 %s41, %s42
    %p44 = scmp.eq.s32.totalorder %s43, 0
    %s46 = sadd.s32 %s45, 1
    %s47 = scalar_select %p44, %s45, %s46
    %p50 = pneg %p44
    %p51 = scmp.eq.s32.totalorder %s21, 1
    %p52 = por %p50, %p51
    %p53 = scmp.ne.s32.totalorder %s45, %s48
    %p54 = scmp.eq.s32.totalorder %s21, 0
    %p55 = por %p53, %p54
    %p56 = scmp.ne.s32.totalorder %s45, %s48
    %p57 = scmp.eq.s32.totalorder %s26, 1
    %p58 = por %p56, %p57
    %p59 = scmp.ne.s32.totalorder %s48, %s49
    %p60 = scmp.eq.s32.totalorder %s26, 0
    %p61 = por %p59, %p60
    %p62 = scmp.ne.s32.totalorder %s48, %s49
    %p63 = scmp.eq.s32.totalorder %s27, 1
    %p64 = por %p62, %p63
    %p66 = scmp.ne.s32.totalorder %s49, %s65
    %p67 = scmp.eq.s32.totalorder %s27, 0
    %p68 = por %p66, %p67
    %s69 = ssub.s32 %s28, %s40
    %p70 = scmp.eq.s32.totalorder %s69, 0
    %s72 = sadd.s32 %s71, 1
    %s73 = scalar_select %p70, %s71, %s72
    %p76 = pneg %p70
    %p77 = scmp.eq.s32.totalorder %s21, 1
    %p78 = por %p76, %p77
    %p79 = scmp.ne.s32.totalorder %s71, %s74
    %p80 = scmp.eq.s32.totalorder %s21, 0
    %p81 = por %p79, %p80
    %p82 = scmp.ne.s32.totalorder %s71, %s74
    %p83 = scmp.eq.s32.totalorder %s26, 1
    %p84 = por %p82, %p83
    %p85 = scmp.ne.s32.totalorder %s74, %s75
    %p86 = scmp.eq.s32.totalorder %s26, 0
    %p87 = por %p85, %p86
    %p88 = scmp.ne.s32.totalorder %s74, %s75
    %p89 = scmp.eq.s32.totalorder %s27, 1
    %p90 = por %p88, %p89
    %p92 = scmp.ne.s32.totalorder %s75, %s91
    %p93 = scmp.eq.s32.totalorder %s27, 0
    %p94 = por %p92, %p93
    %s95 = ssub.s32 %s28, %s40
    %p96 = scmp.eq.s32.totalorder %s95, 0
    %s98 = sadd.s32 %s97, 1
    %s99 = scalar_select %p96, %s97, %s98
    %p102 = pneg %p96
    %p103 = scmp.eq.s32.totalorder %s21, 1
    %p104 = por %p102, %p103
    %p105 = scmp.ne.s32.totalorder %s97, %s100
    %p106 = scmp.eq.s32.totalorder %s21, 0
    %p107 = por %p105, %p106
    %p108 = scmp.ne.s32.totalorder %s97, %s100
    %p109 = scmp.eq.s32.totalorder %s26, 1
    %p110 = por %p108, %p109
    %p111 = scmp.ne.s32.totalorder %s100, %s101
    %p112 = scmp.eq.s32.totalorder %s26, 0
    %p113 = por %p111, %p112
    %p114 = scmp.ne.s32.totalorder %s100, %s101
    %p115 = scmp.eq.s32.totalorder %s27, 1
    %p116 = por %p114, %p115
    %p118 = scmp.ne.s32.totalorder %s101, %s117
    %p119 = scmp.eq.s32.totalorder %s27, 0
    %p120 = por %p118, %p119
    %s121 = ssub.s32 %s28, %s40
    %s122 = ssub.s32 %s29, %s36
    %s123 = sor.u32 %s121, %s122
    %p124 = scmp.eq.s32.totalorder %s123, 0
    %s126 = sadd.s32 %s125, 1
    %s127 = scalar_select %p124, %s125, %s126
    %p130 = pneg %p124
    %p131 = scmp.eq.s32.totalorder %s21, 1
    %p132 = por %p130, %p131
    %p133 = scmp.ne.s32.totalorder %s125, %s128
    %p134 = scmp.eq.s32.totalorder %s21, 0
    %p135 = por %p133, %p134
    %p136 = scmp.ne.s32.totalorder %s125, %s128
    %p137 = scmp.eq.s32.totalorder %s26, 1
    %p138 = por %p136, %p137
    %p139 = scmp.ne.s32.totalorder %s128, %s129
    %p140 = scmp.eq.s32.totalorder %s26, 0
    %p141 = por %p139, %p140
    %p142 = scmp.ne.s32.totalorder %s128, %s129
    %p143 = scmp.eq.s32.totalorder %s27, 1
    %p144 = por %p142, %p143
    %p146 = scmp.ne.s32.totalorder %s129, %s145
    %p147 = scmp.eq.s32.totalorder %s27, 0
    %p148 = por %p146, %p147
    %s149 = ssub.s32 %s28, %s40
    %s150 = ssub.s32 %s29, %s36
    %s151 = sor.u32 %s149, %s150
    %p152 = scmp.eq.s32.totalorder %s151, 0
    %s154 = sadd.s32 %s153, 1
    %s155 = scalar_select %p152, %s153, %s154
    %p158 = pneg %p152
    %p159 = scmp.eq.s32.totalorder %s21, 1
    %p160 = por %p158, %p159
    %p161 = scmp.ne.s32.totalorder %s153, %s156
    %p162 = scmp.eq.s32.totalorder %s21, 0
    %p163 = por %p161, %p162
    %p164 = scmp.ne.s32.totalorder %s153, %s156
    %p165 = scmp.eq.s32.totalorder %s26, 1
    %p166 = por %p164, %p165
    %p167 = scmp.ne.s32.totalorder %s156, %s157
    %p168 = scmp.eq.s32.totalorder %s26, 0
    %p169 = por %p167, %p168
    %p170 = scmp.ne.s32.totalorder %s156, %s157
    %p171 = scmp.eq.s32.totalorder %s27, 1
    %p172 = por %p170, %p171
    %p174 = scmp.ne.s32.totalorder %s157, %s173
    %p175 = scmp.eq.s32.totalorder %s27, 0
    %p176 = por %p174, %p175
    %s178 = sadd.s32 %s177, 1
    %p181 = scmp.eq.s32.totalorder %s21, 1
    %p182 = scmp.ne.s32.totalorder %s177, %s179
    %p183 = scmp.eq.s32.totalorder %s21, 0
    %p184 = por %p182, %p183
    %p185 = scmp.ne.s32.totalorder %s177, %s179
    %p186 = scmp.eq.s32.totalorder %s26, 1
    %p187 = por %p185, %p186
    %p188 = scmp.ne.s32.totalorder %s179, %s180
    %p189 = scmp.eq.s32.totalorder %s26, 0
    %p190 = por %p188, %p189
    %p191 = scmp.ne.s32.totalorder %s179, %s180
    %p192 = scmp.eq.s32.totalorder %s27, 1
    %p193 = por %p191, %p192
    %p195 = scmp.ne.s32.totalorder %s180, %s194
    %p196 = scmp.eq.s32.totalorder %s27, 0
    %p197 = por %p195, %p196
    %s199 = sadd.s32 %s198, 1
    %p202 = scmp.eq.s32.totalorder %s21, 1
    %p203 = scmp.ne.s32.totalorder %s198, %s200
    %p204 = scmp.eq.s32.totalorder %s21, 0
    %p205 = por %p203, %p204
    %p206 = scmp.ne.s32.totalorder %s198, %s200
    %p207 = scmp.eq.s32.totalorder %s26, 1
    %p208 = por %p206, %p207
    %p209 = scmp.ne.s32.totalorder %s200, %s201
    %p210 = scmp.eq.s32.totalorder %s26, 0
    %p211 = por %p209, %p210
    %p212 = scmp.ne.s32.totalorder %s200, %s201
    %p213 = scmp.eq.s32.totalorder %s27, 1
    %p214 = por %p212, %p213
    %p216 = scmp.ne.s32.totalorder %s201, %s215
    %p217 = scmp.eq.s32.totalorder %s27, 0
    %p218 = por %p216, %p217
    %s220 = sadd.s32 %s219, 1
    %p223 = scmp.eq.s32.totalorder %s21, 1
    %p224 = scmp.ne.s32.totalorder %s219, %s221
    %p225 = scmp.eq.s32.totalorder %s21, 0
    %p226 = por %p224, %p225
    %p227 = scmp.ne.s32.totalorder %s219, %s221
    %p228 = scmp.eq.s32.totalorder %s26, 1
    %p229 = por %p227, %p228
    %p230 = scmp.ne.s32.totalorder %s221, %s222
    %p231 = scmp.eq.s32.totalorder %s26, 0
    %p232 = por %p230, %p231
    %p233 = scmp.ne.s32.totalorder %s221, %s222
    %p234 = scmp.eq.s32.totalorder %s27, 1
    %p235 = por %p233, %p234
    %p237 = scmp.ne.s32.totalorder %s222, %s236
    %p238 = scmp.eq.s32.totalorder %s27, 0
    %p239 = por %p237, %p238
    %s241 = sadd.s32 %s240, 1
    %p244 = scmp.eq.s32.totalorder %s21, 1
    %p245 = scmp.ne.s32.totalorder %s240, %s242
    %p246 = scmp.eq.s32.totalorder %s21, 0
    %p247 = por %p245, %p246
    %p248 = scmp.ne.s32.totalorder %s240, %s242
    %p249 = scmp.eq.s32.totalorder %s26, 1
    %p250 = por %p248, %p249
    %p251 = scmp.ne.s32.totalorder %s242, %s243
    %p252 = scmp.eq.s32.totalorder %s26, 0
    %p253 = por %p251, %p252
    %p254 = scmp.ne.s32.totalorder %s242, %s243
    %p255 = scmp.eq.s32.totalorder %s27, 1
    %p256 = por %p254, %p255
    %p258 = scmp.ne.s32.totalorder %s243, %s257
    %p259 = scmp.eq.s32.totalorder %s27, 0
    %p260 = por %p258, %p259
    %s262 = sadd.s32 %s261, 1
    %p265 = scmp.eq.s32.totalorder %s21, 1
    %p266 = scmp.ne.s32.totalorder %s261, %s263
    %p267 = scmp.eq.s32.totalorder %s21, 0
    %p268 = por %p266, %p267
    %p269 = scmp.ne.s32.totalorder %s261, %s263
    %p270 = scmp.eq.s32.totalorder %s26, 1
    %p271 = por %p269, %p270
    %p272 = scmp.ne.s32.totalorder %s263, %s264
    %p273 = scmp.eq.s32.totalorder %s26, 0
    %p274 = por %p272, %p273
    %p275 = scmp.ne.s32.totalorder %s263, %s264
    %p276 = scmp.eq.s32.totalorder %s27, 1
    %p277 = por %p275, %p276
    %p279 = scmp.ne.s32.totalorder %s264, %s278
    %p280 = scmp.eq.s32.totalorder %s27, 0
    %p281 = por %p279, %p280
    %s283 = sadd.s32 %s282, 1
    %p286 = scmp.eq.s32.totalorder %s21, 1
    %p287 = scmp.ne.s32.totalorder %s282, %s284
    %p288 = scmp.eq.s32.totalorder %s21, 0
    %p289 = por %p287, %p288
    %p290 = scmp.ne.s32.totalorder %s282, %s284
    %p291 = scmp.eq.s32.totalorder %s26, 1
    %p292 = por %p290, %p291
    %p293 = scmp.ne.s32.totalorder %s284, %s285
    %p294 = scmp.eq.s32.totalorder %s26, 0
    %p295 = por %p293, %p294
    %p296 = scmp.ne.s32.totalorder %s284, %s285
    %p297 = scmp.eq.s32.totalorder %s27, 1
    %p298 = por %p296, %p297
    %p300 = scmp.ne.s32.totalorder %s285, %s299
    %p301 = scmp.eq.s32.totalorder %s27, 0
    %p302 = por %p300, %p301
    %s304 = sadd.s32 %s303, 1
    %p307 = scmp.eq.s32.totalorder %s21, 1
    %p308 = scmp.ne.s32.totalorder %s303, %s305
    %p309 = scmp.eq.s32.totalorder %s21, 0
    %p310 = por %p308, %p309
    %p311 = scmp.ne.s32.totalorder %s303, %s305
    %p312 = scmp.eq.s32.totalorder %s26, 1
    %p313 = por %p311, %p312
    %p314 = scmp.ne.s32.totalorder %s305, %s306
    %p315 = scmp.eq.s32.totalorder %s26, 0
    %p316 = por %p314, %p315
    %p317 = scmp.ne.s32.totalorder %s305, %s306
    %p318 = scmp.eq.s32.totalorder %s27, 1
    %p319 = por %p317, %p318
    %p321 = scmp.ne.s32.totalorder %s306, %s320
    %p322 = scmp.eq.s32.totalorder %s27, 0
    %p323 = por %p321, %p322
    %s325 = sadd.s32 %s324, 1
    %p328 = scmp.eq.s32.totalorder %s21, 1
    %p329 = scmp.ne.s32.totalorder %s324, %s326
    %p330 = scmp.eq.s32.totalorder %s21, 0
    %p331 = por %p329, %p330
    %p332 = scmp.ne.s32.totalorder %s324, %s326
    %p333 = scmp.eq.s32.totalorder %s26, 1
    %p334 = por %p332, %p333
    %p335 = scmp.ne.s32.totalorder %s326, %s327
    %p336 = scmp.eq.s32.totalorder %s26, 0
    %p337 = por %p335, %p336
    %p338 = scmp.ne.s32.totalorder %s326, %s327
    %p339 = scmp.eq.s32.totalorder %s27, 1
    %p340 = por %p338, %p339
    %p342 = scmp.ne.s32.totalorder %s327, %s341
    %p343 = scmp.eq.s32.totalorder %s27, 0
    %p344 = por %p342, %p343
    %s345 = ssub.s32 %s28, %s40
    %s346 = ssub.s32 %s29, %s36
    %s347 = sor.u32 %s345, %s346
    %p348 = scmp.eq.s32.totalorder %s347, 0
    %s350 = sadd.s32 %s349, 1
    %s351 = scalar_select %p348, %s349, %s350
    %p354 = pneg %p348
    %p355 = scmp.eq.s32.totalorder %s21, 1
    %p356 = por %p354, %p355
    %p357 = scmp.ne.s32.totalorder %s349, %s352
    %p358 = scmp.eq.s32.totalorder %s21, 0
    %p359 = por %p357, %p358
    %p360 = scmp.ne.s32.totalorder %s349, %s352
    %p361 = scmp.eq.s32.totalorder %s26, 1
    %p362 = por %p360, %p361
    %p363 = scmp.ne.s32.totalorder %s352, %s353
    %p364 = scmp.eq.s32.totalorder %s26, 0
    %p365 = por %p363, %p364
    %p366 = scmp.ne.s32.totalorder %s352, %s353
    %p367 = scmp.eq.s32.totalorder %s27, 1
    %p368 = por %p366, %p367
    %p370 = scmp.ne.s32.totalorder %s353, %s369
    %p371 = scmp.eq.s32.totalorder %s27, 0
    %p372 = por %p370, %p371
    %s373 = ssub.s32 %s28, %s40
    %s374 = ssub.s32 %s29, %s36
    %s375 = sor.u32 %s373, %s374
    %p376 = scmp.eq.s32.totalorder %s375, 0
    %s378 = sadd.s32 %s377, 1
    %s379 = scalar_select %p376, %s377, %s378
    %p382 = pneg %p376
    %p383 = scmp.eq.s32.totalorder %s21, 1
    %p384 = por %p382, %p383
    %p385 = scmp.ne.s32.totalorder %s377, %s380
    %p386 = scmp.eq.s32.totalorder %s21, 0
    %p387 = por %p385, %p386
    %p388 = scmp.ne.s32.totalorder %s377, %s380
    %p389 = scmp.eq.s32.totalorder %s26, 1
    %p390 = por %p388, %p389
    %p391 = scmp.ne.s32.totalorder %s380, %s381
    %p392 = scmp.eq.s32.totalorder %s26, 0
    %p393 = por %p391, %p392
    %p394 = scmp.ne.s32.totalorder %s380, %s381
    %p395 = scmp.eq.s32.totalorder %s27, 1
    %p396 = por %p394, %p395
    %p398 = scmp.ne.s32.totalorder %s381, %s397
    %p399 = scmp.eq.s32.totalorder %s27, 0
    %p400 = por %p398, %p399
    %p401 = scmp.le.s32.totalorder 1, %s21
    %p402 = scmp.lt.s32.totalorder %s21, 3
    %p403 = pnand %p401, %p402
    %p404 = pneg %p403
    // Predicated region
    $region9: #{egt_forward.5} parent=5 // pred_check
      _
    $region10: #{egt_forward.5} parent=5 // pred_check_branch
      %406 = sbr.rel (%p403) target = $region12
    $region11: #{egt_forward.5} parent=5 // pred_region
      %s407 = ssub.s32 %s21, 1
      // Predicated region
      $region13: #{egt_forward.5} parent=11 // pred_check
        %p408 = pneg %p190
      $region14: #{egt_forward.5} parent=11 // pred_check_branch
        %410 = sbr.rel (%p408) target = $region16
      $region15: #{egt_forward.5} parent=11 // pred_region
        _
      $region16: #{egt_forward.5} parent=11 // pred_fallthru
        _
      // Predicated region
      $region17: #{egt_forward.5} parent=11 // pred_check
        %p411 = pneg %p211
      $region18: #{egt_forward.5} parent=11 // pred_check_branch
        %413 = sbr.rel (%p411) target = $region20
      $region19: #{egt_forward.5} parent=11 // pred_region
        _
      $region20: #{egt_forward.5} parent=11 // pred_fallthru
        _
      // Predicated region
      $region21: #{egt_forward.5} parent=11 // pred_check
        %p414 = pneg %p232
      $region22: #{egt_forward.5} parent=11 // pred_check_branch
        %416 = sbr.rel (%p414) target = $region24
      $region23: #{egt_forward.5} parent=11 // pred_region
        _
      $region24: #{egt_forward.5} parent=11 // pred_fallthru
        _
      // Predicated region
      $region25: #{egt_forward.5} parent=11 // pred_check
        %p417 = pneg %p253
      $region26: #{egt_forward.5} parent=11 // pred_check_branch
        %419 = sbr.rel (%p417) target = $region28
      $region27: #{egt_forward.5} parent=11 // pred_region
        _
      $region28: #{egt_forward.5} parent=11 // pred_fallthru
        _
      // Predicated region
      $region29: #{egt_forward.5} parent=11 // pred_check
        %p420 = pneg %p274
      $region30: #{egt_forward.5} parent=11 // pred_check_branch
        %422 = sbr.rel (%p420) target = $region32
      $region31: #{egt_forward.5} parent=11 // pred_region
        _
      $region32: #{egt_forward.5} parent=11 // pred_fallthru
        _
      // Predicated region
      $region33: #{egt_forward.5} parent=11 // pred_check
        %p423 = pneg %p295
      $region34: #{egt_forward.5} parent=11 // pred_check_branch
        %425 = sbr.rel (%p423) target = $region36
      $region35: #{egt_forward.5} parent=11 // pred_region
        _
      $region36: #{egt_forward.5} parent=11 // pred_fallthru
        _
      // Predicated region
      $region37: #{egt_forward.5} parent=11 // pred_check
        %p426 = pneg %p316
      $region38: #{egt_forward.5} parent=11 // pred_check_branch
        %428 = sbr.rel (%p426) target = $region40
      $region39: #{egt_forward.5} parent=11 // pred_region
        _
      $region40: #{egt_forward.5} parent=11 // pred_fallthru
        _
      // Predicated region
      $region41: #{egt_forward.5} parent=11 // pred_check
        %p429 = pneg %p337
      $region42: #{egt_forward.5} parent=11 // pred_check_branch
        %431 = sbr.rel (%p429) target = $region44
      $region43: #{egt_forward.5} parent=11 // pred_region
        _
      $region44: #{egt_forward.5} parent=11 // pred_fallthru
        _
    $region12: #{egt_forward.5} parent=5 // pred_fallthru
      _
    %p432 = scmp.lt.s32.totalorder %s21, 2
    // Predicated region
    $region45: #{egt_forward.5} parent=5 // pred_check
      %p433 = pneg %p432
    $region46: #{egt_forward.5} parent=5 // pred_check_branch
      %435 = sbr.rel (%p433) target = $region48
    $region47: #{egt_forward.5} parent=5 // pred_region
      // Predicated region
      $region49: #{egt_forward.5} parent=47 // pred_check
        %p436 = pneg %p55
      $region50: #{egt_forward.5} parent=47 // pred_check_branch
        %438 = sbr.rel (%p436) target = $region52
      $region51: #{egt_forward.5} parent=47 // pred_region
        %p439 = scmp.lt.s32.totalorder %s28, 1
        %s440 = scalar_select %p439, %s28, 1
        %p441 = scmp.lt.s32.totalorder %s29, 0
        %s442 = scalar_select %p441, %s29, 0
        %s443 = sadd.s32 %s442, %s440
        %s444 = smul.addr %s443, 8
        %s445 = scalar_lea.vmem %s0, %s444
      $region52: #{egt_forward.5} parent=47 // pred_fallthru
        _
      // Predicated region
      $region53: #{egt_forward.5} parent=47 // pred_check
        %p446 = pneg %p81
      $region54: #{egt_forward.5} parent=47 // pred_check_branch
        %448 = sbr.rel (%p446) target = $region56
      $region55: #{egt_forward.5} parent=47 // pred_region
        %p449 = scmp.lt.s32.totalorder %s28, 1
        %s450 = scalar_select %p449, %s28, 1
        %s451 = smul.addr %s450, 8
        %s452 = scalar_lea.vmem %s1, %s451
      $region56: #{egt_forward.5} parent=47 // pred_fallthru
        _
      // Predicated region
      $region57: #{egt_forward.5} parent=47 // pred_check
        %p453 = pneg %p107
      $region58: #{egt_forward.5} parent=47 // pred_check_branch
        %455 = sbr.rel (%p453) target = $region60
      $region59: #{egt_forward.5} parent=47 // pred_region
        %p456 = scmp.lt.s32.totalorder %s28, 1
        %s457 = scalar_select %p456, %s28, 1
        %s458 = smul.addr %s457, 8
        %s459 = scalar_lea.vmem %s2, %s458
      $region60: #{egt_forward.5} parent=47 // pred_fallthru
        _
      // Predicated region
      $region61: #{egt_forward.5} parent=47 // pred_check
        %p460 = pneg %p135
      $region62: #{egt_forward.5} parent=47 // pred_check_branch
        %462 = sbr.rel (%p460) target = $region64
      $region63: #{egt_forward.5} parent=47 // pred_region
        %p463 = scmp.lt.s32.totalorder %s28, 1
        %s464 = scalar_select %p463, %s28, 1
        %p465 = scmp.lt.s32.totalorder %s29, 0
        %s466 = scalar_select %p465, %s29, 0
        %s467 = sadd.s32 %s466, %s464
        %s468 = smul.addr %s467, 8
        %s469 = scalar_lea.vmem %s3, %s468
      $region64: #{egt_forward.5} parent=47 // pred_fallthru
        _
      // Predicated region
      $region65: #{egt_forward.5} parent=47 // pred_check
        %p470 = pneg %p163
      $region66: #{egt_forward.5} parent=47 // pred_check_branch
        %472 = sbr.rel (%p470) target = $region68
      $region67: #{egt_forward.5} parent=47 // pred_region
        %s473 = smul.u32 8, %s29
        %p474 = scmp.lt.s32.totalorder %s28, 1
        %s475 = scalar_select %p474, %s28, 1
        %p476 = scmp.lt.s32.totalorder %s473, 7
        %s477 = scalar_select %p476, %s473, 7
        %s478 = smul.addr %s475, 8
        %s479 = sadd.s32 %s477, %s478
        %s480 = smul.addr %s479, 8
        %s481 = scalar_lea.vmem %s4, %s480
        %s482 = smul.u32 8, %s29
      $region68: #{egt_forward.5} parent=47 // pred_fallthru
        _
    $region48: #{egt_forward.5} parent=5 // pred_fallthru
      _
    %p483 = scmp.le.s32.totalorder 1, %s21
    %p484 = scmp.lt.s32.totalorder %s21, 3
    %p485 = pnand %p483, %p484
    %p486 = pneg %p485
    // Predicated region
    $region69: #{egt_forward.5} parent=5 // pred_check
      _
    $region70: #{egt_forward.5} parent=5 // pred_check_branch
      %488 = sbr.rel (%p485) target = $region72
    $region71: #{egt_forward.5} parent=5 // pred_region
      %s489 = ssub.s32 %s21, 1
      %p490 = scmp.lt.s32.totalorder %s30, 1
      %s491 = scalar_select %p490, %s30, 1
      %p492 = scmp.lt.s32.totalorder %s31, 0
      %s493 = scalar_select %p492, %s31, 0
      %s494 = sadd.s32 %s493, %s491
      %s495 = smul.addr %s494, 8
      %s496 = scalar_lea.vmem %s0, %s495
      %p497 = pneg %p61
      %p498 = pneg %p58
      %p499 = scmp.lt.s32.totalorder %s30, 1
      %s500 = scalar_select %p499, %s30, 1
      %s501 = smul.addr %s500, 8
      %s502 = scalar_lea.vmem %s1, %s501
      %p503 = pneg %p87
      %p504 = pneg %p84
      %p505 = scmp.lt.s32.totalorder %s30, 1
      %s506 = scalar_select %p505, %s30, 1
      %s507 = smul.addr %s506, 8
      %s508 = scalar_lea.vmem %s2, %s507
      %p509 = pneg %p113
      %p510 = pneg %p110
      %p511 = scmp.lt.s32.totalorder %s30, 1
      %s512 = scalar_select %p511, %s30, 1
      %p513 = scmp.lt.s32.totalorder %s31, 0
      %s514 = scalar_select %p513, %s31, 0
      %s515 = sadd.s32 %s514, %s512
      %s516 = smul.addr %s515, 8
      %s517 = scalar_lea.vmem %s3, %s516
      %p518 = pneg %p141
      %p519 = pneg %p138
      %s520 = smul.u32 8, %s31
      %p521 = scmp.lt.s32.totalorder %s30, 1
      %s522 = scalar_select %p521, %s30, 1
      %p523 = scmp.lt.s32.totalorder %s520, 7
      %s524 = scalar_select %p523, %s520, 7
      %s525 = smul.addr %s522, 8
      %s526 = sadd.s32 %s524, %s525
      %s527 = smul.addr %s526, 8
      %s528 = scalar_lea.vmem %s4, %s527
      %p529 = pneg %p169
      %p530 = pneg %p166
      %p531 = pneg %p190
      %p532 = pneg %p187
      %p533 = pneg %p211
      %p534 = pneg %p208
      %p535 = pneg %p232
      %p536 = pneg %p229
      %p537 = pneg %p253
      %p538 = pneg %p250
      %p539 = pneg %p274
      %p540 = pneg %p271
      %p541 = pneg %p295
      %p542 = pneg %p292
      %p543 = pneg %p316
      %p544 = pneg %p313
      %p545 = pneg %p337
      %p546 = pneg %p334
      %p547 = pneg %p365
      %p548 = pneg %p362
      %p549 = scmp.lt.s32.totalorder %s30, 1
      %s550 = scalar_select %p549, %s30, 1
      %p551 = scmp.lt.s32.totalorder %s31, 0
      %s552 = scalar_select %p551, %s31, 0
      %s553 = sadd.s32 %s552, %s550
      %s554 = smul.addr %s553, 8
      %s555 = scalar_lea.vmem %s13, %s554
      %p556 = pneg %p393
      %p557 = pneg %p390
      %s558 = smul.u32 8, %s31
      %p559 = scmp.lt.s32.totalorder %s30, 1
      %s560 = scalar_select %p559, %s30, 1
      %p561 = scmp.lt.s32.totalorder %s558, 7
      %s562 = scalar_select %p561, %s558, 7
      %s563 = smul.addr %s560, 8
      %s564 = sadd.s32 %s562, %s563
      %s565 = smul.addr %s564, 8
      %s566 = scalar_lea.vmem %s14, %s565
      %p567 = scmp.lt.s32.totalorder %s30, 1
      %s568 = scalar_select %p567, %s30, 1
      %p569 = scmp.lt.s32.totalorder %s31, 0
      %s570 = scalar_select %p569, %s31, 0
      %s571 = sadd.s32 %s570, %s568
      %s572 = smul.addr %s571, 8
      %s573 = scalar_lea.vmem %s0, %s572
      %p574 = scmp.lt.s32.totalorder %s30, 1
      %s575 = scalar_select %p574, %s30, 1
      %s576 = smul.addr %s575, 8
      %s577 = scalar_lea.vmem %s1, %s576
      %p578 = scmp.lt.s32.totalorder %s30, 1
      %s579 = scalar_select %p578, %s30, 1
      %s580 = smul.addr %s579, 8
      %s581 = scalar_lea.vmem %s2, %s580
      %p582 = scmp.lt.s32.totalorder %s30, 1
      %s583 = scalar_select %p582, %s30, 1
      %p584 = scmp.lt.s32.totalorder %s31, 0
      %s585 = scalar_select %p584, %s31, 0
      %s586 = sadd.s32 %s585, %s583
      %s587 = smul.addr %s586, 8
      %s588 = scalar_lea.vmem %s3, %s587
      %s589 = smul.u32 8, %s31
      %p590 = scmp.lt.s32.totalorder %s30, 1
      %s591 = scalar_select %p590, %s30, 1
      %p592 = scmp.lt.s32.totalorder %s589, 7
      %s593 = scalar_select %p592, %s589, 7
      %s594 = smul.addr %s591, 8
      %s595 = sadd.s32 %s593, %s594
      %s596 = smul.addr %s595, 8
      %s597 = scalar_lea.vmem %s4, %s596
      %s598 = smul.u32 8, %s31
      %p599 = scmp.lt.s32.totalorder %s30, 1
      %s600 = scalar_select %p599, %s30, 1
      %p601 = scmp.lt.s32.totalorder %s31, 0
      %s602 = scalar_select %p601, %s31, 0
      %s603 = sadd.s32 %s602, %s600
      %s604 = smul.addr %s603, 8
      %s605 = scalar_lea.vmem %s13, %s604
      %s606 = smul.u32 8, %s31
      %p607 = scmp.lt.s32.totalorder %s30, 1
      %s608 = scalar_select %p607, %s30, 1
      %p609 = scmp.lt.s32.totalorder %s606, 7
      %s610 = scalar_select %p609, %s606, 7
      %s611 = smul.addr %s608, 8
      %s612 = sadd.s32 %s610, %s611
      %s613 = smul.addr %s612, 8
      %s614 = scalar_lea.vmem %s14, %s613
      %s615 = smul.u32 8, %s31
      %v617 = vld [vmem:[%s597] sm:$0xff]
      %v618 = vld [vmem:[%s597 + $0x8] sm:$0xff]
      %v619 = vld [vmem:[%s597 + $0x10] sm:$0xff]
      %v620 = vld [vmem:[%s597 + $0x18] sm:$0xff]
      %v621 = vld [vmem:[%s597 + $0x20] sm:$0xff]
      %v622 = vld [vmem:[%s597 + $0x28] sm:$0xff]
      %v623 = vld [vmem:[%s597 + $0x30] sm:$0xff]
      %v624 = vld [vmem:[%s597 + $0x38] sm:$0xff]
      %vm625 = vcmask 130048
      %v626 = vsel %vm625, %v617, 0.0
      %627 = vadd.xlane.f32.xlu0 %v626
      %v628 = vpop.xlane.xlu0 %627
      %v629 = vsel %vm625, %v618, 0.0
      %630 = vadd.xlane.f32.xlu0 %v629
      %v631 = vpop.xlane.xlu0 %630
      %v632 = vsel %vm625, %v619, 0.0
      %633 = vadd.xlane.f32.xlu0 %v632
      %v634 = vpop.xlane.xlu0 %633
      %v635 = vsel %vm625, %v620, 0.0
      %636 = vadd.xlane.f32.xlu0 %v635
      %v637 = vpop.xlane.xlu0 %636
      %v638 = vsel %vm625, %v621, 0.0
      %639 = vadd.xlane.f32.xlu0 %v638
      %v640 = vpop.xlane.xlu0 %639
      %v641 = vsel %vm625, %v622, 0.0
      %642 = vadd.xlane.f32.xlu0 %v641
      %v643 = vpop.xlane.xlu0 %642
      %v644 = vsel %vm625, %v623, 0.0
      %645 = vadd.xlane.f32.xlu0 %v644
      %v646 = vpop.xlane.xlu0 %645
      %v647 = vsel %vm625, %v624, 0.0
      %648 = vadd.xlane.f32.xlu0 %v647
      %v649 = vpop.xlane.xlu0 %648
      %v650 = vrcp.pop 16.0
      %v651 = vmul.f32 %v628, %v650
      %v652 = vmul.f32 %v631, %v650
      %v653 = vmul.f32 %v634, %v650
      %v654 = vmul.f32 %v637, %v650
      %v655 = vmul.f32 %v640, %v650
      %v656 = vmul.f32 %v643, %v650
      %v657 = vmul.f32 %v646, %v650
      %v658 = vmul.f32 %v649, %v650
      %v659 = vsub.f32 %v617, %v651
      %v660 = vsub.f32 %v618, %v652
      %v661 = vsub.f32 %v619, %v653
      %v662 = vsub.f32 %v620, %v654
      %v663 = vsub.f32 %v621, %v655
      %v664 = vsub.f32 %v622, %v656
      %v665 = vsub.f32 %v623, %v657
      %v666 = vsub.f32 %v624, %v658
      %v667 = vmul.f32 %v659, %v659
      %v668 = vmul.f32 %v660, %v660
      %v669 = vmul.f32 %v661, %v661
      %v670 = vmul.f32 %v662, %v662
      %v671 = vmul.f32 %v663, %v663
      %v672 = vmul.f32 %v664, %v664
      %v673 = vmul.f32 %v665, %v665
      %v674 = vmul.f32 %v666, %v666
      %v675 = vsel %vm625, %v667, 0.0
      %676 = vadd.xlane.f32.xlu0 %v675
      %v677 = vpop.xlane.xlu0 %676
      %v678 = vsel %vm625, %v668, 0.0
      %679 = vadd.xlane.f32.xlu0 %v678
      %v680 = vpop.xlane.xlu0 %679
      %v681 = vsel %vm625, %v669, 0.0
      %682 = vadd.xlane.f32.xlu0 %v681
      %v683 = vpop.xlane.xlu0 %682
      %v684 = vsel %vm625, %v670, 0.0
      %685 = vadd.xlane.f32.xlu0 %v684
      %v686 = vpop.xlane.xlu0 %685
      %v687 = vsel %vm625, %v671, 0.0
      %688 = vadd.xlane.f32.xlu0 %v687
      %v689 = vpop.xlane.xlu0 %688
      %v690 = vsel %vm625, %v672, 0.0
      %691 = vadd.xlane.f32.xlu0 %v690
      %v692 = vpop.xlane.xlu0 %691
      %v693 = vsel %vm625, %v673, 0.0
      %694 = vadd.xlane.f32.xlu0 %v693
      %v695 = vpop.xlane.xlu0 %694
      %v696 = vsel %vm625, %v674, 0.0
      %697 = vadd.xlane.f32.xlu0 %v696
      %v698 = vpop.xlane.xlu0 %697
      %v699 = vmul.f32 %v677, %v650
      %v700 = vmul.f32 %v680, %v650
      %v701 = vmul.f32 %v683, %v650
      %v702 = vmul.f32 %v686, %v650
      %v703 = vmul.f32 %v689, %v650
      %v704 = vmul.f32 %v692, %v650
      %v705 = vmul.f32 %v695, %v650
      %v706 = vmul.f32 %v698, %v650
      %v707 = vadd.f32 %v699, 1e-05
      %v708 = vadd.f32 %v700, 1e-05
      %v709 = vadd.f32 %v701, 1e-05
      %v710 = vadd.f32 %v702, 1e-05
      %v711 = vadd.f32 %v703, 1e-05
      %v712 = vadd.f32 %v704, 1e-05
      %v713 = vadd.f32 %v705, 1e-05
      %v714 = vadd.f32 %v706, 1e-05
      %v715 = vrsqrt.pop %v707
      %v716 = vrsqrt.pop %v708
      %v717 = vrsqrt.pop %v709
      %v718 = vrsqrt.pop %v710
      %v719 = vrsqrt.pop %v711
      %v720 = vrsqrt.pop %v712
      %v721 = vrsqrt.pop %v713
      %v722 = vrsqrt.pop %v714
      %v723 = vmul.f32 %v659, %v715
      %v724 = vmul.f32 %v660, %v716
      %v725 = vmul.f32 %v661, %v717
      %v726 = vmul.f32 %v662, %v718
      %v727 = vmul.f32 %v663, %v719
      %v728 = vmul.f32 %v664, %v720
      %v729 = vmul.f32 %v665, %v721
      %v730 = vmul.f32 %v666, %v722
      %v731 = vld [vmem:[%s5] sm:$0x1]
      %v733 = vlaneseq
      %v734 = vshrl.u32 %v733, 7
      %v735 = vsub.s32 0, %v734
      %v736 = vrot.slane %v731, %v735
      %v738 = vmul.f32 %v723, %v736
      %v739 = vmul.f32 %v724, %v736
      %v740 = vmul.f32 %v725, %v736
      %v741 = vmul.f32 %v726, %v736
      %v742 = vmul.f32 %v727, %v736
      %v743 = vmul.f32 %v728, %v736
      %v744 = vmul.f32 %v729, %v736
      %v745 = vmul.f32 %v730, %v736
      %v746 = vld [vmem:[%s6] sm:$0x1]
      %v748 = vlaneseq
      %v749 = vshrl.u32 %v748, 7
      %v750 = vsub.s32 0, %v749
      %v751 = vrot.slane %v746, %v750
      %v753 = vadd.f32 %v738, %v751
      %v754 = vadd.f32 %v739, %v751
      %v755 = vadd.f32 %v740, %v751
      %v756 = vadd.f32 %v741, %v751
      %v757 = vadd.f32 %v742, %v751
      %v758 = vadd.f32 %v743, %v751
      %v759 = vadd.f32 %v744, %v751
      %v760 = vadd.f32 %v745, %v751
      %v761 = vld [vmem:[%s7] sm:$0xff]
      %v762 = vld [vmem:[%s7 + $0x8] sm:$0xff]
      %v763 = vld [vmem:[%s8] sm:$0x1]
      %v765 = vlaneseq
      %v766 = vshrl.u32 %v765, 7
      %v767 = vsub.s32 0, %v766
      %v768 = vrot.slane %v763, %v767
      %v771 = vsel %vm625, %v753, 0
      %v774 = vsel %vm625, %v754, 0
      %v777 = vsel %vm625, %v755, 0
      %v780 = vsel %vm625, %v756, 0
      %v783 = vsel %vm625, %v757, 0
      %v786 = vsel %vm625, %v758, 0
      %v789 = vsel %vm625, %v759, 0
      %v792 = vsel %vm625, %v760, 0
      %794 = vmatprep.subr.mxu0 0.0
      %795 = vmatpush1.msra.mxu0 0.0
      %796 = vmatprep.subr.mxu0 0.0
      %797 = vmatpush1.msra.mxu0 0.0
      %798 = vmatprep.subr.mxu0 0.0
      %799 = vmatpush1.msra.mxu0 0.0
      %800 = vmatprep.subr.mxu0 0.0
      %801 = vmatpush1.msra.mxu0 0.0
      %802 = vmatprep.subr.mxu0 0.0
      %803 = vmatpush1.msra.mxu0 0.0
      %804 = vmatprep.subr.mxu0 0.0
      %805 = vmatpush1.msra.mxu0 0.0
      %806 = vmatprep.subr.mxu0 0.0
      %807 = vmatpush1.msra.mxu0 0.0
      %808 = vmatprep.subr.mxu0 0.0
      %809 = vmatpush1.msra.mxu0 0.0
      %810 = vmatprep.subr.mxu0 0.0
      %811 = vmatpush1.msra.mxu0 0.0
      %812 = vmatprep.subr.mxu0 0.0
      %813 = vmatpush1.msra.mxu0 0.0
      %814 = vmatprep.subr.mxu0 0.0
      %815 = vmatpush1.msra.mxu0 0.0
      %816 = vmatprep.subr.mxu0 0.0
      %817 = vmatpush1.msra.mxu0 0.0
      %818 = vmatprep.subr.mxu0 0.0
      %819 = vmatpush1.msra.mxu0 0.0
      %820 = vmatprep.subr.mxu0 0.0
      %821 = vmatpush1.msra.mxu0 0.0
      %822 = vmatprep.subr.mxu0 0.0
      %823 = vmatpush1.msra.mxu0 %v762
      %824 = vmatprep.subr.mxu0 0.0
      %825 = vmatpush1.msra.mxu0 %v761
      %826 = vmatprep.subr.mxu0 0.0
      %827 = vmatpush2.msra.mxu0 0.0
      %828 = vmatprep.subr.mxu0 0.0
      %829 = vmatpush2.msra.mxu0 0.0
      %830 = vmatprep.subr.mxu0 0.0
      %831 = vmatpush2.msra.mxu0 0.0
      %832 = vmatprep.subr.mxu0 0.0
      %833 = vmatpush2.msra.mxu0 0.0
      %834 = vmatprep.subr.mxu0 0.0
      %835 = vmatpush2.msra.mxu0 0.0
      %836 = vmatprep.subr.mxu0 0.0
      %837 = vmatpush2.msra.mxu0 0.0
      %838 = vmatprep.subr.mxu0 0.0
      %839 = vmatpush2.msra.mxu0 0.0
      %840 = vmatprep.subr.mxu0 0.0
      %841 = vmatpush2.msra.mxu0 0.0
      %842 = vmatprep.subr.mxu0 0.0
      %843 = vmatpush2.msra.mxu0 0.0
      %844 = vmatprep.subr.mxu0 0.0
      %845 = vmatpush2.msra.mxu0 0.0
      %846 = vmatprep.subr.mxu0 0.0
      %847 = vmatpush2.msra.mxu0 0.0
      %848 = vmatprep.subr.mxu0 0.0
      %849 = vmatpush2.msra.mxu0 0.0
      %850 = vmatprep.subr.mxu0 0.0
      %851 = vmatpush2.msra.mxu0 0.0
      %852 = vmatprep.subr.mxu0 0.0
      %853 = vmatpush2.msra.mxu0 0.0
      %854 = vmatprep.subr.mxu0 0.0
      %855 = vmatpush2.msra.mxu0 0.0
      %856 = vmatprep.subr.mxu0 0.0
      %857 = vmatpush2.msra.mxu0 0.0
      %858 = vmatprep.mubr.f32.mxu0 0.0
      %859 = vmatmul.mubr.f32.gmra.mxu0 %v771
      %v860 = vpop.f32.mrf.mxu0
      %v861 = vadd.f32 %v768, %v860
      %v862 = vpop.f32.mrf.mxu0
      %863 = vmatprep.mubr.f32.mxu0 0.0
      %864 = vmatmul.mubr.f32.gmra.mxu0 %v774
      %v865 = vpop.f32.mrf.mxu0
      %v866 = vadd.f32 %v768, %v865
      %v867 = vpop.f32.mrf.mxu0
      %868 = vmatprep.mubr.f32.mxu0 0.0
      %869 = vmatmul.mubr.f32.gmra.mxu0 %v777
      %v870 = vpop.f32.mrf.mxu0
      %v871 = vadd.f32 %v768, %v870
      %v872 = vpop.f32.mrf.mxu0
      %873 = vmatprep.mubr.f32.mxu0 0.0
      %874 = vmatmul.mubr.f32.gmra.mxu0 %v780
      %v875 = vpop.f32.mrf.mxu0
      %v876 = vadd.f32 %v768, %v875
      %v877 = vpop.f32.mrf.mxu0
      %878 = vmatprep.mubr.f32.mxu0 0.0
      %879 = vmatmul.mubr.f32.gmra.mxu0 %v783
      %v880 = vpop.f32.mrf.mxu0
      %v881 = vadd.f32 %v768, %v880
      %v882 = vpop.f32.mrf.mxu0
      %883 = vmatprep.mubr.f32.mxu0 0.0
      %884 = vmatmul.mubr.f32.gmra.mxu0 %v786
      %v885 = vpop.f32.mrf.mxu0
      %v886 = vadd.f32 %v768, %v885
      %v887 = vpop.f32.mrf.mxu0
      %888 = vmatprep.mubr.f32.mxu0 0.0
      %889 = vmatmul.mubr.f32.gmra.mxu0 %v789
      %v890 = vpop.f32.mrf.mxu0
      %v891 = vadd.f32 %v768, %v890
      %v892 = vpop.f32.mrf.mxu0
      %893 = vmatprep.mubr.f32.mxu0 0.0
      %894 = vmatmul.mubr.f32.gmra.mxu0 %v792
      %v895 = vpop.f32.mrf.mxu0
      %v896 = vadd.f32 %v768, %v895
      %v897 = vpop.f32.mrf.mxu0
      %898 = vdwg.mxu0
      %v899 = vld [vmem:[%s573] sm:$0xff]
      %v900 = vpack.c.bf16 %v899, %v899
      %v901 = vld [vmem:[%s577] sm:$0xff]
      %v902 = vpack.c.bf16 %v901, %v901
      %v903 = vld [vmem:[%s581] sm:$0xff]
      %v904 = vpack.c.bf16 %v903, %v903
      %vm905 = vcmask 64512
      %v907 = vsel %vm905, %v900, 0
      %v910 = vsel %vm905, %v902, 0
      %912 = vmatprep.subr.bf16.mxu0 0
      %913 = vmatpush1.bf16.xpose.msra.mxu0 0
      %914 = vmatprep.subr.bf16.mxu0 0
      %915 = vmatpush1.bf16.xpose.msra.mxu0 0
      %916 = vmatprep.subr.bf16.mxu0 0
      %917 = vmatpush1.bf16.xpose.msra.mxu0 0
      %918 = vmatprep.subr.bf16.mxu0 0
      %919 = vmatpush1.bf16.xpose.msra.mxu0 0
      %920 = vmatprep.subr.bf16.mxu0 0
      %921 = vmatpush1.bf16.xpose.msra.mxu0 0
      %922 = vmatprep.subr.bf16.mxu0 0
      %923 = vmatpush1.bf16.xpose.msra.mxu0 0
      %924 = vmatprep.subr.bf16.mxu0 0
      %925 = vmatpush1.bf16.xpose.msra.mxu0 0
      %926 = vmatprep.subr.bf16.mxu0 0
      %927 = vmatpush1.bf16.xpose.msra.mxu0 %v910
      %928 = vmatprep.subr.bf16.mxu0 0
      %929 = vmatpush2.bf16.xpose.msra.mxu0 0
      %930 = vmatprep.subr.bf16.mxu0 0
      %931 = vmatpush2.bf16.xpose.msra.mxu0 0
      %932 = vmatprep.subr.bf16.mxu0 0
      %933 = vmatpush2.bf16.xpose.msra.mxu0 0
      %934 = vmatprep.subr.bf16.mxu0 0
      %935 = vmatpush2.bf16.xpose.msra.mxu0 0
      %936 = vmatprep.subr.bf16.mxu0 0
      %937 = vmatpush2.bf16.xpose.msra.mxu0 0
      %938 = vmatprep.subr.bf16.mxu0 0
      %939 = vmatpush2.bf16.xpose.msra.mxu0 0
      %940 = vmatprep.subr.bf16.mxu0 0
      %941 = vmatpush2.bf16.xpose.msra.mxu0 0
      %942 = vmatprep.subr.bf16.mxu0 0
      %943 = vmatpush2.bf16.xpose.msra.mxu0 0
      %944 = vmatprep.mubr.bf16.mxu0 0
      %945 = vmatmul.mubr.bf16.gmra.mxu0 %v907
      %v946 = vpop.f32.mrf.mxu0
      %v947 = vadd.f32 0.0, %v946
      %v948 = vpop.f32.mrf.mxu0
      %v949 = vpop.f32.mrf.mxu0
      %v950 = vpop.f32.mrf.mxu0
      %951 = vdwg.mxu0
      %v952 = vmax.f32 %v947, -5.0
      %v953 = vmin.f32 %v952, 5.0
      %962 = vset.pattern.permute.xlu0 0
      %963 = vperm.xlu0 %962, %v861
      %v964 = vpop.permute.xlu0 %963
      %965 = vset.pattern.permute.xlu0 0
      %966 = vperm.xlu0 %965, %v866
      %v967 = vpop.permute.xlu0 %966
      %968 = vset.pattern.permute.xlu0 0
      %969 = vperm.xlu0 %968, %v871
      %v970 = vpop.permute.xlu0 %969
      %971 = vset.pattern.permute.xlu0 0
      %972 = vperm.xlu0 %971, %v876
      %v973 = vpop.permute.xlu0 %972
      %974 = vset.pattern.permute.xlu0 0
      %975 = vperm.xlu0 %974, %v881
      %v976 = vpop.permute.xlu0 %975
      %977 = vset.pattern.permute.xlu0 0
      %978 = vperm.xlu0 %977, %v886
      %v979 = vpop.permute.xlu0 %978
      %980 = vset.pattern.permute.xlu0 0
      %981 = vperm.xlu0 %980, %v891
      %v982 = vpop.permute.xlu0 %981
      %983 = vset.pattern.permute.xlu0 0
      %984 = vperm.xlu0 %983, %v896
      %v985 = vpop.permute.xlu0 %984
      %v986 = vlaneseq
      %v987 = vand.u32 %v986, 127
      %v988 = vlaneseq
      %v989 = vshrl.u32 %v988, 7
      %v990 = vsub.s32 %v987, %v989
      %v991 = vrot.slane %v964, %v990
      %v992 = vlaneseq
      %v993 = vshrl.u32 %v992, 7
      %v994 = vsub.s32 %v987, %v993
      %v995 = vrot.slane %v967, %v994
      %v996 = vlaneseq
      %v997 = vshrl.u32 %v996, 7
      %v998 = vsub.s32 %v987, %v997
      %v999 = vrot.slane %v970, %v998
      %v1000 = vlaneseq
      %v1001 = vshrl.u32 %v1000, 7
      %v1002 = vsub.s32 %v987, %v1001
      %v1003 = vrot.slane %v973, %v1002
      %v1004 = vlaneseq
      %v1005 = vshrl.u32 %v1004, 7
      %v1006 = vsub.s32 %v987, %v1005
      %v1007 = vrot.slane %v976, %v1006
      %v1008 = vlaneseq
      %v1009 = vshrl.u32 %v1008, 7
      %v1010 = vsub.s32 %v987, %v1009
      %v1011 = vrot.slane %v979, %v1010
      %v1012 = vlaneseq
      %v1013 = vshrl.u32 %v1012, 7
      %v1014 = vsub.s32 %v987, %v1013
      %v1015 = vrot.slane %v982, %v1014
      %v1016 = vlaneseq
      %v1017 = vshrl.u32 %v1016, 7
      %v1018 = vsub.s32 %v987, %v1017
      %v1019 = vrot.slane %v985, %v1018
      %vm1020 = vcmask 1041409
      %v1021 = vsel %vm1020, %v995, %v991
      %vm1022 = vcmask 1042434
      %v1023 = vsel %vm1022, %v999, %v1021
      %vm1024 = vcmask 1043459
      %v1025 = vsel %vm1024, %v1003, %v1023
      %vm1026 = vcmask 1044484
      %v1027 = vsel %vm1026, %v1007, %v1025
      %vm1028 = vcmask 1045509
      %v1029 = vsel %vm1028, %v1011, %v1027
      %vm1030 = vcmask 1046534
      %v1031 = vsel %vm1030, %v1015, %v1029
      %vm1032 = vcmask 1047559
      %v1033 = vsel %vm1032, %v1019, %v1031
      %v1035 = vadd.f32 %v953, %v1033
      %v1036 = vsub.f32 0.0, %v861
      %v1037 = vsub.f32 0.0, %v866
      %v1038 = vsub.f32 0.0, %v871
      %v1039 = vsub.f32 0.0, %v876
      %v1040 = vsub.f32 0.0, %v881
      %v1041 = vsub.f32 0.0, %v886
      %v1042 = vsub.f32 0.0, %v891
      %v1043 = vsub.f32 0.0, %v896
      %v1044 = vmul.f32 %v1036, 1.442695
      %v1045 = vpow.pop %v1044
      %v1046 = vmul.f32 %v1037, 1.442695
      %v1047 = vpow.pop %v1046
      %v1048 = vmul.f32 %v1038, 1.442695
      %v1049 = vpow.pop %v1048
      %v1050 = vmul.f32 %v1039, 1.442695
      %v1051 = vpow.pop %v1050
      %v1052 = vmul.f32 %v1040, 1.442695
      %v1053 = vpow.pop %v1052
      %v1054 = vmul.f32 %v1041, 1.442695
      %v1055 = vpow.pop %v1054
      %v1056 = vmul.f32 %v1042, 1.442695
      %v1057 = vpow.pop %v1056
      %v1058 = vmul.f32 %v1043, 1.442695
      %v1059 = vpow.pop %v1058
      %v1060 = vadd.f32 %v1045, 1.0
      %v1061 = vadd.f32 %v1047, 1.0
      %v1062 = vadd.f32 %v1049, 1.0
      %v1063 = vadd.f32 %v1051, 1.0
      %v1064 = vadd.f32 %v1053, 1.0
      %v1065 = vadd.f32 %v1055, 1.0
      %v1066 = vadd.f32 %v1057, 1.0
      %v1067 = vadd.f32 %v1059, 1.0
      %v1068 = vrcp.pop %v1060
      %v1069 = vrcp.pop %v1061
      %v1070 = vrcp.pop %v1062
      %v1071 = vrcp.pop %v1063
      %v1072 = vrcp.pop %v1064
      %v1073 = vrcp.pop %v1065
      %v1074 = vrcp.pop %v1066
      %v1075 = vrcp.pop %v1067
      %v1076 = vsel %vm905, %v1035, -inf
      %1077 = vmax.xlane.f32.xlu0 %v1076
      %v1078 = vpop.xlane.xlu0 %1077
      %v1079 = vsub.f32 %v1035, %v1078
      %v1080 = vmul.f32 %v1079, 1.442695
      %v1081 = vpow.pop %v1080
      %v1082 = vsel %vm905, %v1081, 0.0
      %1083 = vadd.xlane.f32.xlu0 %v1082
      %v1084 = vpop.xlane.xlu0 %1083
      %v1085 = vrcp.pop %v1084
      %v1086 = vmul.f32 %v1081, %v1085
      %1095 = vset.pattern.permute.xlu0 4
      %1096 = vperm.xlu0 %1095, %v1068
      %v1097 = vpop.permute.xlu0 %1096
      %1098 = vset.pattern.permute.xlu0 4
      %1099 = vperm.xlu0 %1098, %v1069
      %v1100 = vpop.permute.xlu0 %1099
      %1101 = vset.pattern.permute.xlu0 4
      %1102 = vperm.xlu0 %1101, %v1070
      %v1103 = vpop.permute.xlu0 %1102
      %1104 = vset.pattern.permute.xlu0 4
      %1105 = vperm.xlu0 %1104, %v1071
      %v1106 = vpop.permute.xlu0 %1105
      %1107 = vset.pattern.permute.xlu0 4
      %1108 = vperm.xlu0 %1107, %v1072
      %v1109 = vpop.permute.xlu0 %1108
      %1110 = vset.pattern.permute.xlu0 4
      %1111 = vperm.xlu0 %1110, %v1073
      %v1112 = vpop.permute.xlu0 %1111
      %1113 = vset.pattern.permute.xlu0 4
      %1114 = vperm.xlu0 %1113, %v1074
      %v1115 = vpop.permute.xlu0 %1114
      %1116 = vset.pattern.permute.xlu0 4
      %1117 = vperm.xlu0 %1116, %v1075
      %v1118 = vpop.permute.xlu0 %1117
      %v1119 = vlaneseq
      %v1120 = vshrl.u32 %v1119, 7
      %v1121 = vsub.s32 %v987, %v1120
      %v1122 = vrot.slane %v1097, %v1121
      %v1123 = vlaneseq
      %v1124 = vshrl.u32 %v1123, 7
      %v1125 = vsub.s32 %v987, %v1124
      %v1126 = vrot.slane %v1100, %v1125
      %v1127 = vlaneseq
      %v1128 = vshrl.u32 %v1127, 7
      %v1129 = vsub.s32 %v987, %v1128
      %v1130 = vrot.slane %v1103, %v1129
      %v1131 = vlaneseq
      %v1132 = vshrl.u32 %v1131, 7
      %v1133 = vsub.s32 %v987, %v1132
      %v1134 = vrot.slane %v1106, %v1133
      %v1135 = vlaneseq
      %v1136 = vshrl.u32 %v1135, 7
      %v1137 = vsub.s32 %v987, %v1136
      %v1138 = vrot.slane %v1109, %v1137
      %v1139 = vlaneseq
      %v1140 = vshrl.u32 %v1139, 7
      %v1141 = vsub.s32 %v987, %v1140
      %v1142 = vrot.slane %v1112, %v1141
      %v1143 = vlaneseq
      %v1144 = vshrl.u32 %v1143, 7
      %v1145 = vsub.s32 %v987, %v1144
      %v1146 = vrot.slane %v1115, %v1145
      %v1147 = vlaneseq
      %v1148 = vshrl.u32 %v1147, 7
      %v1149 = vsub.s32 %v987, %v1148
      %v1150 = vrot.slane %v1118, %v1149
      %v1151 = vsel %vm1020, %v1126, %v1122
      %v1152 = vsel %vm1022, %v1130, %v1151
      %v1153 = vsel %vm1024, %v1134, %v1152
      %v1154 = vsel %vm1026, %v1138, %v1153
      %v1155 = vsel %vm1028, %v1142, %v1154
      %v1156 = vsel %vm1030, %v1146, %v1155
      %v1157 = vsel %vm1032, %v1150, %v1156
      %v1159 = vmul.f32 %v1086, %v1157
      %v1160 = vpack.c.bf16 %v1159, %v1159
      %v1162 = vsel %vm905, %v1160, 0
      %vm1164 = vcmask 1043456
      %v1166 = vsel %vm1164, %v904, 0
      %1168 = vmatprep.subr.bf16.mxu0 0
      %1169 = vmatpush1.bf16.msra.mxu0 0
      %1170 = vmatprep.subr.bf16.mxu0 0
      %1171 = vmatpush1.bf16.msra.mxu0 0
      %1172 = vmatprep.subr.bf16.mxu0 0
      %1173 = vmatpush1.bf16.msra.mxu0 0
      %1174 = vmatprep.subr.bf16.mxu0 0
      %1175 = vmatpush1.bf16.msra.mxu0 0
      %1176 = vmatprep.subr.bf16.mxu0 0
      %1177 = vmatpush1.bf16.msra.mxu0 0
      %1178 = vmatprep.subr.bf16.mxu0 0
      %1179 = vmatpush1.bf16.msra.mxu0 0
      %1180 = vmatprep.subr.bf16.mxu0 0
      %1181 = vmatpush1.bf16.msra.mxu0 0
      %1182 = vmatprep.subr.bf16.mxu0 0
      %1183 = vmatpush1.bf16.msra.mxu0 %v1166
      %1184 = vmatprep.subr.bf16.mxu0 0
      %1185 = vmatpush2.bf16.msra.mxu0 0
      %1186 = vmatprep.subr.bf16.mxu0 0
      %1187 = vmatpush2.bf16.msra.mxu0 0
      %1188 = vmatprep.subr.bf16.mxu0 0
      %1189 = vmatpush2.bf16.msra.mxu0 0
      %1190 = vmatprep.subr.bf16.mxu0 0
      %1191 = vmatpush2.bf16.msra.mxu0 0
      %1192 = vmatprep.subr.bf16.mxu0 0
      %1193 = vmatpush2.bf16.msra.mxu0 0
      %1194 = vmatprep.subr.bf16.mxu0 0
      %1195 = vmatpush2.bf16.msra.mxu0 0
      %1196 = vmatprep.subr.bf16.mxu0 0
      %1197 = vmatpush2.bf16.msra.mxu0 0
      %1198 = vmatprep.subr.bf16.mxu0 0
      %1199 = vmatpush2.bf16.msra.mxu0 0
      %1200 = vmatprep.mubr.bf16.mxu0 0
      %1201 = vmatmul.mubr.bf16.gmra.mxu0 %v1162
      %v1202 = vpop.f32.mrf.mxu0
      %v1203 = vadd.f32 0.0, %v1202
      %v1204 = vpop.f32.mrf.mxu0
      %v1205 = vpop.f32.mrf.mxu0
      %v1206 = vpop.f32.mrf.mxu0
      %1207 = vdwg.mxu0
      %1209 = vrot.lane.b32.xlu0 %v900, 120
      %v1210 = vpop.permute.xlu0 %1209
      %1212 = vrot.lane.b32.xlu0 %v902, 120
      %v1213 = vpop.permute.xlu0 %1212
      %v1215 = vsel %vm905, %v1210, 0
      %v1218 = vsel %vm905, %v1213, 0
      %1220 = vmatprep.subr.bf16.mxu0 0
      %1221 = vmatpush1.bf16.xpose.msra.mxu0 0
      %1222 = vmatprep.subr.bf16.mxu0 0
      %1223 = vmatpush1.bf16.xpose.msra.mxu0 0
      %1224 = vmatprep.subr.bf16.mxu0 0
      %1225 = vmatpush1.bf16.xpose.msra.mxu0 0
      %1226 = vmatprep.subr.bf16.mxu0 0
      %1227 = vmatpush1.bf16.xpose.msra.mxu0 0
      %1228 = vmatprep.subr.bf16.mxu0 0
      %1229 = vmatpush1.bf16.xpose.msra.mxu0 0
      %1230 = vmatprep.subr.bf16.mxu0 0
      %1231 = vmatpush1.bf16.xpose.msra.mxu0 0
      %1232 = vmatprep.subr.bf16.mxu0 0
      %1233 = vmatpush1.bf16.xpose.msra.mxu0 0
      %1234 = vmatprep.subr.bf16.mxu0 0
      %1235 = vmatpush1.bf16.xpose.msra.mxu0 %v1218
      %1236 = vmatprep.subr.bf16.mxu0 0
      %1237 = vmatpush2.bf16.xpose.msra.mxu0 0
      %1238 = vmatprep.subr.bf16.mxu0 0
      %1239 = vmatpush2.bf16.xpose.msra.mxu0 0
      %1240 = vmatprep.subr.bf16.mxu0 0
      %1241 = vmatpush2.bf16.xpose.msra.mxu0 0
      %1242 = vmatprep.subr.bf16.mxu0 0
      %1243 = vmatpush2.bf16.xpose.msra.mxu0 0
      %1244 = vmatprep.subr.bf16.mxu0 0
      %1245 = vmatpush2.bf16.xpose.msra.mxu0 0
      %1246 = vmatprep.subr.bf16.mxu0 0
      %1247 = vmatpush2.bf16.xpose.msra.mxu0 0
      %1248 = vmatprep.subr.bf16.mxu0 0
      %1249 = vmatpush2.bf16.xpose.msra.mxu0 0
      %1250 = vmatprep.subr.bf16.mxu0 0
      %1251 = vmatpush2.bf16.xpose.msra.mxu0 0
      %1252 = vmatprep.mubr.bf16.mxu0 0
      %1253 = vmatmul.mubr.bf16.gmra.mxu0 %v1215
      %v1254 = vpop.f32.mrf.mxu0
      %v1255 = vadd.f32 0.0, %v1254
      %v1256 = vpop.f32.mrf.mxu0
      %v1257 = vpop.f32.mrf.mxu0
      %v1258 = vpop.f32.mrf.mxu0
      %1259 = vdwg.mxu0
      %v1260 = vmax.f32 %v1255, -5.0
      %v1261 = vmin.f32 %v1260, 5.0
      %1262 = vset.pattern.permute.xlu0 1
      %1263 = vperm.xlu0 %1262, %v861
      %v1264 = vpop.permute.xlu0 %1263
      %1265 = vset.pattern.permute.xlu0 1
      %1266 = vperm.xlu0 %1265, %v866
      %v1267 = vpop.permute.xlu0 %1266
      %1268 = vset.pattern.permute.xlu0 1
      %1269 = vperm.xlu0 %1268, %v871
      %v1270 = vpop.permute.xlu0 %1269
      %1271 = vset.pattern.permute.xlu0 1
      %1272 = vperm.xlu0 %1271, %v876
      %v1273 = vpop.permute.xlu0 %1272
      %1274 = vset.pattern.permute.xlu0 1
      %1275 = vperm.xlu0 %1274, %v881
      %v1276 = vpop.permute.xlu0 %1275
      %1277 = vset.pattern.permute.xlu0 1
      %1278 = vperm.xlu0 %1277, %v886
      %v1279 = vpop.permute.xlu0 %1278
      %1280 = vset.pattern.permute.xlu0 1
      %1281 = vperm.xlu0 %1280, %v891
      %v1282 = vpop.permute.xlu0 %1281
      %1283 = vset.pattern.permute.xlu0 1
      %1284 = vperm.xlu0 %1283, %v896
      %v1285 = vpop.permute.xlu0 %1284
      %v1286 = vlaneseq
      %v1287 = vshrl.u32 %v1286, 7
      %v1288 = vsub.s32 %v987, %v1287
      %v1289 = vrot.slane %v1264, %v1288
      %v1290 = vlaneseq
      %v1291 = vshrl.u32 %v1290, 7
      %v1292 = vsub.s32 %v987, %v1291
      %v1293 = vrot.slane %v1267, %v1292
      %v1294 = vlaneseq
      %v1295 = vshrl.u32 %v1294, 7
      %v1296 = vsub.s32 %v987, %v1295
      %v1297 = vrot.slane %v1270, %v1296
      %v1298 = vlaneseq
      %v1299 = vshrl.u32 %v1298, 7
      %v1300 = vsub.s32 %v987, %v1299
      %v1301 = vrot.slane %v1273, %v1300
      %v1302 = vlaneseq
      %v1303 = vshrl.u32 %v1302, 7
      %v1304 = vsub.s32 %v987, %v1303
      %v1305 = vrot.slane %v1276, %v1304
      %v1306 = vlaneseq
      %v1307 = vshrl.u32 %v1306, 7
      %v1308 = vsub.s32 %v987, %v1307
      %v1309 = vrot.slane %v1279, %v1308
      %v1310 = vlaneseq
      %v1311 = vshrl.u32 %v1310, 7
      %v1312 = vsub.s32 %v987, %v1311
      %v1313 = vrot.slane %v1282, %v1312
      %v1314 = vlaneseq
      %v1315 = vshrl.u32 %v1314, 7
      %v1316 = vsub.s32 %v987, %v1315
      %v1317 = vrot.slane %v1285, %v1316
      %v1318 = vsel %vm1020, %v1293, %v1289
      %v1319 = vsel %vm1022, %v1297, %v1318
      %v1320 = vsel %vm1024, %v1301, %v1319
      %v1321 = vsel %vm1026, %v1305, %v1320
      %v1322 = vsel %vm1028, %v1309, %v1321
      %v1323 = vsel %vm1030, %v1313, %v1322
      %v1324 = vsel %vm1032, %v1317, %v1323
      %v1326 = vadd.f32 %v1261, %v1324
      %v1327 = vsel %vm905, %v1326, -inf
      %1328 = vmax.xlane.f32.xlu0 %v1327
      %v1329 = vpop.xlane.xlu0 %1328
      %v1330 = vsub.f32 %v1326, %v1329
      %v1331 = vmul.f32 %v1330, 1.442695
      %v1332 = vpow.pop %v1331
      %v1333 = vsel %vm905, %v1332, 0.0
      %1334 = vadd.xlane.f32.xlu0 %v1333
      %v1335 = vpop.xlane.xlu0 %1334
      %v1336 = vrcp.pop %v1335
      %v1337 = vmul.f32 %v1332, %v1336
      %1338 = vset.pattern.permute.xlu0 5
      %1339 = vperm.xlu0 %1338, %v1068
      %v1340 = vpop.permute.xlu0 %1339
      %1341 = vset.pattern.permute.xlu0 5
      %1342 = vperm.xlu0 %1341, %v1069
      %v1343 = vpop.permute.xlu0 %1342
      %1344 = vset.pattern.permute.xlu0 5
      %1345 = vperm.xlu0 %1344, %v1070
      %v1346 = vpop.permute.xlu0 %1345
      %1347 = vset.pattern.permute.xlu0 5
      %1348 = vperm.xlu0 %1347, %v1071
      %v1349 = vpop.permute.xlu0 %1348
      %1350 = vset.pattern.permute.xlu0 5
      %1351 = vperm.xlu0 %1350, %v1072
      %v1352 = vpop.permute.xlu0 %1351
      %1353 = vset.pattern.permute.xlu0 5
      %1354 = vperm.xlu0 %1353, %v1073
      %v1355 = vpop.permute.xlu0 %1354
      %1356 = vset.pattern.permute.xlu0 5
      %1357 = vperm.xlu0 %1356, %v1074
      %v1358 = vpop.permute.xlu0 %1357
      %1359 = vset.pattern.permute.xlu0 5
      %1360 = vperm.xlu0 %1359, %v1075
      %v1361 = vpop.permute.xlu0 %1360
      %v1362 = vlaneseq
      %v1363 = vshrl.u32 %v1362, 7
      %v1364 = vsub.s32 %v987, %v1363
      %v1365 = vrot.slane %v1340, %v1364
      %v1366 = vlaneseq
      %v1367 = vshrl.u32 %v1366, 7
      %v1368 = vsub.s32 %v987, %v1367
      %v1369 = vrot.slane %v1343, %v1368
      %v1370 = vlaneseq
      %v1371 = vshrl.u32 %v1370, 7
      %v1372 = vsub.s32 %v987, %v1371
      %v1373 = vrot.slane %v1346, %v1372
      %v1374 = vlaneseq
      %v1375 = vshrl.u32 %v1374, 7
      %v1376 = vsub.s32 %v987, %v1375
      %v1377 = vrot.slane %v1349, %v1376
      %v1378 = vlaneseq
      %v1379 = vshrl.u32 %v1378, 7
      %v1380 = vsub.s32 %v987, %v1379
      %v1381 = vrot.slane %v1352, %v1380
      %v1382 = vlaneseq
      %v1383 = vshrl.u32 %v1382, 7
      %v1384 = vsub.s32 %v987, %v1383
      %v1385 = vrot.slane %v1355, %v1384
      %v1386 = vlaneseq
      %v1387 = vshrl.u32 %v1386, 7
      %v1388 = vsub.s32 %v987, %v1387
      %v1389 = vrot.slane %v1358, %v1388
      %v1390 = vlaneseq
      %v1391 = vshrl.u32 %v1390, 7
      %v1392 = vsub.s32 %v987, %v1391
      %v1393 = vrot.slane %v1361, %v1392
      %v1394 = vsel %vm1020, %v1369, %v1365
      %v1395 = vsel %vm1022, %v1373, %v1394
      %v1396 = vsel %vm1024, %v1377, %v1395
      %v1397 = vsel %vm1026, %v1381, %v1396
      %v1398 = vsel %vm1028, %v1385, %v1397
      %v1399 = vsel %vm1030, %v1389, %v1398
      %v1400 = vsel %vm1032, %v1393, %v1399
      %v1402 = vmul.f32 %v1337, %v1400
      %v1403 = vpack.c.bf16 %v1402, %v1402
      %1405 = vrot.lane.b32.xlu0 %v904, 120
      %v1406 = vpop.permute.xlu0 %1405
      %v1408 = vsel %vm905, %v1403, 0
      %v1411 = vsel %vm1164, %v1406, 0
      %1413 = vmatprep.subr.bf16.mxu0 0
      %1414 = vmatpush1.bf16.msra.mxu0 0
      %1415 = vmatprep.subr.bf16.mxu0 0
      %1416 = vmatpush1.bf16.msra.mxu0 0
      %1417 = vmatprep.subr.bf16.mxu0 0
      %1418 = vmatpush1.bf16.msra.mxu0 0
      %1419 = vmatprep.subr.bf16.mxu0 0
      %1420 = vmatpush1.bf16.msra.mxu0 0
      %1421 = vmatprep.subr.bf16.mxu0 0
      %1422 = vmatpush1.bf16.msra.mxu0 0
      %1423 = vmatprep.subr.bf16.mxu0 0
      %1424 = vmatpush1.bf16.msra.mxu0 0
      %1425 = vmatprep.subr.bf16.mxu0 0
      %1426 = vmatpush1.bf16.msra.mxu0 0
      %1427 = vmatprep.subr.bf16.mxu0 0
      %1428 = vmatpush1.bf16.msra.mxu0 %v1411
      %1429 = vmatprep.subr.bf16.mxu0 0
      %1430 = vmatpush2.bf16.msra.mxu0 0
      %1431 = vmatprep.subr.bf16.mxu0 0
      %1432 = vmatpush2.bf16.msra.mxu0 0
      %1433 = vmatprep.subr.bf16.mxu0 0
      %1434 = vmatpush2.bf16.msra.mxu0 0
      %1435 = vmatprep.subr.bf16.mxu0 0
      %1436 = vmatpush2.bf16.msra.mxu0 0
      %1437 = vmatprep.subr.bf16.mxu0 0
      %1438 = vmatpush2.bf16.msra.mxu0 0
      %1439 = vmatprep.subr.bf16.mxu0 0
      %1440 = vmatpush2.bf16.msra.mxu0 0
      %1441 = vmatprep.subr.bf16.mxu0 0
      %1442 = vmatpush2.bf16.msra.mxu0 0
      %1443 = vmatprep.subr.bf16.mxu0 0
      %1444 = vmatpush2.bf16.msra.mxu0 0
      %1445 = vmatprep.mubr.bf16.mxu0 0
      %1446 = vmatmul.mubr.bf16.gmra.mxu0 %v1408
      %v1447 = vpop.f32.mrf.mxu0
      %v1448 = vadd.f32 0.0, %v1447
      %v1449 = vpop.f32.mrf.mxu0
      %v1450 = vpop.f32.mrf.mxu0
      %v1451 = vpop.f32.mrf.mxu0
      %1452 = vdwg.mxu0
      %1453 = vrot.lane.b32.xlu0 %v900, 112
      %v1454 = vpop.permute.xlu0 %1453
      %1455 = vrot.lane.b32.xlu0 %v902, 112
      %v1456 = vpop.permute.xlu0 %1455
      %v1458 = vsel %vm905, %v1454, 0
      %v1461 = vsel %vm905, %v1456, 0
      %1463 = vmatprep.subr.bf16.mxu0 0
      %1464 = vmatpush1.bf16.xpose.msra.mxu0 0
      %1465 = vmatprep.subr.bf16.mxu0 0
      %1466 = vmatpush1.bf16.xpose.msra.mxu0 0
      %1467 = vmatprep.subr.bf16.mxu0 0
      %1468 = vmatpush1.bf16.xpose.msra.mxu0 0
      %1469 = vmatprep.subr.bf16.mxu0 0
      %1470 = vmatpush1.bf16.xpose.msra.mxu0 0
      %1471 = vmatprep.subr.bf16.mxu0 0
      %1472 = vmatpush1.bf16.xpose.msra.mxu0 0
      %1473 = vmatprep.subr.bf16.mxu0 0
      %1474 = vmatpush1.bf16.xpose.msra.mxu0 0
      %1475 = vmatprep.subr.bf16.mxu0 0
      %1476 = vmatpush1.bf16.xpose.msra.mxu0 0
      %1477 = vmatprep.subr.bf16.mxu0 0
      %1478 = vmatpush1.bf16.xpose.msra.mxu0 %v1461
      %1479 = vmatprep.subr.bf16.mxu0 0
      %1480 = vmatpush2.bf16.xpose.msra.mxu0 0
      %1481 = vmatprep.subr.bf16.mxu0 0
      %1482 = vmatpush2.bf16.xpose.msra.mxu0 0
      %1483 = vmatprep.subr.bf16.mxu0 0
      %1484 = vmatpush2.bf16.xpose.msra.mxu0 0
      %1485 = vmatprep.subr.bf16.mxu0 0
      %1486 = vmatpush2.bf16.xpose.msra.mxu0 0
      %1487 = vmatprep.subr.bf16.mxu0 0
      %1488 = vmatpush2.bf16.xpose.msra.mxu0 0
      %1489 = vmatprep.subr.bf16.mxu0 0
      %1490 = vmatpush2.bf16.xpose.msra.mxu0 0
      %1491 = vmatprep.subr.bf16.mxu0 0
      %1492 = vmatpush2.bf16.xpose.msra.mxu0 0
      %1493 = vmatprep.subr.bf16.mxu0 0
      %1494 = vmatpush2.bf16.xpose.msra.mxu0 0
      %1495 = vmatprep.mubr.bf16.mxu0 0
      %1496 = vmatmul.mubr.bf16.gmra.mxu0 %v1458
      %v1497 = vpop.f32.mrf.mxu0
      %v1498 = vadd.f32 0.0, %v1497
      %v1499 = vpop.f32.mrf.mxu0
      %v1500 = vpop.f32.mrf.mxu0
      %v1501 = vpop.f32.mrf.mxu0
      %1502 = vdwg.mxu0
      %v1503 = vmax.f32 %v1498, -5.0
      %v1504 = vmin.f32 %v1503, 5.0
      %1505 = vset.pattern.permute.xlu0 2
      %1506 = vperm.xlu0 %1505, %v861
      %v1507 = vpop.permute.xlu0 %1506
      %1508 = vset.pattern.permute.xlu0 2
      %1509 = vperm.xlu0 %1508, %v866
      %v1510 = vpop.permute.xlu0 %1509
      %1511 = vset.pattern.permute.xlu0 2
      %1512 = vperm.xlu0 %1511, %v871
      %v1513 = vpop.permute.xlu0 %1512
      %1514 = vset.pattern.permute.xlu0 2
      %1515 = vperm.xlu0 %1514, %v876
      %v1516 = vpop.permute.xlu0 %1515
      %1517 = vset.pattern.permute.xlu0 2
      %1518 = vperm.xlu0 %1517, %v881
      %v1519 = vpop.permute.xlu0 %1518
      %1520 = vset.pattern.permute.xlu0 2
      %1521 = vperm.xlu0 %1520, %v886
      %v1522 = vpop.permute.xlu0 %1521
      %1523 = vset.pattern.permute.xlu0 2
      %1524 = vperm.xlu0 %1523, %v891
      %v1525 = vpop.permute.xlu0 %1524
      %1526 = vset.pattern.permute.xlu0 2
      %1527 = vperm.xlu0 %1526, %v896
      %v1528 = vpop.permute.xlu0 %1527
      %v1529 = vlaneseq
      %v1530 = vshrl.u32 %v1529, 7
      %v1531 = vsub.s32 %v987, %v1530
      %v1532 = vrot.slane %v1507, %v1531
      %v1533 = vlaneseq
      %v1534 = vshrl.u32 %v1533, 7
      %v1535 = vsub.s32 %v987, %v1534
      %v1536 = vrot.slane %v1510, %v1535
      %v1537 = vlaneseq
      %v1538 = vshrl.u32 %v1537, 7
      %v1539 = vsub.s32 %v987, %v1538
      %v1540 = vrot.slane %v1513, %v1539
      %v1541 = vlaneseq
      %v1542 = vshrl.u32 %v1541, 7
      %v1543 = vsub.s32 %v987, %v1542
      %v1544 = vrot.slane %v1516, %v1543
      %v1545 = vlaneseq
      %v1546 = vshrl.u32 %v1545, 7
      %v1547 = vsub.s32 %v987, %v1546
      %v1548 = vrot.slane %v1519, %v1547
      %v1549 = vlaneseq
      %v1550 = vshrl.u32 %v1549, 7
      %v1551 = vsub.s32 %v987, %v1550
      %v1552 = vrot.slane %v1522, %v1551
      %v1553 = vlaneseq
      %v1554 = vshrl.u32 %v1553, 7
      %v1555 = vsub.s32 %v987, %v1554
      %v1556 = vrot.slane %v1525, %v1555
      %v1557 = vlaneseq
      %v1558 = vshrl.u32 %v1557, 7
      %v1559 = vsub.s32 %v987, %v1558
      %v1560 = vrot.slane %v1528, %v1559
      %v1561 = vsel %vm1020, %v1536, %v1532
      %v1562 = vsel %vm1022, %v1540, %v1561
      %v1563 = vsel %vm1024, %v1544, %v1562
      %v1564 = vsel %vm1026, %v1548, %v1563
      %v1565 = vsel %vm1028, %v1552, %v1564
      %v1566 = vsel %vm1030, %v1556, %v1565
      %v1567 = vsel %vm1032, %v1560, %v1566
      %v1569 = vadd.f32 %v1504, %v1567
      %v1570 = vsel %vm905, %v1569, -inf
      %1571 = vmax.xlane.f32.xlu0 %v1570
      %v1572 = vpop.xlane.xlu0 %1571
      %v1573 = vsub.f32 %v1569, %v1572
      %v1574 = vmul.f32 %v1573, 1.442695
      %v1575 = vpow.pop %v1574
      %v1576 = vsel %vm905, %v1575, 0.0
      %1577 = vadd.xlane.f32.xlu0 %v1576
      %v1578 = vpop.xlane.xlu0 %1577
      %v1579 = vrcp.pop %v1578
      %v1580 = vmul.f32 %v1575, %v1579
      %1581 = vset.pattern.permute.xlu0 6
      %1582 = vperm.xlu0 %1581, %v1068
      %v1583 = vpop.permute.xlu0 %1582
      %1584 = vset.pattern.permute.xlu0 6
      %1585 = vperm.xlu0 %1584, %v1069
      %v1586 = vpop.permute.xlu0 %1585
      %1587 = vset.pattern.permute.xlu0 6
      %1588 = vperm.xlu0 %1587, %v1070
      %v1589 = vpop.permute.xlu0 %1588
      %1590 = vset.pattern.permute.xlu0 6
      %1591 = vperm.xlu0 %1590, %v1071
      %v1592 = vpop.permute.xlu0 %1591
      %1593 = vset.pattern.permute.xlu0 6
      %1594 = vperm.xlu0 %1593, %v1072
      %v1595 = vpop.permute.xlu0 %1594
      %1596 = vset.pattern.permute.xlu0 6
      %1597 = vperm.xlu0 %1596, %v1073
      %v1598 = vpop.permute.xlu0 %1597
      %1599 = vset.pattern.permute.xlu0 6
      %1600 = vperm.xlu0 %1599, %v1074
      %v1601 = vpop.permute.xlu0 %1600
      %1602 = vset.pattern.permute.xlu0 6
      %1603 = vperm.xlu0 %1602, %v1075
      %v1604 = vpop.permute.xlu0 %1603
      %v1605 = vlaneseq
      %v1606 = vshrl.u32 %v1605, 7
      %v1607 = vsub.s32 %v987, %v1606
      %v1608 = vrot.slane %v1583, %v1607
      %v1609 = vlaneseq
      %v1610 = vshrl.u32 %v1609, 7
      %v1611 = vsub.s32 %v987, %v1610
      %v1612 = vrot.slane %v1586, %v1611
      %v1613 = vlaneseq
      %v1614 = vshrl.u32 %v1613, 7
      %v1615 = vsub.s32 %v987, %v1614
      %v1616 = vrot.slane %v1589, %v1615
      %v1617 = vlaneseq
      %v1618 = vshrl.u32 %v1617, 7
      %v1619 = vsub.s32 %v987, %v1618
      %v1620 = vrot.slane %v1592, %v1619
      %v1621 = vlaneseq
      %v1622 = vshrl.u32 %v1621, 7
      %v1623 = vsub.s32 %v987, %v1622
      %v1624 = vrot.slane %v1595, %v1623
      %v1625 = vlaneseq
      %v1626 = vshrl.u32 %v1625, 7
      %v1627 = vsub.s32 %v987, %v1626
      %v1628 = vrot.slane %v1598, %v1627
      %v1629 = vlaneseq
      %v1630 = vshrl.u32 %v1629, 7
      %v1631 = vsub.s32 %v987, %v1630
      %v1632 = vrot.slane %v1601, %v1631
      %v1633 = vlaneseq
      %v1634 = vshrl.u32 %v1633, 7
      %v1635 = vsub.s32 %v987, %v1634
      %v1636 = vrot.slane %v1604, %v1635
      %v1637 = vsel %vm1020, %v1612, %v1608
      %v1638 = vsel %vm1022, %v1616, %v1637
      %v1639 = vsel %vm1024, %v1620, %v1638
      %v1640 = vsel %vm1026, %v1624, %v1639
      %v1641 = vsel %vm1028, %v1628, %v1640
      %v1642 = vsel %vm1030, %v1632, %v1641
      %v1643 = vsel %vm1032, %v1636, %v1642
      %v1645 = vmul.f32 %v1580, %v1643
      %v1646 = vpack.c.bf16 %v1645, %v1645
      %1647 = vrot.lane.b32.xlu0 %v904, 112
      %v1648 = vpop.permute.xlu0 %1647
      %v1650 = vsel %vm905, %v1646, 0
      %v1653 = vsel %vm1164, %v1648, 0
      %1655 = vmatprep.subr.bf16.mxu0 0
      %1656 = vmatpush1.bf16.msra.mxu0 0
      %1657 = vmatprep.subr.bf16.mxu0 0
      %1658 = vmatpush1.bf16.msra.mxu0 0
      %1659 = vmatprep.subr.bf16.mxu0 0
      %1660 = vmatpush1.bf16.msra.mxu0 0
      %1661 = vmatprep.subr.bf16.mxu0 0
      %1662 = vmatpush1.bf16.msra.mxu0 0
      %1663 = vmatprep.subr.bf16.mxu0 0
      %1664 = vmatpush1.bf16.msra.mxu0 0
      %1665 = vmatprep.subr.bf16.mxu0 0
      %1666 = vmatpush1.bf16.msra.mxu0 0
      %1667 = vmatprep.subr.bf16.mxu0 0
      %1668 = vmatpush1.bf16.msra.mxu0 0
      %1669 = vmatprep.subr.bf16.mxu0 0
      %1670 = vmatpush1.bf16.msra.mxu0 %v1653
      %1671 = vmatprep.subr.bf16.mxu0 0
      %1672 = vmatpush2.bf16.msra.mxu0 0
      %1673 = vmatprep.subr.bf16.mxu0 0
      %1674 = vmatpush2.bf16.msra.mxu0 0
      %1675 = vmatprep.subr.bf16.mxu0 0
      %1676 = vmatpush2.bf16.msra.mxu0 0
      %1677 = vmatprep.subr.bf16.mxu0 0
      %1678 = vmatpush2.bf16.msra.mxu0 0
      %1679 = vmatprep.subr.bf16.mxu0 0
      %1680 = vmatpush2.bf16.msra.mxu0 0
      %1681 = vmatprep.subr.bf16.mxu0 0
      %1682 = vmatpush2.bf16.msra.mxu0 0
      %1683 = vmatprep.subr.bf16.mxu0 0
      %1684 = vmatpush2.bf16.msra.mxu0 0
      %1685 = vmatprep.subr.bf16.mxu0 0
      %1686 = vmatpush2.bf16.msra.mxu0 0
      %1687 = vmatprep.mubr.bf16.mxu0 0
      %1688 = vmatmul.mubr.bf16.gmra.mxu0 %v1650
      %v1689 = vpop.f32.mrf.mxu0
      %v1690 = vadd.f32 0.0, %v1689
      %v1691 = vpop.f32.mrf.mxu0
      %v1692 = vpop.f32.mrf.mxu0
      %v1693 = vpop.f32.mrf.mxu0
      %1694 = vdwg.mxu0
      %1695 = vrot.lane.b32.xlu0 %v900, 104
      %v1696 = vpop.permute.xlu0 %1695
      %1697 = vrot.lane.b32.xlu0 %v902, 104
      %v1698 = vpop.permute.xlu0 %1697
      %v1700 = vsel %vm905, %v1696, 0
      %v1703 = vsel %vm905, %v1698, 0
      %1705 = vmatprep.subr.bf16.mxu0 0
      %1706 = vmatpush1.bf16.xpose.msra.mxu0 0
      %1707 = vmatprep.subr.bf16.mxu0 0
      %1708 = vmatpush1.bf16.xpose.msra.mxu0 0
      %1709 = vmatprep.subr.bf16.mxu0 0
      %1710 = vmatpush1.bf16.xpose.msra.mxu0 0
      %1711 = vmatprep.subr.bf16.mxu0 0
      %1712 = vmatpush1.bf16.xpose.msra.mxu0 0
      %1713 = vmatprep.subr.bf16.mxu0 0
      %1714 = vmatpush1.bf16.xpose.msra.mxu0 0
      %1715 = vmatprep.subr.bf16.mxu0 0
      %1716 = vmatpush1.bf16.xpose.msra.mxu0 0
      %1717 = vmatprep.subr.bf16.mxu0 0
      %1718 = vmatpush1.bf16.xpose.msra.mxu0 0
      %1719 = vmatprep.subr.bf16.mxu0 0
      %1720 = vmatpush1.bf16.xpose.msra.mxu0 %v1703
      %1721 = vmatprep.subr.bf16.mxu0 0
      %1722 = vmatpush2.bf16.xpose.msra.mxu0 0
      %1723 = vmatprep.subr.bf16.mxu0 0
      %1724 = vmatpush2.bf16.xpose.msra.mxu0 0
      %1725 = vmatprep.subr.bf16.mxu0 0
      %1726 = vmatpush2.bf16.xpose.msra.mxu0 0
      %1727 = vmatprep.subr.bf16.mxu0 0
      %1728 = vmatpush2.bf16.xpose.msra.mxu0 0
      %1729 = vmatprep.subr.bf16.mxu0 0
      %1730 = vmatpush2.bf16.xpose.msra.mxu0 0
      %1731 = vmatprep.subr.bf16.mxu0 0
      %1732 = vmatpush2.bf16.xpose.msra.mxu0 0
      %1733 = vmatprep.subr.bf16.mxu0 0
      %1734 = vmatpush2.bf16.xpose.msra.mxu0 0
      %1735 = vmatprep.subr.bf16.mxu0 0
      %1736 = vmatpush2.bf16.xpose.msra.mxu0 0
      %1737 = vmatprep.mubr.bf16.mxu0 0
      %1738 = vmatmul.mubr.bf16.gmra.mxu0 %v1700
      %v1739 = vpop.f32.mrf.mxu0
      %v1740 = vadd.f32 0.0, %v1739
      %v1741 = vpop.f32.mrf.mxu0
      %v1742 = vpop.f32.mrf.mxu0
      %v1743 = vpop.f32.mrf.mxu0
      %1744 = vdwg.mxu0
      %v1745 = vmax.f32 %v1740, -5.0
      %v1746 = vmin.f32 %v1745, 5.0
      %1747 = vset.pattern.permute.xlu0 3
      %1748 = vperm.xlu0 %1747, %v861
      %v1749 = vpop.permute.xlu0 %1748
      %1750 = vset.pattern.permute.xlu0 3
      %1751 = vperm.xlu0 %1750, %v866
      %v1752 = vpop.permute.xlu0 %1751
      %1753 = vset.pattern.permute.xlu0 3
      %1754 = vperm.xlu0 %1753, %v871
      %v1755 = vpop.permute.xlu0 %1754
      %1756 = vset.pattern.permute.xlu0 3
      %1757 = vperm.xlu0 %1756, %v876
      %v1758 = vpop.permute.xlu0 %1757
      %1759 = vset.pattern.permute.xlu0 3
      %1760 = vperm.xlu0 %1759, %v881
      %v1761 = vpop.permute.xlu0 %1760
      %1762 = vset.pattern.permute.xlu0 3
      %1763 = vperm.xlu0 %1762, %v886
      %v1764 = vpop.permute.xlu0 %1763
      %1765 = vset.pattern.permute.xlu0 3
      %1766 = vperm.xlu0 %1765, %v891
      %v1767 = vpop.permute.xlu0 %1766
      %1768 = vset.pattern.permute.xlu0 3
      %1769 = vperm.xlu0 %1768, %v896
      %v1770 = vpop.permute.xlu0 %1769
      %v1771 = vlaneseq
      %v1772 = vshrl.u32 %v1771, 7
      %v1773 = vsub.s32 %v987, %v1772
      %v1774 = vrot.slane %v1749, %v1773
      %v1775 = vlaneseq
      %v1776 = vshrl.u32 %v1775, 7
      %v1777 = vsub.s32 %v987, %v1776
      %v1778 = vrot.slane %v1752, %v1777
      %v1779 = vlaneseq
      %v1780 = vshrl.u32 %v1779, 7
      %v1781 = vsub.s32 %v987, %v1780
      %v1782 = vrot.slane %v1755, %v1781
      %v1783 = vlaneseq
      %v1784 = vshrl.u32 %v1783, 7
      %v1785 = vsub.s32 %v987, %v1784
      %v1786 = vrot.slane %v1758, %v1785
      %v1787 = vlaneseq
      %v1788 = vshrl.u32 %v1787, 7
      %v1789 = vsub.s32 %v987, %v1788
      %v1790 = vrot.slane %v1761, %v1789
      %v1791 = vlaneseq
      %v1792 = vshrl.u32 %v1791, 7
      %v1793 = vsub.s32 %v987, %v1792
      %v1794 = vrot.slane %v1764, %v1793
      %v1795 = vlaneseq
      %v1796 = vshrl.u32 %v1795, 7
      %v1797 = vsub.s32 %v987, %v1796
      %v1798 = vrot.slane %v1767, %v1797
      %v1799 = vlaneseq
      %v1800 = vshrl.u32 %v1799, 7
      %v1801 = vsub.s32 %v987, %v1800
      %v1802 = vrot.slane %v1770, %v1801
      %v1803 = vsel %vm1020, %v1778, %v1774
      %v1804 = vsel %vm1022, %v1782, %v1803
      %v1805 = vsel %vm1024, %v1786, %v1804
      %v1806 = vsel %vm1026, %v1790, %v1805
      %v1807 = vsel %vm1028, %v1794, %v1806
      %v1808 = vsel %vm1030, %v1798, %v1807
      %v1809 = vsel %vm1032, %v1802, %v1808
      %v1811 = vadd.f32 %v1746, %v1809
      %v1812 = vsel %vm905, %v1811, -inf
      %1813 = vmax.xlane.f32.xlu0 %v1812
      %v1814 = vpop.xlane.xlu0 %1813
      %v1815 = vsub.f32 %v1811, %v1814
      %v1816 = vmul.f32 %v1815, 1.442695
      %v1817 = vpow.pop %v1816
      %v1818 = vsel %vm905, %v1817, 0.0
      %1819 = vadd.xlane.f32.xlu0 %v1818
      %v1820 = vpop.xlane.xlu0 %1819
      %v1821 = vrcp.pop %v1820
      %v1822 = vmul.f32 %v1817, %v1821
      %1823 = vset.pattern.permute.xlu0 7
      %1824 = vperm.xlu0 %1823, %v1068
      %v1825 = vpop.permute.xlu0 %1824
      %1826 = vset.pattern.permute.xlu0 7
      %1827 = vperm.xlu0 %1826, %v1069
      %v1828 = vpop.permute.xlu0 %1827
      %1829 = vset.pattern.permute.xlu0 7
      %1830 = vperm.xlu0 %1829, %v1070
      %v1831 = vpop.permute.xlu0 %1830
      %1832 = vset.pattern.permute.xlu0 7
      %1833 = vperm.xlu0 %1832, %v1071
      %v1834 = vpop.permute.xlu0 %1833
      %1835 = vset.pattern.permute.xlu0 7
      %1836 = vperm.xlu0 %1835, %v1072
      %v1837 = vpop.permute.xlu0 %1836
      %1838 = vset.pattern.permute.xlu0 7
      %1839 = vperm.xlu0 %1838, %v1073
      %v1840 = vpop.permute.xlu0 %1839
      %1841 = vset.pattern.permute.xlu0 7
      %1842 = vperm.xlu0 %1841, %v1074
      %v1843 = vpop.permute.xlu0 %1842
      %1844 = vset.pattern.permute.xlu0 7
      %1845 = vperm.xlu0 %1844, %v1075
      %v1846 = vpop.permute.xlu0 %1845
      %v1847 = vlaneseq
      %v1848 = vshrl.u32 %v1847, 7
      %v1849 = vsub.s32 %v987, %v1848
      %v1850 = vrot.slane %v1825, %v1849
      %v1851 = vlaneseq
      %v1852 = vshrl.u32 %v1851, 7
      %v1853 = vsub.s32 %v987, %v1852
      %v1854 = vrot.slane %v1828, %v1853
      %v1855 = vlaneseq
      %v1856 = vshrl.u32 %v1855, 7
      %v1857 = vsub.s32 %v987, %v1856
      %v1858 = vrot.slane %v1831, %v1857
      %v1859 = vlaneseq
      %v1860 = vshrl.u32 %v1859, 7
      %v1861 = vsub.s32 %v987, %v1860
      %v1862 = vrot.slane %v1834, %v1861
      %v1863 = vlaneseq
      %v1864 = vshrl.u32 %v1863, 7
      %v1865 = vsub.s32 %v987, %v1864
      %v1866 = vrot.slane %v1837, %v1865
      %v1867 = vlaneseq
      %v1868 = vshrl.u32 %v1867, 7
      %v1869 = vsub.s32 %v987, %v1868
      %v1870 = vrot.slane %v1840, %v1869
      %v1871 = vlaneseq
      %v1872 = vshrl.u32 %v1871, 7
      %v1873 = vsub.s32 %v987, %v1872
      %v1874 = vrot.slane %v1843, %v1873
      %v1875 = vlaneseq
      %v1876 = vshrl.u32 %v1875, 7
      %v1877 = vsub.s32 %v987, %v1876
      %v1878 = vrot.slane %v1846, %v1877
      %v1879 = vsel %vm1020, %v1854, %v1850
      %v1880 = vsel %vm1022, %v1858, %v1879
      %v1881 = vsel %vm1024, %v1862, %v1880
      %v1882 = vsel %vm1026, %v1866, %v1881
      %v1883 = vsel %vm1028, %v1870, %v1882
      %v1884 = vsel %vm1030, %v1874, %v1883
      %v1885 = vsel %vm1032, %v1878, %v1884
      %v1887 = vmul.f32 %v1822, %v1885
      %v1888 = vpack.c.bf16 %v1887, %v1887
      %1889 = vrot.lane.b32.xlu0 %v904, 104
      %v1890 = vpop.permute.xlu0 %1889
      %v1892 = vsel %vm905, %v1888, 0
      %v1895 = vsel %vm1164, %v1890, 0
      %1897 = vmatprep.subr.bf16.mxu0 0
      %1898 = vmatpush1.bf16.msra.mxu0 0
      %1899 = vmatprep.subr.bf16.mxu0 0
      %1900 = vmatpush1.bf16.msra.mxu0 0
      %1901 = vmatprep.subr.bf16.mxu0 0
      %1902 = vmatpush1.bf16.msra.mxu0 0
      %1903 = vmatprep.subr.bf16.mxu0 0
      %1904 = vmatpush1.bf16.msra.mxu0 0
      %1905 = vmatprep.subr.bf16.mxu0 0
      %1906 = vmatpush1.bf16.msra.mxu0 0
      %1907 = vmatprep.subr.bf16.mxu0 0
      %1908 = vmatpush1.bf16.msra.mxu0 0
      %1909 = vmatprep.subr.bf16.mxu0 0
      %1910 = vmatpush1.bf16.msra.mxu0 0
      %1911 = vmatprep.subr.bf16.mxu0 0
      %1912 = vmatpush1.bf16.msra.mxu0 %v1895
      %1913 = vmatprep.subr.bf16.mxu0 0
      %1914 = vmatpush2.bf16.msra.mxu0 0
      %1915 = vmatprep.subr.bf16.mxu0 0
      %1916 = vmatpush2.bf16.msra.mxu0 0
      %1917 = vmatprep.subr.bf16.mxu0 0
      %1918 = vmatpush2.bf16.msra.mxu0 0
      %1919 = vmatprep.subr.bf16.mxu0 0
      %1920 = vmatpush2.bf16.msra.mxu0 0
      %1921 = vmatprep.subr.bf16.mxu0 0
      %1922 = vmatpush2.bf16.msra.mxu0 0
      %1923 = vmatprep.subr.bf16.mxu0 0
      %1924 = vmatpush2.bf16.msra.mxu0 0
      %1925 = vmatprep.subr.bf16.mxu0 0
      %1926 = vmatpush2.bf16.msra.mxu0 0
      %1927 = vmatprep.subr.bf16.mxu0 0
      %1928 = vmatpush2.bf16.msra.mxu0 0
      %1929 = vmatprep.mubr.bf16.mxu0 0
      %1930 = vmatmul.mubr.bf16.gmra.mxu0 %v1892
      %v1931 = vpop.f32.mrf.mxu0
      %v1932 = vadd.f32 0.0, %v1931
      %v1933 = vpop.f32.mrf.mxu0
      %v1934 = vpop.f32.mrf.mxu0
      %v1935 = vpop.f32.mrf.mxu0
      %1936 = vdwg.mxu0
      %1938 = vrot.lane.b32.xlu0 %v1448, 8
      %v1939 = vpop.permute.xlu0 %1938
      %1942 = vrot.lane.b32.xlu0 %v1690, 16
      %v1943 = vpop.permute.xlu0 %1942
      %1946 = vrot.lane.b32.xlu0 %v1932, 24
      %v1947 = vpop.permute.xlu0 %1946
      %v1949 = vsel %vm905, %v1203, %v1939
      %v1950 = vsel %vm625, %v1949, %v1943
      %vm1951 = vcmask 195584
      %v1952 = vsel %vm1951, %v1950, %v1947
      %v1953 = vld [vmem:[%s9] sm:$0xff]
      %v1954 = vld [vmem:[%s9 + $0x8] sm:$0xff]
      %v1955 = vld [vmem:[%s9 + $0x10] sm:$0xff]
      %v1956 = vld [vmem:[%s9 + $0x18] sm:$0xff]
      %v1957 = vld [vmem:[%s10] sm:$0x1]
      %v1959 = vlaneseq
      %v1960 = vshrl.u32 %v1959, 7
      %v1961 = vsub.s32 0, %v1960
      %v1962 = vrot.slane %v1957, %v1961
      %vm1964 = vcmask 261120
      %v1966 = vsel %vm1964, %v1952, 0
      %1968 = vmatprep.subr.mxu0 0.0
      %1969 = vmatpush1.msra.mxu0 0.0
      %1970 = vmatprep.subr.mxu0 0.0
      %1971 = vmatpush1.msra.mxu0 0.0
      %1972 = vmatprep.subr.mxu0 0.0
      %1973 = vmatpush1.msra.mxu0 0.0
      %1974 = vmatprep.subr.mxu0 0.0
      %1975 = vmatpush1.msra.mxu0 0.0
      %1976 = vmatprep.subr.mxu0 0.0
      %1977 = vmatpush1.msra.mxu0 0.0
      %1978 = vmatprep.subr.mxu0 0.0
      %1979 = vmatpush1.msra.mxu0 0.0
      %1980 = vmatprep.subr.mxu0 0.0
      %1981 = vmatpush1.msra.mxu0 0.0
      %1982 = vmatprep.subr.mxu0 0.0
      %1983 = vmatpush1.msra.mxu0 0.0
      %1984 = vmatprep.subr.mxu0 0.0
      %1985 = vmatpush1.msra.mxu0 0.0
      %1986 = vmatprep.subr.mxu0 0.0
      %1987 = vmatpush1.msra.mxu0 0.0
      %1988 = vmatprep.subr.mxu0 0.0
      %1989 = vmatpush1.msra.mxu0 0.0
      %1990 = vmatprep.subr.mxu0 0.0
      %1991 = vmatpush1.msra.mxu0 0.0
      %1992 = vmatprep.subr.mxu0 0.0
      %1993 = vmatpush1.msra.mxu0 %v1956
      %1994 = vmatprep.subr.mxu0 0.0
      %1995 = vmatpush1.msra.mxu0 %v1955
      %1996 = vmatprep.subr.mxu0 0.0
      %1997 = vmatpush1.msra.mxu0 %v1954
      %1998 = vmatprep.subr.mxu0 0.0
      %1999 = vmatpush1.msra.mxu0 %v1953
      %2000 = vmatprep.subr.mxu0 0.0
      %2001 = vmatpush2.msra.mxu0 0.0
      %2002 = vmatprep.subr.mxu0 0.0
      %2003 = vmatpush2.msra.mxu0 0.0
      %2004 = vmatprep.subr.mxu0 0.0
      %2005 = vmatpush2.msra.mxu0 0.0
      %2006 = vmatprep.subr.mxu0 0.0
      %2007 = vmatpush2.msra.mxu0 0.0
      %2008 = vmatprep.subr.mxu0 0.0
      %2009 = vmatpush2.msra.mxu0 0.0
      %2010 = vmatprep.subr.mxu0 0.0
      %2011 = vmatpush2.msra.mxu0 0.0
      %2012 = vmatprep.subr.mxu0 0.0
      %2013 = vmatpush2.msra.mxu0 0.0
      %2014 = vmatprep.subr.mxu0 0.0
      %2015 = vmatpush2.msra.mxu0 0.0
      %2016 = vmatprep.subr.mxu0 0.0
      %2017 = vmatpush2.msra.mxu0 0.0
      %2018 = vmatprep.subr.mxu0 0.0
      %2019 = vmatpush2.msra.mxu0 0.0
      %2020 = vmatprep.subr.mxu0 0.0
      %2021 = vmatpush2.msra.mxu0 0.0
      %2022 = vmatprep.subr.mxu0 0.0
      %2023 = vmatpush2.msra.mxu0 0.0
      %2024 = vmatprep.subr.mxu0 0.0
      %2025 = vmatpush2.msra.mxu0 0.0
      %2026 = vmatprep.subr.mxu0 0.0
      %2027 = vmatpush2.msra.mxu0 0.0
      %2028 = vmatprep.subr.mxu0 0.0
      %2029 = vmatpush2.msra.mxu0 0.0
      %2030 = vmatprep.subr.mxu0 0.0
      %2031 = vmatpush2.msra.mxu0 0.0
      %2032 = vmatprep.mubr.f32.mxu0 0.0
      %2033 = vmatmul.mubr.f32.gmra.mxu0 %v1966
      %v2034 = vpop.f32.mrf.mxu0
      %v2035 = vadd.f32 %v1962, %v2034
      %v2036 = vpop.f32.mrf.mxu0
      %2037 = vdwg.mxu0
      %v2038 = vld [vmem:[%s588] sm:$0xff]
      %v2039 = vadd.f32 %v2035, %v2038
      %2040 = vst.msk [vmem:[%s605] sm:$0xff] %vm1964, %v2039
      %v2041 = vlaneseq
      %v2042 = vshrl.u32 %v2041, 7
      %v2043 = vsub.s32 0, %v2042
      %v2044 = vrot.slane %v1035, %v2043
      %2046 = vbcast.lane.b32.xlu0 %v2044, 256
      %v2047 = vpop.permute.xlu0 %2046
      %v2048 = vlaneseq
      %v2049 = vshrl.u32 %v2048, 7
      %v2050 = vsub.s32 1, %v2049
      %v2051 = vrot.slane %v1035, %v2050
      %2053 = vbcast.lane.b32.xlu0 %v2051, 256
      %v2054 = vpop.permute.xlu0 %2053
      %v2055 = vlaneseq
      %v2056 = vshrl.u32 %v2055, 7
      %v2057 = vsub.s32 2, %v2056
      %v2058 = vrot.slane %v1035, %v2057
      %2060 = vbcast.lane.b32.xlu0 %v2058, 256
      %v2061 = vpop.permute.xlu0 %2060
      %v2062 = vlaneseq
      %v2063 = vshrl.u32 %v2062, 7
      %v2064 = vsub.s32 3, %v2063
      %v2065 = vrot.slane %v1035, %v2064
      %2067 = vbcast.lane.b32.xlu0 %v2065, 256
      %v2068 = vpop.permute.xlu0 %2067
      %v2069 = vlaneseq
      %v2070 = vshrl.u32 %v2069, 7
      %v2071 = vsub.s32 4, %v2070
      %v2072 = vrot.slane %v1035, %v2071
      %2074 = vbcast.lane.b32.xlu0 %v2072, 256
      %v2075 = vpop.permute.xlu0 %2074
      %v2076 = vlaneseq
      %v2077 = vshrl.u32 %v2076, 7
      %v2078 = vsub.s32 5, %v2077
      %v2079 = vrot.slane %v1035, %v2078
      %2081 = vbcast.lane.b32.xlu0 %v2079, 256
      %v2082 = vpop.permute.xlu0 %2081
      %v2083 = vlaneseq
      %v2084 = vshrl.u32 %v2083, 7
      %v2085 = vsub.s32 6, %v2084
      %v2086 = vrot.slane %v1035, %v2085
      %2088 = vbcast.lane.b32.xlu0 %v2086, 256
      %v2089 = vpop.permute.xlu0 %2088
      %v2090 = vlaneseq
      %v2091 = vshrl.u32 %v2090, 7
      %v2092 = vsub.s32 7, %v2091
      %v2093 = vrot.slane %v1035, %v2092
      %2095 = vbcast.lane.b32.xlu0 %v2093, 256
      %v2096 = vpop.permute.xlu0 %2095
      %v2097 = vlaneseq
      %v2098 = vshrl.u32 %v2097, 7
      %v2099 = vsub.s32 0, %v2098
      %v2100 = vrot.slane %v1326, %v2099
      %2102 = vbcast.lane.b32.xlu0 %v2100, 256
      %v2103 = vpop.permute.xlu0 %2102
      %v2104 = vlaneseq
      %v2105 = vshrl.u32 %v2104, 7
      %v2106 = vsub.s32 1, %v2105
      %v2107 = vrot.slane %v1326, %v2106
      %2109 = vbcast.lane.b32.xlu0 %v2107, 256
      %v2110 = vpop.permute.xlu0 %2109
      %v2111 = vlaneseq
      %v2112 = vshrl.u32 %v2111, 7
      %v2113 = vsub.s32 2, %v2112
      %v2114 = vrot.slane %v1326, %v2113
      %2116 = vbcast.lane.b32.xlu0 %v2114, 256
      %v2117 = vpop.permute.xlu0 %2116
      %v2118 = vlaneseq
      %v2119 = vshrl.u32 %v2118, 7
      %v2120 = vsub.s32 3, %v2119
      %v2121 = vrot.slane %v1326, %v2120
      %2123 = vbcast.lane.b32.xlu0 %v2121, 256
      %v2124 = vpop.permute.xlu0 %2123
      %v2125 = vlaneseq
      %v2126 = vshrl.u32 %v2125, 7
      %v2127 = vsub.s32 4, %v2126
      %v2128 = vrot.slane %v1326, %v2127
      %2130 = vbcast.lane.b32.xlu0 %v2128, 256
      %v2131 = vpop.permute.xlu0 %2130
      %v2132 = vlaneseq
      %v2133 = vshrl.u32 %v2132, 7
      %v2134 = vsub.s32 5, %v2133
      %v2135 = vrot.slane %v1326, %v2134
      %2137 = vbcast.lane.b32.xlu0 %v2135, 256
      %v2138 = vpop.permute.xlu0 %2137
      %v2139 = vlaneseq
      %v2140 = vshrl.u32 %v2139, 7
      %v2141 = vsub.s32 6, %v2140
      %v2142 = vrot.slane %v1326, %v2141
      %2144 = vbcast.lane.b32.xlu0 %v2142, 256
      %v2145 = vpop.permute.xlu0 %2144
      %v2146 = vlaneseq
      %v2147 = vshrl.u32 %v2146, 7
      %v2148 = vsub.s32 7, %v2147
      %v2149 = vrot.slane %v1326, %v2148
      %2151 = vbcast.lane.b32.xlu0 %v2149, 256
      %v2152 = vpop.permute.xlu0 %2151
      %v2153 = vlaneseq
      %v2154 = vshrl.u32 %v2153, 7
      %v2155 = vsub.s32 0, %v2154
      %v2156 = vrot.slane %v1569, %v2155
      %2158 = vbcast.lane.b32.xlu0 %v2156, 256
      %v2159 = vpop.permute.xlu0 %2158
      %v2160 = vlaneseq
      %v2161 = vshrl.u32 %v2160, 7
      %v2162 = vsub.s32 1, %v2161
      %v2163 = vrot.slane %v1569, %v2162
      %2165 = vbcast.lane.b32.xlu0 %v2163, 256
      %v2166 = vpop.permute.xlu0 %2165
      %v2167 = vlaneseq
      %v2168 = vshrl.u32 %v2167, 7
      %v2169 = vsub.s32 2, %v2168
      %v2170 = vrot.slane %v1569, %v2169
      %2172 = vbcast.lane.b32.xlu0 %v2170, 256
      %v2173 = vpop.permute.xlu0 %2172
      %v2174 = vlaneseq
      %v2175 = vshrl.u32 %v2174, 7
      %v2176 = vsub.s32 3, %v2175
      %v2177 = vrot.slane %v1569, %v2176
      %2179 = vbcast.lane.b32.xlu0 %v2177, 256
      %v2180 = vpop.permute.xlu0 %2179
      %v2181 = vlaneseq
      %v2182 = vshrl.u32 %v2181, 7
      %v2183 = vsub.s32 4, %v2182
      %v2184 = vrot.slane %v1569, %v2183
      %2186 = vbcast.lane.b32.xlu0 %v2184, 256
      %v2187 = vpop.permute.xlu0 %2186
      %v2188 = vlaneseq
      %v2189 = vshrl.u32 %v2188, 7
      %v2190 = vsub.s32 5, %v2189
      %v2191 = vrot.slane %v1569, %v2190
      %2193 = vbcast.lane.b32.xlu0 %v2191, 256
      %v2194 = vpop.permute.xlu0 %2193
      %v2195 = vlaneseq
      %v2196 = vshrl.u32 %v2195, 7
      %v2197 = vsub.s32 6, %v2196
      %v2198 = vrot.slane %v1569, %v2197
      %2200 = vbcast.lane.b32.xlu0 %v2198, 256
      %v2201 = vpop.permute.xlu0 %2200
      %v2202 = vlaneseq
      %v2203 = vshrl.u32 %v2202, 7
      %v2204 = vsub.s32 7, %v2203
      %v2205 = vrot.slane %v1569, %v2204
      %2207 = vbcast.lane.b32.xlu0 %v2205, 256
      %v2208 = vpop.permute.xlu0 %2207
      %v2209 = vlaneseq
      %v2210 = vshrl.u32 %v2209, 7
      %v2211 = vsub.s32 0, %v2210
      %v2212 = vrot.slane %v1811, %v2211
      %2214 = vbcast.lane.b32.xlu0 %v2212, 256
      %v2215 = vpop.permute.xlu0 %2214
      %v2216 = vlaneseq
      %v2217 = vshrl.u32 %v2216, 7
      %v2218 = vsub.s32 1, %v2217
      %v2219 = vrot.slane %v1811, %v2218
      %2221 = vbcast.lane.b32.xlu0 %v2219, 256
      %v2222 = vpop.permute.xlu0 %2221
      %v2223 = vlaneseq
      %v2224 = vshrl.u32 %v2223, 7
      %v2225 = vsub.s32 2, %v2224
      %v2226 = vrot.slane %v1811, %v2225
      %2228 = vbcast.lane.b32.xlu0 %v2226, 256
      %v2229 = vpop.permute.xlu0 %2228
      %v2230 = vlaneseq
      %v2231 = vshrl.u32 %v2230, 7
      %v2232 = vsub.s32 3, %v2231
      %v2233 = vrot.slane %v1811, %v2232
      %2235 = vbcast.lane.b32.xlu0 %v2233, 256
      %v2236 = vpop.permute.xlu0 %2235
      %v2237 = vlaneseq
      %v2238 = vshrl.u32 %v2237, 7
      %v2239 = vsub.s32 4, %v2238
      %v2240 = vrot.slane %v1811, %v2239
      %2242 = vbcast.lane.b32.xlu0 %v2240, 256
      %v2243 = vpop.permute.xlu0 %2242
      %v2244 = vlaneseq
      %v2245 = vshrl.u32 %v2244, 7
      %v2246 = vsub.s32 5, %v2245
      %v2247 = vrot.slane %v1811, %v2246
      %2249 = vbcast.lane.b32.xlu0 %v2247, 256
      %v2250 = vpop.permute.xlu0 %2249
      %v2251 = vlaneseq
      %v2252 = vshrl.u32 %v2251, 7
      %v2253 = vsub.s32 6, %v2252
      %v2254 = vrot.slane %v1811, %v2253
      %2256 = vbcast.lane.b32.xlu0 %v2254, 256
      %v2257 = vpop.permute.xlu0 %2256
      %v2258 = vlaneseq
      %v2259 = vshrl.u32 %v2258, 7
      %v2260 = vsub.s32 7, %v2259
      %v2261 = vrot.slane %v1811, %v2260
      %2263 = vbcast.lane.b32.xlu0 %v2261, 256
      %v2264 = vpop.permute.xlu0 %2263
      %vm2265 = vcmask 7168
      %v2266 = vsel %vm2265, %v2047, %v2103
      %v2267 = vsel %vm2265, %v2054, %v2110
      %v2268 = vsel %vm2265, %v2061, %v2117
      %v2269 = vsel %vm2265, %v2068, %v2124
      %v2270 = vsel %vm2265, %v2075, %v2131
      %v2271 = vsel %vm2265, %v2082, %v2138
      %v2272 = vsel %vm2265, %v2089, %v2145
      %v2273 = vsel %vm2265, %v2096, %v2152
      %vm2274 = vcmask 15360
      %v2275 = vsel %vm2274, %v2266, %v2159
      %v2276 = vsel %vm2274, %v2267, %v2166
      %v2277 = vsel %vm2274, %v2268, %v2173
      %v2278 = vsel %vm2274, %v2269, %v2180
      %v2279 = vsel %vm2274, %v2270, %v2187
      %v2280 = vsel %vm2274, %v2271, %v2194
      %v2281 = vsel %vm2274, %v2272, %v2201
      %v2282 = vsel %vm2274, %v2273, %v2208
      %vm2283 = vcmask 23552
      %v2284 = vsel %vm2283, %v2275, %v2215
      %v2285 = vsel %vm2283, %v2276, %v2222
      %v2286 = vsel %vm2283, %v2277, %v2229
      %v2287 = vsel %vm2283, %v2278, %v2236
      %v2288 = vsel %vm2283, %v2279, %v2243
      %v2289 = vsel %vm2283, %v2280, %v2250
      %v2290 = vsel %vm2283, %v2281, %v2257
      %v2291 = vsel %vm2283, %v2282, %v2264
      %v2292 = vld [vmem:[%s11] sm:$0xf]
      %v2293 = vld [vmem:[%s12] sm:$0x1]
      %v2295 = vlaneseq
      %v2296 = vshrl.u32 %v2295, 7
      %v2297 = vsub.s32 0, %v2296
      %v2298 = vrot.slane %v2293, %v2297
      %vm2300 = vcmask 31744
      %v2302 = vsel %vm2300, %v2284, 0
      %v2305 = vsel %vm2300, %v2285, 0
      %v2308 = vsel %vm2300, %v2286, 0
      %v2311 = vsel %vm2300, %v2287, 0
      %v2314 = vsel %vm2300, %v2288, 0
      %v2317 = vsel %vm2300, %v2289, 0
      %v2320 = vsel %vm2300, %v2290, 0
      %v2323 = vsel %vm2300, %v2291, 0
      %v2326 = vsel %vm1164, %v2292, 0
      %2328 = vmatprep.subr.mxu0 0.0
      %2329 = vmatpush1.msra.mxu0 0.0
      %2330 = vmatprep.subr.mxu0 0.0
      %2331 = vmatpush1.msra.mxu0 0.0
      %2332 = vmatprep.subr.mxu0 0.0
      %2333 = vmatpush1.msra.mxu0 0.0
      %2334 = vmatprep.subr.mxu0 0.0
      %2335 = vmatpush1.msra.mxu0 0.0
      %2336 = vmatprep.subr.mxu0 0.0
      %2337 = vmatpush1.msra.mxu0 0.0
      %2338 = vmatprep.subr.mxu0 0.0
      %2339 = vmatpush1.msra.mxu0 0.0
      %2340 = vmatprep.subr.mxu0 0.0
      %2341 = vmatpush1.msra.mxu0 0.0
      %2342 = vmatprep.subr.mxu0 0.0
      %2343 = vmatpush1.msra.mxu0 0.0
      %2344 = vmatprep.subr.mxu0 0.0
      %2345 = vmatpush1.msra.mxu0 0.0
      %2346 = vmatprep.subr.mxu0 0.0
      %2347 = vmatpush1.msra.mxu0 0.0
      %2348 = vmatprep.subr.mxu0 0.0
      %2349 = vmatpush1.msra.mxu0 0.0
      %2350 = vmatprep.subr.mxu0 0.0
      %2351 = vmatpush1.msra.mxu0 0.0
      %2352 = vmatprep.subr.mxu0 0.0
      %2353 = vmatpush1.msra.mxu0 0.0
      %2354 = vmatprep.subr.mxu0 0.0
      %2355 = vmatpush1.msra.mxu0 0.0
      %2356 = vmatprep.subr.mxu0 0.0
      %2357 = vmatpush1.msra.mxu0 0.0
      %2358 = vmatprep.subr.mxu0 0.0
      %2359 = vmatpush1.msra.mxu0 %v2326
      %2360 = vmatprep.subr.mxu0 0.0
      %2361 = vmatpush2.msra.mxu0 0.0
      %2362 = vmatprep.subr.mxu0 0.0
      %2363 = vmatpush2.msra.mxu0 0.0
      %2364 = vmatprep.subr.mxu0 0.0
      %2365 = vmatpush2.msra.mxu0 0.0
      %2366 = vmatprep.subr.mxu0 0.0
      %2367 = vmatpush2.msra.mxu0 0.0
      %2368 = vmatprep.subr.mxu0 0.0
      %2369 = vmatpush2.msra.mxu0 0.0
      %2370 = vmatprep.subr.mxu0 0.0
      %2371 = vmatpush2.msra.mxu0 0.0
      %2372 = vmatprep.subr.mxu0 0.0
      %2373 = vmatpush2.msra.mxu0 0.0
      %2374 = vmatprep.subr.mxu0 0.0
      %2375 = vmatpush2.msra.mxu0 0.0
      %2376 = vmatprep.subr.mxu0 0.0
      %2377 = vmatpush2.msra.mxu0 0.0
      %2378 = vmatprep.subr.mxu0 0.0
      %2379 = vmatpush2.msra.mxu0 0.0
      %2380 = vmatprep.subr.mxu0 0.0
      %2381 = vmatpush2.msra.mxu0 0.0
      %2382 = vmatprep.subr.mxu0 0.0
      %2383 = vmatpush2.msra.mxu0 0.0
      %2384 = vmatprep.subr.mxu0 0.0
      %2385 = vmatpush2.msra.mxu0 0.0
      %2386 = vmatprep.subr.mxu0 0.0
      %2387 = vmatpush2.msra.mxu0 0.0
      %2388 = vmatprep.subr.mxu0 0.0
      %2389 = vmatpush2.msra.mxu0 0.0
      %2390 = vmatprep.subr.mxu0 0.0
      %2391 = vmatpush2.msra.mxu0 0.0
      %2392 = vmatprep.mubr.f32.mxu0 0.0
      %2393 = vmatmul.mubr.f32.gmra.mxu0 %v2302
      %v2394 = vpop.f32.mrf.mxu0
      %v2395 = vadd.f32 %v2298, %v2394
      %v2396 = vpop.f32.mrf.mxu0
      %2397 = vmatprep.mubr.f32.mxu0 0.0
      %2398 = vmatmul.mubr.f32.gmra.mxu0 %v2305
      %v2399 = vpop.f32.mrf.mxu0
      %v2400 = vadd.f32 %v2298, %v2399
      %v2401 = vpop.f32.mrf.mxu0
      %2402 = vmatprep.mubr.f32.mxu0 0.0
      %2403 = vmatmul.mubr.f32.gmra.mxu0 %v2308
      %v2404 = vpop.f32.mrf.mxu0
      %v2405 = vadd.f32 %v2298, %v2404
      %v2406 = vpop.f32.mrf.mxu0
      %2407 = vmatprep.mubr.f32.mxu0 0.0
      %2408 = vmatmul.mubr.f32.gmra.mxu0 %v2311
      %v2409 = vpop.f32.mrf.mxu0
      %v2410 = vadd.f32 %v2298, %v2409
      %v2411 = vpop.f32.mrf.mxu0
      %2412 = vmatprep.mubr.f32.mxu0 0.0
      %2413 = vmatmul.mubr.f32.gmra.mxu0 %v2314
      %v2414 = vpop.f32.mrf.mxu0
      %v2415 = vadd.f32 %v2298, %v2414
      %v2416 = vpop.f32.mrf.mxu0
      %2417 = vmatprep.mubr.f32.mxu0 0.0
      %2418 = vmatmul.mubr.f32.gmra.mxu0 %v2317
      %v2419 = vpop.f32.mrf.mxu0
      %v2420 = vadd.f32 %v2298, %v2419
      %v2421 = vpop.f32.mrf.mxu0
      %2422 = vmatprep.mubr.f32.mxu0 0.0
      %2423 = vmatmul.mubr.f32.gmra.mxu0 %v2320
      %v2424 = vpop.f32.mrf.mxu0
      %v2425 = vadd.f32 %v2298, %v2424
      %v2426 = vpop.f32.mrf.mxu0
      %2427 = vmatprep.mubr.f32.mxu0 0.0
      %2428 = vmatmul.mubr.f32.gmra.mxu0 %v2323
      %v2429 = vpop.f32.mrf.mxu0
      %v2430 = vadd.f32 %v2298, %v2429
      %v2431 = vpop.f32.mrf.mxu0
      %2432 = vdwg.mxu0
      %v2433 = vadd.f32 %v2395, %v617
      %v2434 = vadd.f32 %v2400, %v618
      %v2435 = vadd.f32 %v2405, %v619
      %v2436 = vadd.f32 %v2410, %v620
      %v2437 = vadd.f32 %v2415, %v621
      %v2438 = vadd.f32 %v2420, %v622
      %v2439 = vadd.f32 %v2425, %v623
      %v2440 = vadd.f32 %v2430, %v624
      %2441 = vst.msk [vmem:[%s614] sm:$0xff] %vm625, %v2433
      %2442 = vst.msk [vmem:[%s614 + $0x8] sm:$0xff] %vm625, %v2434
      %2443 = vst.msk [vmem:[%s614 + $0x10] sm:$0xff] %vm625, %v2435
      %2444 = vst.msk [vmem:[%s614 + $0x18] sm:$0xff] %vm625, %v2436
      %2445 = vst.msk [vmem:[%s614 + $0x20] sm:$0xff] %vm625, %v2437
      %2446 = vst.msk [vmem:[%s614 + $0x28] sm:$0xff] %vm625, %v2438
      %2447 = vst.msk [vmem:[%s614 + $0x30] sm:$0xff] %vm625, %v2439
      %2448 = vst.msk [vmem:[%s614 + $0x38] sm:$0xff] %vm625, %v2440
      %p2449 = scmp.lt.s32.totalorder %s30, 1
      %s2450 = scalar_select %p2449, %s30, 1
      %p2451 = scmp.lt.s32.totalorder %s31, 0
      %s2452 = scalar_select %p2451, %s31, 0
      %s2453 = sadd.s32 %s2452, %s2450
      %s2454 = smul.addr %s2453, 8
      %s2455 = scalar_lea.vmem %s13, %s2454
      %s2456 = smul.u32 8, %s31
      %p2457 = scmp.lt.s32.totalorder %s30, 1
      %s2458 = scalar_select %p2457, %s30, 1
      %p2459 = scmp.lt.s32.totalorder %s2456, 7
      %s2460 = scalar_select %p2459, %s2456, 7
      %s2461 = smul.addr %s2458, 8
      %s2462 = sadd.s32 %s2460, %s2461
      %s2463 = smul.addr %s2462, 8
      %s2464 = scalar_lea.vmem %s14, %s2463
      // Predicated region
      $region73: #{egt_forward.5} parent=71 // pred_check
        %p2465 = pneg %p362
      $region74: #{egt_forward.5} parent=71 // pred_check_branch
        %2467 = sbr.rel (%p2465) target = $region76
      $region75: #{egt_forward.5} parent=71 // pred_region
        _
      $region76: #{egt_forward.5} parent=71 // pred_fallthru
        _
      // Predicated region
      $region77: #{egt_forward.5} parent=71 // pred_check
        %p2468 = pneg %p390
      $region78: #{egt_forward.5} parent=71 // pred_check_branch
        %2470 = sbr.rel (%p2468) target = $region80
      $region79: #{egt_forward.5} parent=71 // pred_region
        %s2471 = smul.u32 8, %s31
      $region80: #{egt_forward.5} parent=71 // pred_fallthru
        _
    $region72: #{egt_forward.5} parent=5 // pred_fallthru
      _
    %p2472 = scmp.le.s32.totalorder 2, %s21
    // Predicated region
    $region81: #{egt_forward.5} parent=5 // pred_check
      %p2473 = pneg %p2472
    $region82: #{egt_forward.5} parent=5 // pred_check_branch
      %2475 = sbr.rel (%p2473) target = $region84
    $region83: #{egt_forward.5} parent=5 // pred_region
      %s2476 = ssub.s32 %s21, 2
      // Predicated region
      $region85: #{egt_forward.5} parent=83 // pred_check
        %p2477 = pneg %p368
      $region86: #{egt_forward.5} parent=83 // pred_check_branch
        %2479 = sbr.rel (%p2477) target = $region88
      $region87: #{egt_forward.5} parent=83 // pred_region
        %p2480 = scmp.lt.s32.totalorder %s32, 1
        %s2481 = scalar_select %p2480, %s32, 1
        %p2482 = scmp.lt.s32.totalorder %s33, 0
        %s2483 = scalar_select %p2482, %s33, 0
        %s2484 = sadd.s32 %s2483, %s2481
        %s2485 = smul.addr %s2484, 8
        %s2486 = scalar_lea.vmem %s13, %s2485
      $region88: #{egt_forward.5} parent=83 // pred_fallthru
        _
      // Predicated region
      $region89: #{egt_forward.5} parent=83 // pred_check
        %p2487 = pneg %p396
      $region90: #{egt_forward.5} parent=83 // pred_check_branch
        %2489 = sbr.rel (%p2487) target = $region92
      $region91: #{egt_forward.5} parent=83 // pred_region
        %s2490 = smul.u32 8, %s33
        %p2491 = scmp.lt.s32.totalorder %s32, 1
        %s2492 = scalar_select %p2491, %s32, 1
        %p2493 = scmp.lt.s32.totalorder %s2490, 7
        %s2494 = scalar_select %p2493, %s2490, 7
        %s2495 = smul.addr %s2492, 8
        %s2496 = sadd.s32 %s2494, %s2495
        %s2497 = smul.addr %s2496, 8
        %s2498 = scalar_lea.vmem %s14, %s2497
      $region92: #{egt_forward.5} parent=83 // pred_fallthru
        _
    $region84: #{egt_forward.5} parent=5 // pred_fallthru
      _
  $region6: #{egt_forward.5} parent=0 // loop_footer
    %s25 = sadd.s32 1, %s21
  $region7: #{egt_forward.5} parent=0 // loop_footer_branch
    %20 = sbr.rel target = $region3
  $region8: #{egt_forward.5} parent=0 // loop_exit
    _

</llo_original>
